<compile_context>
chip_gen: v5e
topology: v5e:2x2
jax: 0.10.0
libtpu: 0.0.40
codegen_flags: <defaults>
</compile_context>

<pallas_src>
import jax
import jax.numpy as jnp
import numpy as np
from jax import lax
from jax.experimental import pallas as pl
from jax.experimental.pallas import tpu as pltpu

_EPS = 1e-5
_CP = 128   # channel padding target = vreg lane width


def _double_conv_kernel(x_ref, w1_ref, b1_ref, w2_ref, b2_ref, o_ref, mid_ref):
    """One (batch, row-block) tile per grid step.

    x_ref   : (1, 1, TH+4, W+2, Cp) bf16 input block (2-row halo, 1-col halo, ch-pad)
    w*_ref  : (3, 3*Cp, Cp)         bf16 weights (BN scale folded), K = (dx, cin)
    b*_ref  : (1, Cp)               f32 folded bias (conv bias + BN shift)
    o_ref   : (1, TH, W, Cp)        bf16 output block, lane-dense (Cp = 128)
    mid_ref : (TH+2, W+2, Cp)       bf16 VMEM scratch: padded intermediate
    """
    TH, W, Cp = o_ref.shape[1], o_ref.shape[2], o_ref.shape[3]
    h = pl.program_id(1)
    n_h = pl.num_programs(1)

    def conv3x3(src, w_ref, rows):
        # src: (rows+2, W+2, Cp).  One matmul per dy tap; the 3 dx taps are
        # concatenated along K so each matmul is (rows*W, 3*Cp) @ (3*Cp, Cp).
        acc = jnp.zeros((rows * W, Cp), jnp.float32)
        for dy in range(3):
            r = src[dy:dy + rows]                               # (rows, W+2, Cp)
            patch = jnp.concatenate(
                [r[:, 0:W], r[:, 1:W + 1], r[:, 2:W + 2]], axis=-1)
            acc += jnp.dot(patch.reshape(rows * W, 3 * Cp), w_ref[dy],
                           preferred_element_type=jnp.float32)
        return acc

    # ---- conv1 (BN scale folded into weights) + bias + ReLU ----
    # Computed over TH+2 rows so conv2 sees real neighbours across row-block edges.
    x = x_ref[0, 0]                                             # (TH+4, W+2, Cp)
    a1 = jnp.maximum(conv3x3(x, w1_ref, TH + 2) + b1_ref[...], 0.0)
    a1 = a1.reshape(TH + 2, W, Cp).astype(jnp.bfloat16)

    # Single full-width, sublane-aligned store: bake the zero column halo in-register.
    zcol = jnp.zeros((TH + 2, 1, Cp), jnp.bfloat16)
    mid_ref[...] = jnp.concatenate([zcol, a1, zcol], axis=1)

    # conv2's SAME padding needs a ZERO halo row at the image top/bottom (not conv1
    # evaluated outside the image) -> overwrite just that row at boundary blocks.
    @pl.when(h == 0)
    def _():
        mid_ref[0:1, :, :] = jnp.zeros((1, W + 2, Cp), jnp.bfloat16)

    @pl.when(h == n_h - 1)
    def _():
        mid_ref[TH + 1:TH + 2, :, :] = jnp.zeros((1, W + 2, Cp), jnp.bfloat16)

    # ---- conv2 (BN scale folded) + bias + ReLU -> bf16 lane-dense output ----
    a2 = jnp.maximum(conv3x3(mid_ref[...], w2_ref, TH) + b2_ref[...], 0.0)
    o_ref[0] = a2.reshape(TH, W, Cp).astype(o_ref.dtype)


def _pick_row_block(H, W, cp=_CP, budget_bytes=24 << 20):
    """Largest TH dividing H whose per-block working set fits a conservative budget
    (sized for v7x's 64 MiB physical VMEM; v5e/v6e have headroom to spare)."""
    for th in range(H, 0, -1):
        if H % th:
            continue
        est = (2 * (th + 4) * (W + 2) * cp * 2      # input block x2 (double buffer), bf16
               + 2 * th * W * cp * 2                # output block x2, bf16
               + (th + 2) * (W + 2) * cp * 2        # mid scratch, bf16
               + (th + 2) * W * 3 * cp * 2          # dx-concat patch, bf16
               + (th + 2) * W * cp * 4              # f32 accumulator
               + 2 * 2 * 3 * 3 * cp * cp * 2)       # both weight blocks, double-buffered
        if est <= budget_bytes:
            return th
    return 1


def double_conv(x_nchw, params, out_channels, *, row_block=None, layout="nchw"):
    """params = (w1, b1, w2, b2) already folded/padded (see _make_layer).

    layout="nchw"        -> (N, out_channels, H, W) bf16 (PyTorch-style layout)
    layout="nhwc_padded" -> (N, H, W, 128) bf16, ready to feed the next DoubleConv
                            without an extra HBM transpose/slice pass.
    """
    w1, b1, w2, b2 = params
    N, Cin, H, W = x_nchw.shape
    Cp = _CP
    assert Cin <= Cp and out_channels <= Cp

    TH = row_block if row_block is not None else _pick_row_block(H, W)
    if H % TH:
        raise ValueError(f"row_block={TH} must divide H={H}")
    nH = H // TH
    # Best layouts when W (sublane axis) and TH*W (matmul M) are multiples of 8;
    # other sizes are still correct, just pay a relayout on the reshape.

    # NCHW -> NHWC, bf16, pad: 2-row halo (two stacked 3x3 convs), 1-col halo, 128 lanes.
    x = jnp.transpose(x_nchw, (0, 2, 3, 1)).astype(jnp.bfloat16)
    x = jnp.pad(x, ((0, 0), (2, 2), (1, 1), (0, Cp - Cin)))

    # Per-block re-pad: every row block carries its own halo rows, so the kernel's
    # BlockSpec stays plain (non-overlapping) Blocked indexing.
    x_blocks = jnp.stack([x[:, h * TH:h * TH + TH + 4] for h in range(nH)], axis=1)
    # x_blocks: (N, nH, TH+4, W+2, Cp)

    flops = 4 * N * H * W * 9 * Cp * Cp                    # 2 convs x 2 flops/MAC
    bytes_accessed = (x_blocks.size * 2 + N * H * W * Cp * 2
                      + (w1.size + w2.size) * 2 + (b1.size + b2.size) * 4)

    out_nhwc = pl.pallas_call(
        _double_conv_kernel,
        out_shape=jax.ShapeDtypeStruct((N, H, W, Cp), jnp.bfloat16),
        grid_spec=pltpu.PrefetchScalarGridSpec(
            num_scalar_prefetch=0,
            grid=(N, nH),
            in_specs=[
                pl.BlockSpec((1, 1, TH + 4, W + 2, Cp), lambda n, h: (n, h, 0, 0, 0)),
                pl.BlockSpec((3, 3 * Cp, Cp), lambda n, h: (0, 0, 0)),
                pl.BlockSpec((1, Cp), lambda n, h: (0, 0)),
                pl.BlockSpec((3, 3 * Cp, Cp), lambda n, h: (0, 0, 0)),
                pl.BlockSpec((1, Cp), lambda n, h: (0, 0)),
            ],
            out_specs=pl.BlockSpec((1, TH, W, Cp), lambda n, h: (n, h, 0, 0)),
            scratch_shapes=[pltpu.VMEM((TH + 2, W + 2, Cp), jnp.bfloat16)],
        ),
        compiler_params=pltpu.CompilerParams(
            dimension_semantics=("parallel", "parallel"),
            vmem_limit_bytes=48 * 1024 * 1024),
        cost_estimate=pl.CostEstimate(flops=int(flops), transcendentals=0,
                                      bytes_accessed=int(bytes_accessed)),
    )(x_blocks, w1, b1, w2, b2)

    if layout == "nhwc_padded":
        return out_nhwc
    # Strip channel padding, NHWC -> NCHW (PyTorch layout).
    return jnp.transpose(out_nhwc[..., :out_channels], (0, 3, 1, 2))


def _make_layer(key, cin, cout):
    """Deterministic init of one (Conv2d + BatchNorm2d) layer.

    Returns kernel-ready params: bf16 weights with the BN scale folded per output
    channel, flattened to (3, 3*Cp, Cp); f32 folded bias padded to Cp lanes.  Also
    returns the raw params for the plain-JAX reference.
    """
    kw, kb, kg, kbe, km, kv = jax.random.split(key, 6)
    w = jax.random.normal(kw, (3, 3, cin, cout), jnp.float32) * 0.1   # HWIO
    b = jax.random.normal(kb, (cout,), jnp.float32) * 0.1             # conv bias
    gamma = jax.random.uniform(kg, (cout,), jnp.float32, 0.5, 1.5)
    beta = jax.random.normal(kbe, (cout,), jnp.float32) * 0.1
    mean = jax.random.normal(km, (cout,), jnp.float32) * 0.1
    var = jax.random.uniform(kv, (cout,), jnp.float32, 0.5, 1.5)

    scale = gamma / jnp.sqrt(var + _EPS)
    bias = beta + (b - mean) * scale

    Cp = _CP
    w_scaled = w * scale                                   # fold BN scale (f32), per cout
    w_p = jnp.pad(w_scaled, ((0, 0), (0, 0), (0, Cp - cin), (0, Cp - cout)))
    w_k = w_p.reshape(3, 3 * Cp, Cp).astype(jnp.bfloat16)  # K index = dx*Cp + cin
    b_k = jnp.pad(bias, (0, Cp - cout)).reshape(1, Cp).astype(jnp.float32)

    raw = (w, b, gamma, beta, mean, var)
    return (w_k, b_k), raw


def _ref_double_conv(x_nchw, raw1, raw2):
    """Plain-JAX reference (conv + inference BN + ReLU, twice); f32 output."""
    x = jnp.transpose(x_nchw, (0, 2, 3, 1))

    def layer(x, raw):
        w, b, gamma, beta, mean, var = raw
        y = lax.conv_general_dilated(
            x.astype(jnp.bfloat16), w.astype(jnp.bfloat16),
            window_strides=(1, 1), padding="SAME",
            dimension_numbers=("NHWC", "HWIO", "NHWC"),
            preferred_element_type=jnp.float32)
        y = y + b
        y = (y - mean) / jnp.sqrt(var + _EPS) * gamma + beta
        return jnp.maximum(y, 0.0)

    x = layer(x, raw1)
    x = layer(x, raw2)
    return jnp.transpose(x, (0, 3, 1, 2))


if __name__ == "__main__":
    key = jax.random.PRNGKey(0)
    kx, k1, k2 = jax.random.split(key, 3)

    in_channels, mid_channels, out_channels = 4, 8, 8
    N, H, W = 2, 16, 16

    x = jax.random.normal(kx, (N, in_channels, H, W), jnp.float32)  # NCHW like PyTorch
    p1, raw1 = _make_layer(k1, in_channels, mid_channels)
    p2, raw2 = _make_layer(k2, mid_channels, out_channels)

    # row_block=8 exercises the multi-row-block path (grid = (2, 2)) at test size.
    out = double_conv(x, p1 + p2, out_channels, row_block=8)
    out = jax.block_until_ready(out)

    ref = _ref_double_conv(x, raw1, raw2)
    assert out.shape == (N, out_channels, H, W)
    # Tolerance reflects bf16 output + BN scale folded into bf16 weights (reference
    # keeps an f32 post-conv scale), with f32 accumulation on both paths.
    np.testing.assert_allclose(np.asarray(out.astype(jnp.float32)), np.asarray(ref),
                               rtol=2e-2, atol=2e-2)
    print("KERNEL_OK")
</pallas_src>

<mosaic_0001>
module attributes {stable_mosaic.version = 11 : i64} {
  func.func @_double_conv_kernel(%arg0: i32, %arg1: i32, %arg2: memref<1x1x12x18x128xbf16, #tpu.memory_space<vmem>>, %arg3: memref<3x384x128xbf16, #tpu.memory_space<vmem>>, %arg4: memref<1x128xf32, #tpu.memory_space<vmem>>, %arg5: memref<3x384x128xbf16, #tpu.memory_space<vmem>>, %arg6: memref<1x128xf32, #tpu.memory_space<vmem>>, %arg7: memref<1x8x16x128xbf16, #tpu.memory_space<vmem>>, %arg8: memref<10x18x128xbf16, #tpu.memory_space<vmem>>) attributes {dimension_semantics = [#tpu.dimension_semantics<parallel>, #tpu.dimension_semantics<parallel>], iteration_bounds = array<i64: 2, 2>, scalar_prefetch = 0 : i64, scratch_operands = 1 : i64, tpu.core_type = #tpu.core_type<tc>, window_params = [{transform_indices = @transform_0, window_bounds = array<i64: 1, 1, 12, 18, 128>}, {pipeline_mode = #tpu.pipeline_mode<synchronous>, transform_indices = @transform_1, window_bounds = array<i64: 3, 384, 128>}, {pipeline_mode = #tpu.pipeline_mode<synchronous>, transform_indices = @transform_2, window_bounds = array<i64: 1, 128>}, {pipeline_mode = #tpu.pipeline_mode<synchronous>, transform_indices = @transform_3, window_bounds = array<i64: 3, 384, 128>}, {pipeline_mode = #tpu.pipeline_mode<synchronous>, transform_indices = @transform_4, window_bounds = array<i64: 1, 128>}, {transform_indices = @transform_5, window_bounds = array<i64: 1, 8, 16, 128>}]} {
    %c0 = arith.constant 0 : index
    %c0_0 = arith.constant 0 : index
    %c0_1 = arith.constant 0 : index
    %c0_2 = arith.constant 0 : index
    %c0_3 = arith.constant 0 : index
    %0 = vector.load %arg2[%c0, %c0_0, %c0_1, %c0_2, %c0_3] : memref<1x1x12x18x128xbf16, #tpu.memory_space<vmem>>, vector<1x1x12x18x128xbf16>
    %1 = vector.shape_cast %0 : vector<1x1x12x18x128xbf16> to vector<12x18x128xbf16>
    %cst = arith.constant 0.000000e+00 : f32
    %2 = vector.broadcast %cst : f32 to vector<160x128xf32>
    %3 = vector.extract_strided_slice %1 {offsets = [0, 0, 0], sizes = [10, 18, 128], strides = [1, 1, 1]} : vector<12x18x128xbf16> to vector<10x18x128xbf16>
    %4 = vector.extract_strided_slice %3 {offsets = [0, 0, 0], sizes = [10, 16, 128], strides = [1, 1, 1]} : vector<10x18x128xbf16> to vector<10x16x128xbf16>
    %5 = vector.extract_strided_slice %3 {offsets = [0, 1, 0], sizes = [10, 16, 128], strides = [1, 1, 1]} : vector<10x18x128xbf16> to vector<10x16x128xbf16>
    %6 = vector.extract_strided_slice %3 {offsets = [0, 2, 0], sizes = [10, 16, 128], strides = [1, 1, 1]} : vector<10x18x128xbf16> to vector<10x16x128xbf16>
    %7 = tpu.concatenate %4, %5, %6 in 2 : vector<10x16x128xbf16>, vector<10x16x128xbf16>, vector<10x16x128xbf16> -> vector<10x16x384xbf16>
    %8 = vector.shape_cast %7 : vector<10x16x384xbf16> to vector<160x384xbf16>
    %c0_4 = arith.constant 0 : index
    %c0_5 = arith.constant 0 : index
    %c0_6 = arith.constant 0 : index
    %9 = vector.load %arg3[%c0_4, %c0_5, %c0_6] : memref<3x384x128xbf16, #tpu.memory_space<vmem>>, vector<1x384x128xbf16>
    %10 = vector.shape_cast %9 : vector<1x384x128xbf16> to vector<384x128xbf16>
    %cst_7 = arith.constant dense<0.000000e+00> : vector<160x128xf32>
    %11 = tpu.matmul %8, %10, %cst_7 {dimension_numbers = #tpu.dot_dimension_numbers<[1], [0], [0], [1], [0, 0, 1, 1], [], []>} : vector<160x384xbf16>, vector<384x128xbf16>, vector<160x128xf32> -> vector<160x128xf32>
    %12 = arith.addf %2, %11 : vector<160x128xf32>
    %13 = vector.extract_strided_slice %1 {offsets = [1, 0, 0], sizes = [10, 18, 128], strides = [1, 1, 1]} : vector<12x18x128xbf16> to vector<10x18x128xbf16>
    %14 = vector.extract_strided_slice %13 {offsets = [0, 0, 0], sizes = [10, 16, 128], strides = [1, 1, 1]} : vector<10x18x128xbf16> to vector<10x16x128xbf16>
    %15 = vector.extract_strided_slice %13 {offsets = [0, 1, 0], sizes = [10, 16, 128], strides = [1, 1, 1]} : vector<10x18x128xbf16> to vector<10x16x128xbf16>
    %16 = vector.extract_strided_slice %13 {offsets = [0, 2, 0], sizes = [10, 16, 128], strides = [1, 1, 1]} : vector<10x18x128xbf16> to vector<10x16x128xbf16>
    %17 = tpu.concatenate %14, %15, %16 in 2 : vector<10x16x128xbf16>, vector<10x16x128xbf16>, vector<10x16x128xbf16> -> vector<10x16x384xbf16>
    %18 = vector.shape_cast %17 : vector<10x16x384xbf16> to vector<160x384xbf16>
    %c1 = arith.constant 1 : index
    %c0_8 = arith.constant 0 : index
    %c0_9 = arith.constant 0 : index
    %19 = vector.load %arg3[%c1, %c0_8, %c0_9] : memref<3x384x128xbf16, #tpu.memory_space<vmem>>, vector<1x384x128xbf16>
    %20 = vector.shape_cast %19 : vector<1x384x128xbf16> to vector<384x128xbf16>
    %cst_10 = arith.constant dense<0.000000e+00> : vector<160x128xf32>
    %21 = tpu.matmul %18, %20, %cst_10 {dimension_numbers = #tpu.dot_dimension_numbers<[1], [0], [0], [1], [0, 0, 1, 1], [], []>} : vector<160x384xbf16>, vector<384x128xbf16>, vector<160x128xf32> -> vector<160x128xf32>
    %22 = arith.addf %12, %21 : vector<160x128xf32>
    %23 = vector.extract_strided_slice %1 {offsets = [2, 0, 0], sizes = [10, 18, 128], strides = [1, 1, 1]} : vector<12x18x128xbf16> to vector<10x18x128xbf16>
    %24 = vector.extract_strided_slice %23 {offsets = [0, 0, 0], sizes = [10, 16, 128], strides = [1, 1, 1]} : vector<10x18x128xbf16> to vector<10x16x128xbf16>
    %25 = vector.extract_strided_slice %23 {offsets = [0, 1, 0], sizes = [10, 16, 128], strides = [1, 1, 1]} : vector<10x18x128xbf16> to vector<10x16x128xbf16>
    %26 = vector.extract_strided_slice %23 {offsets = [0, 2, 0], sizes = [10, 16, 128], strides = [1, 1, 1]} : vector<10x18x128xbf16> to vector<10x16x128xbf16>
    %27 = tpu.concatenate %24, %25, %26 in 2 : vector<10x16x128xbf16>, vector<10x16x128xbf16>, vector<10x16x128xbf16> -> vector<10x16x384xbf16>
    %28 = vector.shape_cast %27 : vector<10x16x384xbf16> to vector<160x384xbf16>
    %c2 = arith.constant 2 : index
    %c0_11 = arith.constant 0 : index
    %c0_12 = arith.constant 0 : index
    %29 = vector.load %arg3[%c2, %c0_11, %c0_12] : memref<3x384x128xbf16, #tpu.memory_space<vmem>>, vector<1x384x128xbf16>
    %30 = vector.shape_cast %29 : vector<1x384x128xbf16> to vector<384x128xbf16>
    %cst_13 = arith.constant dense<0.000000e+00> : vector<160x128xf32>
    %31 = tpu.matmul %28, %30, %cst_13 {dimension_numbers = #tpu.dot_dimension_numbers<[1], [0], [0], [1], [0, 0, 1, 1], [], []>} : vector<160x384xbf16>, vector<384x128xbf16>, vector<160x128xf32> -> vector<160x128xf32>
    %32 = arith.addf %22, %31 : vector<160x128xf32>
    %c0_14 = arith.constant 0 : index
    %c0_15 = arith.constant 0 : index
    %33 = vector.load %arg4[%c0_14, %c0_15] : memref<1x128xf32, #tpu.memory_space<vmem>>, vector<1x128xf32>
    %34 = vector.broadcast %33 : vector<1x128xf32> to vector<160x128xf32>
    %35 = arith.addf %32, %34 : vector<160x128xf32>
    %cst_16 = arith.constant 0.000000e+00 : f32
    %36 = vector.broadcast %cst_16 : f32 to vector<160x128xf32>
    %37 = arith.maximumf %35, %36 : vector<160x128xf32>
    %38 = vector.shape_cast %37 : vector<160x128xf32> to vector<10x16x128xf32>
    %39 = arith.truncf %38 : vector<10x16x128xf32> to vector<10x16x128xbf16>
    %cst_17 = arith.constant 0.000000e+00 : bf16
    %40 = vector.broadcast %cst_17 : bf16 to vector<10x1x128xbf16>
    %41 = tpu.concatenate %40, %39, %40 in 1 : vector<10x1x128xbf16>, vector<10x16x128xbf16>, vector<10x1x128xbf16> -> vector<10x18x128xbf16>
    %c0_18 = arith.constant 0 : index
    %c0_19 = arith.constant 0 : index
    %c0_20 = arith.constant 0 : index
    %42 = vector.load %arg8[%c0_18, %c0_19, %c0_20] : memref<10x18x128xbf16, #tpu.memory_space<vmem>>, vector<10x18x128xbf16>
    tpu.vector_store %arg8[%c0_18, %c0_19, %c0_20], %41 {strides = array<i32>} : memref<10x18x128xbf16, #tpu.memory_space<vmem>>, vector<10x18x128xbf16>,
    %c0_i32 = arith.constant 0 : i32
    %43 = arith.cmpi eq, %arg1, %c0_i32 : i32
    %44 = arith.extui %43 : i1 to i32
    %c0_i32_21 = arith.constant 0 : i32
    %45 = arith.cmpi ne, %44, %c0_i32_21 : i32
    scf.if %45 {
      %cst_46 = arith.constant 0.000000e+00 : bf16
      %91 = vector.broadcast %cst_46 : bf16 to vector<1x18x128xbf16>
      %c0_47 = arith.constant 0 : index
      %c0_48 = arith.constant 0 : index
      %c0_49 = arith.constant 0 : index
      %92 = vector.load %arg8[%c0_47, %c0_48, %c0_49] : memref<10x18x128xbf16, #tpu.memory_space<vmem>>, vector<1x18x128xbf16>
      tpu.vector_store %arg8[%c0_47, %c0_48, %c0_49], %91 {strides = array<i32>} : memref<10x18x128xbf16, #tpu.memory_space<vmem>>, vector<1x18x128xbf16>,
    } else {
    }
    %c1_i32 = arith.constant 1 : i32
    %46 = arith.cmpi eq, %arg1, %c1_i32 : i32
    %47 = arith.extui %46 : i1 to i32
    %c0_i32_22 = arith.constant 0 : i32
    %48 = arith.cmpi ne, %47, %c0_i32_22 : i32
    scf.if %48 {
      %cst_46 = arith.constant 0.000000e+00 : bf16
      %91 = vector.broadcast %cst_46 : bf16 to vector<1x18x128xbf16>
      %c9 = arith.constant 9 : index
      %c0_47 = arith.constant 0 : index
      %c0_48 = arith.constant 0 : index
      %92 = vector.load %arg8[%c9, %c0_47, %c0_48] : memref<10x18x128xbf16, #tpu.memory_space<vmem>>, vector<1x18x128xbf16>
      tpu.vector_store %arg8[%c9, %c0_47, %c0_48], %91 {strides = array<i32>} : memref<10x18x128xbf16, #tpu.memory_space<vmem>>, vector<1x18x128xbf16>,
    } else {
    }
    %c0_23 = arith.constant 0 : index
    %c0_24 = arith.constant 0 : index
    %c0_25 = arith.constant 0 : index
    %49 = vector.load %arg8[%c0_23, %c0_24, %c0_25] : memref<10x18x128xbf16, #tpu.memory_space<vmem>>, vector<10x18x128xbf16>
    %cst_26 = arith.constant 0.000000e+00 : f32
    %50 = vector.broadcast %cst_26 : f32 to vector<128x128xf32>
    %51 = vector.extract_strided_slice %49 {offsets = [0, 0, 0], sizes = [8, 18, 128], strides = [1, 1, 1]} : vector<10x18x128xbf16> to vector<8x18x128xbf16>
    %52 = vector.extract_strided_slice %51 {offsets = [0, 0, 0], sizes = [8, 16, 128], strides = [1, 1, 1]} : vector<8x18x128xbf16> to vector<8x16x128xbf16>
    %53 = vector.extract_strided_slice %51 {offsets = [0, 1, 0], sizes = [8, 16, 128], strides = [1, 1, 1]} : vector<8x18x128xbf16> to vector<8x16x128xbf16>
    %54 = vector.extract_strided_slice %51 {offsets = [0, 2, 0], sizes = [8, 16, 128], strides = [1, 1, 1]} : vector<8x18x128xbf16> to vector<8x16x128xbf16>
    %55 = tpu.concatenate %52, %53, %54 in 2 : vector<8x16x128xbf16>, vector<8x16x128xbf16>, vector<8x16x128xbf16> -> vector<8x16x384xbf16>
    %56 = vector.shape_cast %55 : vector<8x16x384xbf16> to vector<128x384xbf16>
    %c0_27 = arith.constant 0 : index
    %c0_28 = arith.constant 0 : index
    %c0_29 = arith.constant 0 : index
    %57 = vector.load %arg5[%c0_27, %c0_28, %c0_29] : memref<3x384x128xbf16, #tpu.memory_space<vmem>>, vector<1x384x128xbf16>
    %58 = vector.shape_cast %57 : vector<1x384x128xbf16> to vector<384x128xbf16>
    %cst_30 = arith.constant dense<0.000000e+00> : vector<128x128xf32>
    %59 = tpu.matmul %56, %58, %cst_30 {dimension_numbers = #tpu.dot_dimension_numbers<[1], [0], [0], [1], [0, 0, 1, 1], [], []>} : vector<128x384xbf16>, vector<384x128xbf16>, vector<128x128xf32> -> vector<128x128xf32>
    %60 = arith.addf %50, %59 : vector<128x128xf32>
    %61 = vector.extract_strided_slice %49 {offsets = [1, 0, 0], sizes = [8, 18, 128], strides = [1, 1, 1]} : vector<10x18x128xbf16> to vector<8x18x128xbf16>
    %62 = vector.extract_strided_slice %61 {offsets = [0, 0, 0], sizes = [8, 16, 128], strides = [1, 1, 1]} : vector<8x18x128xbf16> to vector<8x16x128xbf16>
    %63 = vector.extract_strided_slice %61 {offsets = [0, 1, 0], sizes = [8, 16, 128], strides = [1, 1, 1]} : vector<8x18x128xbf16> to vector<8x16x128xbf16>
    %64 = vector.extract_strided_slice %61 {offsets = [0, 2, 0], sizes = [8, 16, 128], strides = [1, 1, 1]} : vector<8x18x128xbf16> to vector<8x16x128xbf16>
    %65 = tpu.concatenate %62, %63, %64 in 2 : vector<8x16x128xbf16>, vector<8x16x128xbf16>, vector<8x16x128xbf16> -> vector<8x16x384xbf16>
    %66 = vector.shape_cast %65 : vector<8x16x384xbf16> to vector<128x384xbf16>
    %c1_31 = arith.constant 1 : index
    %c0_32 = arith.constant 0 : index
    %c0_33 = arith.constant 0 : index
    %67 = vector.load %arg5[%c1_31, %c0_32, %c0_33] : memref<3x384x128xbf16, #tpu.memory_space<vmem>>, vector<1x384x128xbf16>
    %68 = vector.shape_cast %67 : vector<1x384x128xbf16> to vector<384x128xbf16>
    %cst_34 = arith.constant dense<0.000000e+00> : vector<128x128xf32>
    %69 = tpu.matmul %66, %68, %cst_34 {dimension_numbers = #tpu.dot_dimension_numbers<[1], [0], [0], [1], [0, 0, 1, 1], [], []>} : vector<128x384xbf16>, vector<384x128xbf16>, vector<128x128xf32> -> vector<128x128xf32>
    %70 = arith.addf %60, %69 : vector<128x128xf32>
    %71 = vector.extract_strided_slice %49 {offsets = [2, 0, 0], sizes = [8, 18, 128], strides = [1, 1, 1]} : vector<10x18x128xbf16> to vector<8x18x128xbf16>
    %72 = vector.extract_strided_slice %71 {offsets = [0, 0, 0], sizes = [8, 16, 128], strides = [1, 1, 1]} : vector<8x18x128xbf16> to vector<8x16x128xbf16>
    %73 = vector.extract_strided_slice %71 {offsets = [0, 1, 0], sizes = [8, 16, 128], strides = [1, 1, 1]} : vector<8x18x128xbf16> to vector<8x16x128xbf16>
    %74 = vector.extract_strided_slice %71 {offsets = [0, 2, 0], sizes = [8, 16, 128], strides = [1, 1, 1]} : vector<8x18x128xbf16> to vector<8x16x128xbf16>
    %75 = tpu.concatenate %72, %73, %74 in 2 : vector<8x16x128xbf16>, vector<8x16x128xbf16>, vector<8x16x128xbf16> -> vector<8x16x384xbf16>
    %76 = vector.shape_cast %75 : vector<8x16x384xbf16> to vector<128x384xbf16>
    %c2_35 = arith.constant 2 : index
    %c0_36 = arith.constant 0 : index
    %c0_37 = arith.constant 0 : index
    %77 = vector.load %arg5[%c2_35, %c0_36, %c0_37] : memref<3x384x128xbf16, #tpu.memory_space<vmem>>, vector<1x384x128xbf16>
    %78 = vector.shape_cast %77 : vector<1x384x128xbf16> to vector<384x128xbf16>
    %cst_38 = arith.constant dense<0.000000e+00> : vector<128x128xf32>
    %79 = tpu.matmul %76, %78, %cst_38 {dimension_numbers = #tpu.dot_dimension_numbers<[1], [0], [0], [1], [0, 0, 1, 1], [], []>} : vector<128x384xbf16>, vector<384x128xbf16>, vector<128x128xf32> -> vector<128x128xf32>
    %80 = arith.addf %70, %79 : vector<128x128xf32>
    %c0_39 = arith.constant 0 : index
    %c0_40 = arith.constant 0 : index
    %81 = vector.load %arg6[%c0_39, %c0_40] : memref<1x128xf32, #tpu.memory_space<vmem>>, vector<1x128xf32>
    %82 = vector.broadcast %81 : vector<1x128xf32> to vector<128x128xf32>
    %83 = arith.addf %80, %82 : vector<128x128xf32>
    %cst_41 = arith.constant 0.000000e+00 : f32
    %84 = vector.broadcast %cst_41 : f32 to vector<128x128xf32>
    %85 = arith.maximumf %83, %84 : vector<128x128xf32>
    %86 = vector.shape_cast %85 : vector<128x128xf32> to vector<8x16x128xf32>
    %87 = arith.truncf %86 : vector<8x16x128xf32> to vector<8x16x128xbf16>
    %c0_42 = arith.constant 0 : index
    %c0_43 = arith.constant 0 : index
    %c0_44 = arith.constant 0 : index
    %c0_45 = arith.constant 0 : index
    %88 = vector.load %arg7[%c0_42, %c0_43, %c0_44, %c0_45] : memref<1x8x16x128xbf16, #tpu.memory_space<vmem>>, vector<1x8x16x128xbf16>
    %89 = vector.shape_cast %88 : vector<1x8x16x128xbf16> to vector<8x16x128xbf16>
    %90 = vector.shape_cast %87 : vector<8x16x128xbf16> to vector<1x8x16x128xbf16>
    tpu.vector_store %arg7[%c0_42, %c0_43, %c0_44, %c0_45], %90 {strides = array<i32>} : memref<1x8x16x128xbf16, #tpu.memory_space<vmem>>, vector<1x8x16x128xbf16>,
    return
  }
  func.func @transform_0(%arg0: i32, %arg1: i32) -> (i32, i32, i32, i32, i32) {
    %c0_i32 = arith.constant 0 : i32
    %c0_i32_0 = arith.constant 0 : i32
    %c0_i32_1 = arith.constant 0 : i32
    %c0_i32_2 = arith.constant 0 : i32
    return %arg0, %arg1, %c0_i32, %c0_i32_0, %c0_i32_1 : i32, i32, i32, i32, i32
  }
  func.func @transform_1(%arg0: i32, %arg1: i32) -> (i32, i32, i32) {
    %c0_i32 = arith.constant 0 : i32
    %c0_i32_0 = arith.constant 0 : i32
    %c0_i32_1 = arith.constant 0 : i32
    %c0_i32_2 = arith.constant 0 : i32
    return %c0_i32, %c0_i32_0, %c0_i32_1 : i32, i32, i32
  }
  func.func @transform_2(%arg0: i32, %arg1: i32) -> (i32, i32) {
    %c0_i32 = arith.constant 0 : i32
    %c0_i32_0 = arith.constant 0 : i32
    %c0_i32_1 = arith.constant 0 : i32
    return %c0_i32, %c0_i32_0 : i32, i32
  }
  func.func @transform_3(%arg0: i32, %arg1: i32) -> (i32, i32, i32) {
    %c0_i32 = arith.constant 0 : i32
    %c0_i32_0 = arith.constant 0 : i32
    %c0_i32_1 = arith.constant 0 : i32
    %c0_i32_2 = arith.constant 0 : i32
    return %c0_i32, %c0_i32_0, %c0_i32_1 : i32, i32, i32
  }
  func.func @transform_4(%arg0: i32, %arg1: i32) -> (i32, i32) {
    %c0_i32 = arith.constant 0 : i32
    %c0_i32_0 = arith.constant 0 : i32
    %c0_i32_1 = arith.constant 0 : i32
    return %c0_i32, %c0_i32_0 : i32, i32
  }
  func.func @transform_5(%arg0: i32, %arg1: i32) -> (i32, i32, i32, i32) {
    %c0_i32 = arith.constant 0 : i32
    %c0_i32_0 = arith.constant 0 : i32
    %c0_i32_1 = arith.constant 0 : i32
    return %arg0, %arg1, %c0_i32, %c0_i32_0 : i32, i32, i32, i32
  }
}

</mosaic_0001>

<llo_original>
// kernel: tpu_custom_call.1
$region0: #{tpu_custom_call.1}
  #allocation0 [shape = 'u32[]', space=smem, size = 0x4, offset = 0x4, fixed_abs, tag = 'smem constant byte address 0x4 - core index']
  #allocation1 [shape = 'u32[72,128]{1,0:T(1,128)}', space=vmem, size = 0x9000, scoped, tag = 'internal scratch']
  #allocation2 [shape = 'bf16[10,18,128]{2,1,0:T(8,128)(2,1)}', space=vmem, size = 0xf000, scoped, tag = 'scratch operand']
  %s0 = inlined_call_operand.vmem [shape: bf16[2,2,12,18,128], index: 0, kind: input, shape index: {}]
  %s1 = inlined_call_operand.vmem [shape: bf16[3,384,128], index: 1, kind: input, shape index: {}]
  %s2 = inlined_call_operand.vmem [shape: f32[1,128], index: 2, kind: input, shape index: {}]
  %s3 = inlined_call_operand.hbm [shape: bf16[3,384,128], index: 3, kind: input, shape index: {}]
  %s4 = inlined_call_operand.vmem [shape: f32[1,128], index: 4, kind: input, shape index: {}]
  %s5 = inlined_call_operand.hbm [shape: bf16[2,16,16,128], index: 5, kind: output, shape index: {}]
  %s6 = sld [smem:[#allocation0]]
  $region65: #{tpu_custom_call.1} parent=0
    _
  %s8 = ssub.s32 1, %s6
  %s9 = scalar_select 0, %s8, %s6
  $region1: #{tpu_custom_call.1} parent=0
    #allocation3 [shape = 'u8[294912]{0}', space=vmem, size = 0x48000, scoped, tag = 'input window, operand 3, single buffered']
    #allocation4 [shape = 's32[2]{0}', space=sflag, size = 0x8, scoped, tag = 'scoped memory for tpu_custom_call.1']
    #allocation5 [shape = 's32[2]{0}', space=sflag, size = 0x8, scoped, tag = 'scoped memory for tpu_custom_call.1']
    #allocation6 [shape = 'u8[65536]{0}', space=vmem, size = 0x10000, scoped, tag = 'output window, operand 0']
    %10 = vsyncpa [#allocation4], 0
    %11 = vsyncpa [#allocation5], 0
    %s12 = scalar_lea.sflag [#allocation5], 1
    %13 = vsyncpa %s12, 0
    loop: start=0, step=1, limit=6
    $region2: #{tpu_custom_call.1} parent=1 // loop_pre_header
      _
    $region3: #{tpu_custom_call.1} parent=1 // loop_header
      %s15 = sphi 0, %s19
      %p16 = scmp.ge.s32.totalorder %s15, 6
      %s22 = sphi 0, %s34
      %s23 = sphi 0, %s30
      %s24 = sphi 0, %s22
      %s25 = sphi 0, %s23
      %s26 = sphi 0, %s24
      %s27 = sphi 0, %s25
      %s39 = sphi 0, %s41
      %s42 = sphi 0, %s39
      %s43 = sphi 0, %s42
      %s59 = sphi 0, %s43
      %s63 = sphi 0, %s63
      %s65 = sphi 0, %s63
      %s66 = sphi 0, %s65
      %s80 = sphi 0, %s66
      %s84 = sphi 0, %s84
      %s86 = sphi 0, %s84
      %s87 = sphi 0, %s86
      %s101 = sphi 0, %s87
      %s105 = sphi 0, %s105
      %s107 = sphi 0, %s105
      %s108 = sphi 0, %s107
      %s122 = sphi 0, %s108
      %s126 = sphi 0, %s126
      %s128 = sphi 0, %s126
      %s129 = sphi 0, %s128
      %s143 = sphi 0, %s129
      %s151 = sphi 0, %s153
      %s154 = sphi 0, %s151
      %s155 = sphi 0, %s154
      %s171 = sphi 0, %s155
    $region4: #{tpu_custom_call.1} parent=1 // loop_header_branch
      %18 = sbr.rel (%p16) target = $region8
    $region5: #{tpu_custom_call.1} parent=1 // loop_body
      %s20 = ssub.s32 %s15, 1
      %s21 = ssub.s32 %s15, 2
      %s28 = sadd.s32 1, %s23
      %p29 = scmp.ge.s32.totalorder %s28, 2
      %s30 = scalar_select %p29, 0, %s28
      %s31 = sadd.s32 1, %s22
      %s32 = scalar_select %p29, %s31, %s22
      %p33 = scmp.ge.s32.totalorder %s32, 2
      %s34 = scalar_select %p33, 0, %s32
      %s35 = ssub.s32 %s22, %s34
      %s36 = ssub.s32 %s23, %s30
      %s37 = sor.u32 %s35, %s36
      %p38 = scmp.eq.s32.totalorder %s37, 0
      %s40 = sadd.s32 %s39, 1
      %s41 = scalar_select %p38, %s39, %s40
      %p44 = pneg %p38
      %p45 = scmp.eq.s32.totalorder %s15, 3
      %p46 = por %p44, %p45
      %p47 = scmp.ne.s32.totalorder %s39, %s42
      %p48 = scmp.eq.s32.totalorder %s15, 0
      %p49 = por %p47, %p48
      %p50 = scmp.ne.s32.totalorder %s39, %s42
      %p51 = scmp.eq.s32.totalorder %s20, 3
      %p52 = por %p50, %p51
      %p53 = scmp.ne.s32.totalorder %s42, %s43
      %p54 = scmp.eq.s32.totalorder %s20, 0
      %p55 = por %p53, %p54
      %p56 = scmp.ne.s32.totalorder %s42, %s43
      %p57 = scmp.eq.s32.totalorder %s21, 3
      %p58 = por %p56, %p57
      %p60 = scmp.ne.s32.totalorder %s43, %s59
      %p61 = scmp.eq.s32.totalorder %s21, 0
      %p62 = por %p60, %p61
      %s64 = sadd.s32 %s63, 1
      %p67 = scmp.eq.s32.totalorder %s15, 3
      %p68 = scmp.ne.s32.totalorder %s63, %s65
      %p69 = scmp.eq.s32.totalorder %s15, 0
      %p70 = por %p68, %p69
      %p71 = scmp.ne.s32.totalorder %s63, %s65
      %p72 = scmp.eq.s32.totalorder %s20, 3
      %p73 = por %p71, %p72
      %p74 = scmp.ne.s32.totalorder %s65, %s66
      %p75 = scmp.eq.s32.totalorder %s20, 0
      %p76 = por %p74, %p75
      %p77 = scmp.ne.s32.totalorder %s65, %s66
      %p78 = scmp.eq.s32.totalorder %s21, 3
      %p79 = por %p77, %p78
      %p81 = scmp.ne.s32.totalorder %s66, %s80
      %p82 = scmp.eq.s32.totalorder %s21, 0
      %p83 = por %p81, %p82
      %s85 = sadd.s32 %s84, 1
      %p88 = scmp.eq.s32.totalorder %s15, 3
      %p89 = scmp.ne.s32.totalorder %s84, %s86
      %p90 = scmp.eq.s32.totalorder %s15, 0
      %p91 = por %p89, %p90
      %p92 = scmp.ne.s32.totalorder %s84, %s86
      %p93 = scmp.eq.s32.totalorder %s20, 3
      %p94 = por %p92, %p93
      %p95 = scmp.ne.s32.totalorder %s86, %s87
      %p96 = scmp.eq.s32.totalorder %s20, 0
      %p97 = por %p95, %p96
      %p98 = scmp.ne.s32.totalorder %s86, %s87
      %p99 = scmp.eq.s32.totalorder %s21, 3
      %p100 = por %p98, %p99
      %p102 = scmp.ne.s32.totalorder %s87, %s101
      %p103 = scmp.eq.s32.totalorder %s21, 0
      %p104 = por %p102, %p103
      %s106 = sadd.s32 %s105, 1
      %p109 = scmp.eq.s32.totalorder %s15, 3
      %p110 = scmp.ne.s32.totalorder %s105, %s107
      %p111 = scmp.eq.s32.totalorder %s15, 0
      %p112 = por %p110, %p111
      %p113 = scmp.ne.s32.totalorder %s105, %s107
      %p114 = scmp.eq.s32.totalorder %s20, 3
      %p115 = por %p113, %p114
      %p116 = scmp.ne.s32.totalorder %s107, %s108
      %p117 = scmp.eq.s32.totalorder %s20, 0
      %p118 = por %p116, %p117
      %p119 = scmp.ne.s32.totalorder %s107, %s108
      %p120 = scmp.eq.s32.totalorder %s21, 3
      %p121 = por %p119, %p120
      %p123 = scmp.ne.s32.totalorder %s108, %s122
      %p124 = scmp.eq.s32.totalorder %s21, 0
      %p125 = por %p123, %p124
      %s127 = sadd.s32 %s126, 1
      %p130 = scmp.eq.s32.totalorder %s15, 3
      %p131 = scmp.ne.s32.totalorder %s126, %s128
      %p132 = scmp.eq.s32.totalorder %s15, 0
      %p133 = por %p131, %p132
      %p134 = scmp.ne.s32.totalorder %s126, %s128
      %p135 = scmp.eq.s32.totalorder %s20, 3
      %p136 = por %p134, %p135
      %p137 = scmp.ne.s32.totalorder %s128, %s129
      %p138 = scmp.eq.s32.totalorder %s20, 0
      %p139 = por %p137, %p138
      %p140 = scmp.ne.s32.totalorder %s128, %s129
      %p141 = scmp.eq.s32.totalorder %s21, 3
      %p142 = por %p140, %p141
      %p144 = scmp.ne.s32.totalorder %s129, %s143
      %p145 = scmp.eq.s32.totalorder %s21, 0
      %p146 = por %p144, %p145
      %s147 = ssub.s32 %s22, %s34
      %s148 = ssub.s32 %s23, %s30
      %s149 = sor.u32 %s147, %s148
      %p150 = scmp.eq.s32.totalorder %s149, 0
      %s152 = sadd.s32 %s151, 1
      %s153 = scalar_select %p150, %s151, %s152
      %p156 = pneg %p150
      %p157 = scmp.eq.s32.totalorder %s15, 3
      %p158 = por %p156, %p157
      %p159 = scmp.ne.s32.totalorder %s151, %s154
      %p160 = scmp.eq.s32.totalorder %s15, 0
      %p161 = por %p159, %p160
      %p162 = scmp.ne.s32.totalorder %s151, %s154
      %p163 = scmp.eq.s32.totalorder %s20, 3
      %p164 = por %p162, %p163
      %p165 = scmp.ne.s32.totalorder %s154, %s155
      %p166 = scmp.eq.s32.totalorder %s20, 0
      %p167 = por %p165, %p166
      %p168 = scmp.ne.s32.totalorder %s154, %s155
      %p169 = scmp.eq.s32.totalorder %s21, 3
      %p170 = por %p168, %p169
      %p172 = scmp.ne.s32.totalorder %s155, %s171
      %p173 = scmp.eq.s32.totalorder %s21, 0
      %p174 = por %p172, %p173
      %p175 = scmp.le.s32.totalorder 1, %s15
      %p176 = scmp.lt.s32.totalorder %s15, 5
      %p177 = pnand %p175, %p176
      %p178 = pneg %p177
      // Predicated region
      $region9: #{tpu_custom_call.1} parent=5 // pred_check
        _
      $region10: #{tpu_custom_call.1} parent=5 // pred_check_branch
        %180 = sbr.rel (%p177) target = $region12
      $region11: #{tpu_custom_call.1} parent=5 // pred_region
        %s181 = ssub.s32 %s15, 1
        // Predicated region
        $region13: #{tpu_custom_call.1} parent=11 // pred_check
          %p182 = pneg %p76
        $region14: #{tpu_custom_call.1} parent=11 // pred_check_branch
          %184 = sbr.rel (%p182) target = $region16
        $region15: #{tpu_custom_call.1} parent=11 // pred_region
          _
        $region16: #{tpu_custom_call.1} parent=11 // pred_fallthru
          _
        // Predicated region
        $region17: #{tpu_custom_call.1} parent=11 // pred_check
          %p185 = pneg %p97
        $region18: #{tpu_custom_call.1} parent=11 // pred_check_branch
          %187 = sbr.rel (%p185) target = $region20
        $region19: #{tpu_custom_call.1} parent=11 // pred_region
          _
        $region20: #{tpu_custom_call.1} parent=11 // pred_fallthru
          _
        // Predicated region
        $region21: #{tpu_custom_call.1} parent=11 // pred_check
          %p188 = pneg %p118
        $region22: #{tpu_custom_call.1} parent=11 // pred_check_branch
          %190 = sbr.rel (%p188) target = $region24
        $region23: #{tpu_custom_call.1} parent=11 // pred_region
          %192 = vsyncadd [#allocation4], 0
          %s193 = sshll.u32 %s3, 4
          %s194 = int_to_ptr.hbm [resolvable:$true] %s193
          %s195 = sshll.u32 [#allocation3], 4
          %s196 = int_to_ptr.vmem [resolvable:$true] %s195
          %201 = dma.hbm_to_vmem [thread:$0]  %s194, 9216, %s196, [#allocation4], 64, 64, 4
        $region24: #{tpu_custom_call.1} parent=11 // pred_fallthru
          _
        // Predicated region
        $region25: #{tpu_custom_call.1} parent=11 // pred_check
          %p202 = pneg %p139
        $region26: #{tpu_custom_call.1} parent=11 // pred_check_branch
          %204 = sbr.rel (%p202) target = $region28
        $region27: #{tpu_custom_call.1} parent=11 // pred_region
          _
        $region28: #{tpu_custom_call.1} parent=11 // pred_fallthru
          _
      $region12: #{tpu_custom_call.1} parent=5 // pred_fallthru
        _
      %p205 = scmp.lt.s32.totalorder %s15, 4
      // Predicated region
      $region29: #{tpu_custom_call.1} parent=5 // pred_check
        %p206 = pneg %p205
      $region30: #{tpu_custom_call.1} parent=5 // pred_check_branch
        %208 = sbr.rel (%p206) target = $region32
      $region31: #{tpu_custom_call.1} parent=5 // pred_region
        // Predicated region
        $region33: #{tpu_custom_call.1} parent=31 // pred_check
          %p209 = pneg %p49
        $region34: #{tpu_custom_call.1} parent=31 // pred_check_branch
          %211 = sbr.rel (%p209) target = $region36
        $region35: #{tpu_custom_call.1} parent=31 // pred_region
          %p212 = scmp.lt.s32.totalorder %s22, 1
          %s213 = scalar_select %p212, %s22, 1
          %p214 = scmp.lt.s32.totalorder %s23, 1
          %s215 = scalar_select %p214, %s23, 1
          %s216 = smul.addr %s215, 36
          %s217 = smul.addr %s213, 72
          %s218 = sadd.s32 %s216, %s217
          %s219 = smul.addr %s218, 4
          %s220 = scalar_lea.vmem %s0, %s219
        $region36: #{tpu_custom_call.1} parent=31 // pred_fallthru
          _
      $region32: #{tpu_custom_call.1} parent=5 // pred_fallthru
        _
      %p221 = scmp.le.s32.totalorder 1, %s15
      %p222 = scmp.lt.s32.totalorder %s15, 5
      %p223 = pnand %p221, %p222
      %p224 = pneg %p223
      // Predicated region
      $region37: #{tpu_custom_call.1} parent=5 // pred_check
        _
      $region38: #{tpu_custom_call.1} parent=5 // pred_check_branch
        %226 = sbr.rel (%p223) target = $region40
      $region39: #{tpu_custom_call.1} parent=5 // pred_region
        %s227 = ssub.s32 %s15, 1
        // Predicated region
        $region41: #{tpu_custom_call.1} parent=39 // pred_check
          %p228 = pneg %p118
        $region42: #{tpu_custom_call.1} parent=39 // pred_check_branch
          %230 = sbr.rel (%p228) target = $region44
        $region43: #{tpu_custom_call.1} parent=39 // pred_region
          %232 = dma.done [#allocation4], 9216
        $region44: #{tpu_custom_call.1} parent=39 // pred_fallthru
          _
        %p233 = scmp.lt.s32.totalorder %s24, 1
        %s234 = scalar_select %p233, %s24, 1
        %p235 = scmp.lt.s32.totalorder %s25, 1
        %s236 = scalar_select %p235, %s25, 1
        %s237 = smul.addr %s236, 36
        %s238 = smul.addr %s234, 72
        %s239 = sadd.s32 %s237, %s238
        %s240 = smul.addr %s239, 4
        %s241 = scalar_lea.vmem %s0, %s240
        %p242 = pneg %p55
        %p243 = pneg %p52
        %p244 = pneg %p76
        %p245 = pneg %p73
        %p246 = pneg %p97
        %p247 = pneg %p94
        %p248 = pneg %p118
        %p249 = pneg %p115
        %p250 = pneg %p139
        %p251 = pneg %p136
        %p252 = pneg %p167
        %p253 = pneg %p164
        %s254 = sand.u32 %s154, 1
        %s255 = scalar_lea.sflag [#allocation5], %s254
        %s256 = sand.u32 %s154, 1
        %s257 = smul.addr %s256, 64
        %s258 = scalar_lea.vmem [#allocation6], %s257
        %p259 = scmp.lt.s32.totalorder %s24, 1
        %s260 = scalar_select %p259, %s24, 1
        %p261 = scmp.lt.s32.totalorder %s25, 1
        %s262 = scalar_select %p261, %s25, 1
        %s263 = smul.addr %s262, 36
        %s264 = smul.addr %s260, 72
        %s265 = sadd.s32 %s263, %s264
        %s266 = smul.addr %s265, 4
        %s267 = scalar_lea.vmem %s0, %s266
        %s268 = smul.u32 8, %s25
        %v270 = vld [vmem:[%s267] sm:$0xf]
        %v271 = vld [vmem:[%s267 + $0x4] sm:$0xf]
        %v272 = vld [vmem:[%s267 + $0x8] sm:$0x1]
        %v273 = vld [vmem:[%s267 + $0xc] sm:$0xf]
        %v274 = vld [vmem:[%s267 + $0x10] sm:$0xf]
        %v275 = vld [vmem:[%s267 + $0x14] sm:$0x1]
        %v276 = vld [vmem:[%s267 + $0x18] sm:$0xf]
        %v277 = vld [vmem:[%s267 + $0x1c] sm:$0xf]
        %v278 = vld [vmem:[%s267 + $0x20] sm:$0x1]
        %v279 = vld [vmem:[%s267 + $0x24] sm:$0xf]
        %v280 = vld [vmem:[%s267 + $0x28] sm:$0xf]
        %v281 = vld [vmem:[%s267 + $0x2c] sm:$0x1]
        %v282 = vld [vmem:[%s267 + $0x30] sm:$0xf]
        %v283 = vld [vmem:[%s267 + $0x34] sm:$0xf]
        %v284 = vld [vmem:[%s267 + $0x38] sm:$0x1]
        %v285 = vld [vmem:[%s267 + $0x3c] sm:$0xf]
        %v286 = vld [vmem:[%s267 + $0x40] sm:$0xf]
        %v287 = vld [vmem:[%s267 + $0x44] sm:$0x1]
        %v288 = vld [vmem:[%s267 + $0x48] sm:$0xf]
        %v289 = vld [vmem:[%s267 + $0x4c] sm:$0xf]
        %v290 = vld [vmem:[%s267 + $0x50] sm:$0x1]
        %v291 = vld [vmem:[%s267 + $0x54] sm:$0xf]
        %v292 = vld [vmem:[%s267 + $0x58] sm:$0xf]
        %v293 = vld [vmem:[%s267 + $0x5c] sm:$0x1]
        %v294 = vld [vmem:[%s267 + $0x60] sm:$0xf]
        %v295 = vld [vmem:[%s267 + $0x64] sm:$0xf]
        %v296 = vld [vmem:[%s267 + $0x68] sm:$0x1]
        %v297 = vld [vmem:[%s267 + $0x6c] sm:$0xf]
        %v298 = vld [vmem:[%s267 + $0x70] sm:$0xf]
        %v299 = vld [vmem:[%s267 + $0x74] sm:$0x1]
        %v300 = vld [vmem:[%s267 + $0x78] sm:$0xf]
        %v301 = vld [vmem:[%s267 + $0x7c] sm:$0xf]
        %v302 = vld [vmem:[%s267 + $0x80] sm:$0x1]
        %v303 = vld [vmem:[%s267 + $0x84] sm:$0xf]
        %v304 = vld [vmem:[%s267 + $0x88] sm:$0xf]
        %v305 = vld [vmem:[%s267 + $0x8c] sm:$0x1]
        %v326 = vunpack.c.l.b16 %v270
        %v327 = vunpack.c.l.b16 %v271
        %v328 = vunpack.c.l.b16 %v273
        %v329 = vunpack.c.l.b16 %v274
        %v330 = vunpack.c.l.b16 %v276
        %v331 = vunpack.c.l.b16 %v277
        %v332 = vunpack.c.l.b16 %v279
        %v333 = vunpack.c.l.b16 %v280
        %v334 = vunpack.c.l.b16 %v282
        %v335 = vunpack.c.l.b16 %v283
        %v336 = vunpack.c.l.b16 %v285
        %v337 = vunpack.c.l.b16 %v286
        %v338 = vunpack.c.l.b16 %v288
        %v339 = vunpack.c.l.b16 %v289
        %v340 = vunpack.c.l.b16 %v291
        %v341 = vunpack.c.l.b16 %v292
        %v342 = vunpack.c.l.b16 %v294
        %v343 = vunpack.c.l.b16 %v295
        %v344 = vunpack.c.l.b16 %v297
        %v345 = vunpack.c.l.b16 %v298
        %v346 = vpack.c.b16 %v327, %v326
        %v347 = vpack.c.b16 %v329, %v328
        %v348 = vpack.c.b16 %v331, %v330
        %v349 = vpack.c.b16 %v333, %v332
        %v350 = vpack.c.b16 %v335, %v334
        %v351 = vpack.c.b16 %v337, %v336
        %v352 = vpack.c.b16 %v339, %v338
        %v353 = vpack.c.b16 %v341, %v340
        %v354 = vpack.c.b16 %v343, %v342
        %v355 = vpack.c.b16 %v345, %v344
        %v376 = vunpack.c.l.b16 %v272
        %v377 = vunpack.c.l.b16 %v275
        %v378 = vunpack.c.l.b16 %v278
        %v379 = vunpack.c.l.b16 %v281
        %v380 = vunpack.c.l.b16 %v284
        %v381 = vunpack.c.l.b16 %v287
        %v382 = vunpack.c.l.b16 %v290
        %v383 = vunpack.c.l.b16 %v293
        %v384 = vunpack.c.l.b16 %v296
        %v385 = vunpack.c.l.b16 %v299
        %v386 = vpack.c.b16 %v376, %v376
        %v387 = vpack.c.b16 %v377, %v377
        %v388 = vpack.c.b16 %v378, %v378
        %v389 = vpack.c.b16 %v379, %v379
        %v390 = vpack.c.b16 %v380, %v380
        %v391 = vpack.c.b16 %v381, %v381
        %v392 = vpack.c.b16 %v382, %v382
        %v393 = vpack.c.b16 %v383, %v383
        %v394 = vpack.c.b16 %v384, %v384
        %v395 = vpack.c.b16 %v385, %v385
        %vm396 = vsmask.f32 7424
        %v398 = vshrl.u32 %v346, 16
        %v400 = vshll.u32 %v346, 16
        %v402 = vrot.slane %v400, 1
        %v403 = vor.u32 %v398, %v402
        %v405 = vshll.u32 %v386, 16
        %v407 = vrot.slane %v405, 1
        %v408 = vsel %vm396, %v403, %v407
        %v410 = vshrl.u32 %v347, 16
        %v412 = vshll.u32 %v347, 16
        %v414 = vrot.slane %v412, 1
        %v415 = vor.u32 %v410, %v414
        %v417 = vshll.u32 %v387, 16
        %v419 = vrot.slane %v417, 1
        %v420 = vsel %vm396, %v415, %v419
        %v422 = vshrl.u32 %v348, 16
        %v424 = vshll.u32 %v348, 16
        %v426 = vrot.slane %v424, 1
        %v427 = vor.u32 %v422, %v426
        %v429 = vshll.u32 %v388, 16
        %v431 = vrot.slane %v429, 1
        %v432 = vsel %vm396, %v427, %v431
        %v434 = vshrl.u32 %v349, 16
        %v436 = vshll.u32 %v349, 16
        %v438 = vrot.slane %v436, 1
        %v439 = vor.u32 %v434, %v438
        %v441 = vshll.u32 %v389, 16
        %v443 = vrot.slane %v441, 1
        %v444 = vsel %vm396, %v439, %v443
        %v446 = vshrl.u32 %v350, 16
        %v448 = vshll.u32 %v350, 16
        %v450 = vrot.slane %v448, 1
        %v451 = vor.u32 %v446, %v450
        %v453 = vshll.u32 %v390, 16
        %v455 = vrot.slane %v453, 1
        %v456 = vsel %vm396, %v451, %v455
        %v458 = vshrl.u32 %v351, 16
        %v460 = vshll.u32 %v351, 16
        %v462 = vrot.slane %v460, 1
        %v463 = vor.u32 %v458, %v462
        %v465 = vshll.u32 %v391, 16
        %v467 = vrot.slane %v465, 1
        %v468 = vsel %vm396, %v463, %v467
        %v470 = vshrl.u32 %v352, 16
        %v472 = vshll.u32 %v352, 16
        %v474 = vrot.slane %v472, 1
        %v475 = vor.u32 %v470, %v474
        %v477 = vshll.u32 %v392, 16
        %v479 = vrot.slane %v477, 1
        %v480 = vsel %vm396, %v475, %v479
        %v482 = vshrl.u32 %v353, 16
        %v484 = vshll.u32 %v353, 16
        %v486 = vrot.slane %v484, 1
        %v487 = vor.u32 %v482, %v486
        %v489 = vshll.u32 %v393, 16
        %v491 = vrot.slane %v489, 1
        %v492 = vsel %vm396, %v487, %v491
        %v494 = vshrl.u32 %v354, 16
        %v496 = vshll.u32 %v354, 16
        %v498 = vrot.slane %v496, 1
        %v499 = vor.u32 %v494, %v498
        %v501 = vshll.u32 %v394, 16
        %v503 = vrot.slane %v501, 1
        %v504 = vsel %vm396, %v499, %v503
        %v506 = vshrl.u32 %v355, 16
        %v508 = vshll.u32 %v355, 16
        %v510 = vrot.slane %v508, 1
        %v511 = vor.u32 %v506, %v510
        %v513 = vshll.u32 %v395, 16
        %v515 = vrot.slane %v513, 1
        %v516 = vsel %vm396, %v511, %v515
        %vm527 = vcmask 1046528
        %v528 = vrot.slane %v346, 1
        %v529 = vrot.slane %v386, 1
        %v530 = vsel %vm527, %v528, %v529
        %v531 = vrot.slane %v347, 1
        %v532 = vrot.slane %v387, 1
        %v533 = vsel %vm527, %v531, %v532
        %v534 = vrot.slane %v348, 1
        %v535 = vrot.slane %v388, 1
        %v536 = vsel %vm527, %v534, %v535
        %v537 = vrot.slane %v349, 1
        %v538 = vrot.slane %v389, 1
        %v539 = vsel %vm527, %v537, %v538
        %v540 = vrot.slane %v350, 1
        %v541 = vrot.slane %v390, 1
        %v542 = vsel %vm527, %v540, %v541
        %v543 = vrot.slane %v351, 1
        %v544 = vrot.slane %v391, 1
        %v545 = vsel %vm527, %v543, %v544
        %v546 = vrot.slane %v352, 1
        %v547 = vrot.slane %v392, 1
        %v548 = vsel %vm527, %v546, %v547
        %v549 = vrot.slane %v353, 1
        %v550 = vrot.slane %v393, 1
        %v551 = vsel %vm527, %v549, %v550
        %v552 = vrot.slane %v354, 1
        %v553 = vrot.slane %v394, 1
        %v554 = vsel %vm527, %v552, %v553
        %v555 = vrot.slane %v355, 1
        %v556 = vrot.slane %v395, 1
        %v557 = vsel %vm527, %v555, %v556
        %v568 = vld [vmem:[%s1] sm:$0xf]
        %v569 = vld [vmem:[%s1 + $0x4] sm:$0xf]
        %v570 = vld [vmem:[%s1 + $0x8] sm:$0xf]
        %v571 = vld [vmem:[%s1 + $0xc] sm:$0xf]
        %v572 = vld [vmem:[%s1 + $0x10] sm:$0xf]
        %v573 = vld [vmem:[%s1 + $0x14] sm:$0xf]
        %v574 = vld [vmem:[%s1 + $0x18] sm:$0xf]
        %v575 = vld [vmem:[%s1 + $0x1c] sm:$0xf]
        %v576 = vld [vmem:[%s1 + $0x20] sm:$0xf]
        %v577 = vld [vmem:[%s1 + $0x24] sm:$0xf]
        %v578 = vld [vmem:[%s1 + $0x28] sm:$0xf]
        %v579 = vld [vmem:[%s1 + $0x2c] sm:$0xf]
        %v580 = vld [vmem:[%s1 + $0x30] sm:$0xf]
        %v581 = vld [vmem:[%s1 + $0x34] sm:$0xf]
        %v582 = vld [vmem:[%s1 + $0x38] sm:$0xf]
        %v583 = vld [vmem:[%s1 + $0x3c] sm:$0xf]
        %v584 = vld [vmem:[%s1 + $0x40] sm:$0xf]
        %v585 = vld [vmem:[%s1 + $0x44] sm:$0xf]
        %v586 = vld [vmem:[%s1 + $0x48] sm:$0xf]
        %v587 = vld [vmem:[%s1 + $0x4c] sm:$0xf]
        %v588 = vld [vmem:[%s1 + $0x50] sm:$0xf]
        %v589 = vld [vmem:[%s1 + $0x54] sm:$0xf]
        %v590 = vld [vmem:[%s1 + $0x58] sm:$0xf]
        %v591 = vld [vmem:[%s1 + $0x5c] sm:$0xf]
        %v592 = vld [vmem:[%s1 + $0x60] sm:$0xf]
        %v593 = vld [vmem:[%s1 + $0x64] sm:$0xf]
        %v594 = vld [vmem:[%s1 + $0x68] sm:$0xf]
        %v595 = vld [vmem:[%s1 + $0x6c] sm:$0xf]
        %v596 = vld [vmem:[%s1 + $0x70] sm:$0xf]
        %v597 = vld [vmem:[%s1 + $0x74] sm:$0xf]
        %v598 = vld [vmem:[%s1 + $0x78] sm:$0xf]
        %v599 = vld [vmem:[%s1 + $0x7c] sm:$0xf]
        %v600 = vld [vmem:[%s1 + $0x80] sm:$0xf]
        %v601 = vld [vmem:[%s1 + $0x84] sm:$0xf]
        %v602 = vld [vmem:[%s1 + $0x88] sm:$0xf]
        %v603 = vld [vmem:[%s1 + $0x8c] sm:$0xf]
        %v604 = vld [vmem:[%s1 + $0x90] sm:$0xf]
        %v605 = vld [vmem:[%s1 + $0x94] sm:$0xf]
        %v606 = vld [vmem:[%s1 + $0x98] sm:$0xf]
        %v607 = vld [vmem:[%s1 + $0x9c] sm:$0xf]
        %v608 = vld [vmem:[%s1 + $0xa0] sm:$0xf]
        %v609 = vld [vmem:[%s1 + $0xa4] sm:$0xf]
        %v610 = vld [vmem:[%s1 + $0xa8] sm:$0xf]
        %v611 = vld [vmem:[%s1 + $0xac] sm:$0xf]
        %v612 = vld [vmem:[%s1 + $0xb0] sm:$0xf]
        %v613 = vld [vmem:[%s1 + $0xb4] sm:$0xf]
        %v614 = vld [vmem:[%s1 + $0xb8] sm:$0xf]
        %v615 = vld [vmem:[%s1 + $0xbc] sm:$0xf]
        %v618 = vunpack.c.l.b16 %v300
        %v619 = vunpack.c.l.b16 %v301
        %v620 = vpack.c.b16 %v619, %v618
        %v623 = vunpack.c.l.b16 %v302
        %v624 = vpack.c.b16 %v623, %v623
        %v626 = vshrl.u32 %v620, 16
        %v628 = vshll.u32 %v620, 16
        %v630 = vrot.slane %v628, 1
        %v631 = vor.u32 %v626, %v630
        %v633 = vshll.u32 %v624, 16
        %v635 = vrot.slane %v633, 1
        %v636 = vsel %vm396, %v631, %v635
        %v638 = vrot.slane %v620, 1
        %v639 = vrot.slane %v624, 1
        %v640 = vsel %vm527, %v638, %v639
        %s642 = scalar_lea.vmem %s1, 192
        %v643 = vld [vmem:[%s642] sm:$0xf]
        %v644 = vld [vmem:[%s642 + $0x4] sm:$0xf]
        %v645 = vld [vmem:[%s642 + $0x8] sm:$0xf]
        %v646 = vld [vmem:[%s642 + $0xc] sm:$0xf]
        %v647 = vld [vmem:[%s642 + $0x10] sm:$0xf]
        %v648 = vld [vmem:[%s642 + $0x14] sm:$0xf]
        %v649 = vld [vmem:[%s642 + $0x18] sm:$0xf]
        %v650 = vld [vmem:[%s642 + $0x1c] sm:$0xf]
        %v651 = vld [vmem:[%s642 + $0x20] sm:$0xf]
        %v652 = vld [vmem:[%s642 + $0x24] sm:$0xf]
        %v653 = vld [vmem:[%s642 + $0x28] sm:$0xf]
        %v654 = vld [vmem:[%s642 + $0x2c] sm:$0xf]
        %v655 = vld [vmem:[%s642 + $0x30] sm:$0xf]
        %v656 = vld [vmem:[%s642 + $0x34] sm:$0xf]
        %v657 = vld [vmem:[%s642 + $0x38] sm:$0xf]
        %v658 = vld [vmem:[%s642 + $0x3c] sm:$0xf]
        %v659 = vld [vmem:[%s642 + $0x40] sm:$0xf]
        %v660 = vld [vmem:[%s642 + $0x44] sm:$0xf]
        %v661 = vld [vmem:[%s642 + $0x48] sm:$0xf]
        %v662 = vld [vmem:[%s642 + $0x4c] sm:$0xf]
        %v663 = vld [vmem:[%s642 + $0x50] sm:$0xf]
        %v664 = vld [vmem:[%s642 + $0x54] sm:$0xf]
        %v665 = vld [vmem:[%s642 + $0x58] sm:$0xf]
        %v666 = vld [vmem:[%s642 + $0x5c] sm:$0xf]
        %v667 = vld [vmem:[%s642 + $0x60] sm:$0xf]
        %v668 = vld [vmem:[%s642 + $0x64] sm:$0xf]
        %v669 = vld [vmem:[%s642 + $0x68] sm:$0xf]
        %v670 = vld [vmem:[%s642 + $0x6c] sm:$0xf]
        %v671 = vld [vmem:[%s642 + $0x70] sm:$0xf]
        %v672 = vld [vmem:[%s642 + $0x74] sm:$0xf]
        %v673 = vld [vmem:[%s642 + $0x78] sm:$0xf]
        %v674 = vld [vmem:[%s642 + $0x7c] sm:$0xf]
        %v675 = vld [vmem:[%s642 + $0x80] sm:$0xf]
        %v676 = vld [vmem:[%s642 + $0x84] sm:$0xf]
        %v677 = vld [vmem:[%s642 + $0x88] sm:$0xf]
        %v678 = vld [vmem:[%s642 + $0x8c] sm:$0xf]
        %v679 = vld [vmem:[%s642 + $0x90] sm:$0xf]
        %v680 = vld [vmem:[%s642 + $0x94] sm:$0xf]
        %v681 = vld [vmem:[%s642 + $0x98] sm:$0xf]
        %v682 = vld [vmem:[%s642 + $0x9c] sm:$0xf]
        %v683 = vld [vmem:[%s642 + $0xa0] sm:$0xf]
        %v684 = vld [vmem:[%s642 + $0xa4] sm:$0xf]
        %v685 = vld [vmem:[%s642 + $0xa8] sm:$0xf]
        %v686 = vld [vmem:[%s642 + $0xac] sm:$0xf]
        %v687 = vld [vmem:[%s642 + $0xb0] sm:$0xf]
        %v688 = vld [vmem:[%s642 + $0xb4] sm:$0xf]
        %v689 = vld [vmem:[%s642 + $0xb8] sm:$0xf]
        %v690 = vld [vmem:[%s642 + $0xbc] sm:$0xf]
        %v739 = vunpack.c.l.b16 %v643
        %v740 = vunpack.c.l.b16 %v644
        %v741 = vunpack.c.l.b16 %v645
        %v742 = vunpack.c.l.b16 %v646
        %v743 = vunpack.c.l.b16 %v647
        %v744 = vunpack.c.l.b16 %v648
        %v745 = vunpack.c.l.b16 %v649
        %v746 = vunpack.c.l.b16 %v650
        %v747 = vunpack.c.l.b16 %v651
        %v748 = vunpack.c.l.b16 %v652
        %v749 = vunpack.c.l.b16 %v653
        %v750 = vunpack.c.l.b16 %v654
        %v751 = vunpack.c.l.b16 %v655
        %v752 = vunpack.c.l.b16 %v656
        %v753 = vunpack.c.l.b16 %v657
        %v754 = vunpack.c.l.b16 %v658
        %v755 = vunpack.c.l.b16 %v659
        %v756 = vunpack.c.l.b16 %v660
        %v757 = vunpack.c.l.b16 %v661
        %v758 = vunpack.c.l.b16 %v662
        %v759 = vunpack.c.l.b16 %v663
        %v760 = vunpack.c.l.b16 %v664
        %v761 = vunpack.c.l.b16 %v665
        %v762 = vunpack.c.l.b16 %v666
        %v763 = vunpack.c.l.b16 %v667
        %v764 = vunpack.c.l.b16 %v668
        %v765 = vunpack.c.l.b16 %v669
        %v766 = vunpack.c.l.b16 %v670
        %v767 = vunpack.c.l.b16 %v671
        %v768 = vunpack.c.l.b16 %v672
        %v769 = vunpack.c.l.b16 %v673
        %v770 = vunpack.c.l.b16 %v674
        %v771 = vunpack.c.l.b16 %v675
        %v772 = vunpack.c.l.b16 %v676
        %v773 = vunpack.c.l.b16 %v677
        %v774 = vunpack.c.l.b16 %v678
        %v775 = vunpack.c.l.b16 %v679
        %v776 = vunpack.c.l.b16 %v680
        %v777 = vunpack.c.l.b16 %v681
        %v778 = vunpack.c.l.b16 %v682
        %v779 = vunpack.c.l.b16 %v683
        %v780 = vunpack.c.l.b16 %v684
        %v781 = vunpack.c.l.b16 %v685
        %v782 = vunpack.c.l.b16 %v686
        %v783 = vunpack.c.l.b16 %v687
        %v784 = vunpack.c.l.b16 %v688
        %v785 = vunpack.c.l.b16 %v689
        %v786 = vunpack.c.l.b16 %v690
        %v787 = vpack.c.b16 %v740, %v739
        %v788 = vpack.c.b16 %v742, %v741
        %v789 = vpack.c.b16 %v744, %v743
        %v790 = vpack.c.b16 %v746, %v745
        %v791 = vpack.c.b16 %v748, %v747
        %v792 = vpack.c.b16 %v750, %v749
        %v793 = vpack.c.b16 %v752, %v751
        %v794 = vpack.c.b16 %v754, %v753
        %v795 = vpack.c.b16 %v756, %v755
        %v796 = vpack.c.b16 %v758, %v757
        %v797 = vpack.c.b16 %v760, %v759
        %v798 = vpack.c.b16 %v762, %v761
        %v799 = vpack.c.b16 %v764, %v763
        %v800 = vpack.c.b16 %v766, %v765
        %v801 = vpack.c.b16 %v768, %v767
        %v802 = vpack.c.b16 %v770, %v769
        %v803 = vpack.c.b16 %v772, %v771
        %v804 = vpack.c.b16 %v774, %v773
        %v805 = vpack.c.b16 %v776, %v775
        %v806 = vpack.c.b16 %v778, %v777
        %v807 = vpack.c.b16 %v780, %v779
        %v808 = vpack.c.b16 %v782, %v781
        %v809 = vpack.c.b16 %v784, %v783
        %v810 = vpack.c.b16 %v786, %v785
        %835 = vmatpush.bf16.msra.mxu0 %v794
        %836 = vmatpush.bf16.msra.mxu0 %v793
        %837 = vmatpush.bf16.msra.mxu0 %v792
        %838 = vmatpush.bf16.msra.mxu0 %v791
        %839 = vmatpush.bf16.msra.mxu0 %v790
        %840 = vmatpush.bf16.msra.mxu0 %v789
        %841 = vmatpush.bf16.msra.mxu0 %v788
        %842 = vmatpush.bf16.msra.mxu0 %v787
        %843 = vmatmul.bf16.gmra.mxu0 %v347
        %v844 = vpop.f32.mrf.mxu0
        %v845 = vadd.f32 0.0, %v844
        %v846 = vpop.f32.mrf.mxu0
        %v847 = vadd.f32 0.0, %v846
        %848 = vmatmul.bf16.gmra.mxu0 %v348
        %v849 = vpop.f32.mrf.mxu0
        %v850 = vadd.f32 0.0, %v849
        %v851 = vpop.f32.mrf.mxu0
        %v852 = vadd.f32 0.0, %v851
        %853 = vmatmul.bf16.gmra.mxu0 %v349
        %v854 = vpop.f32.mrf.mxu0
        %v855 = vadd.f32 0.0, %v854
        %v856 = vpop.f32.mrf.mxu0
        %v857 = vadd.f32 0.0, %v856
        %858 = vmatmul.bf16.gmra.mxu0 %v350
        %v859 = vpop.f32.mrf.mxu0
        %v860 = vadd.f32 0.0, %v859
        %v861 = vpop.f32.mrf.mxu0
        %v862 = vadd.f32 0.0, %v861
        %863 = vmatmul.bf16.gmra.mxu0 %v351
        %v864 = vpop.f32.mrf.mxu0
        %v865 = vadd.f32 0.0, %v864
        %v866 = vpop.f32.mrf.mxu0
        %v867 = vadd.f32 0.0, %v866
        %868 = vmatmul.bf16.gmra.mxu0 %v352
        %v869 = vpop.f32.mrf.mxu0
        %v870 = vadd.f32 0.0, %v869
        %v871 = vpop.f32.mrf.mxu0
        %v872 = vadd.f32 0.0, %v871
        %873 = vmatmul.bf16.gmra.mxu0 %v353
        %v874 = vpop.f32.mrf.mxu0
        %v875 = vadd.f32 0.0, %v874
        %v876 = vpop.f32.mrf.mxu0
        %v877 = vadd.f32 0.0, %v876
        %878 = vmatmul.bf16.gmra.mxu0 %v354
        %v879 = vpop.f32.mrf.mxu0
        %v880 = vadd.f32 0.0, %v879
        %v881 = vpop.f32.mrf.mxu0
        %v882 = vadd.f32 0.0, %v881
        %883 = vmatmul.bf16.gmra.mxu0 %v355
        %v884 = vpop.f32.mrf.mxu0
        %v885 = vadd.f32 0.0, %v884
        %v886 = vpop.f32.mrf.mxu0
        %v887 = vadd.f32 0.0, %v886
        %888 = vmatmul.bf16.gmra.mxu0 %v620
        %v889 = vpop.f32.mrf.mxu0
        %v890 = vadd.f32 0.0, %v889
        %v891 = vpop.f32.mrf.mxu0
        %v892 = vadd.f32 0.0, %v891
        %893 = vdwg.mxu0
        %894 = vmatpush.bf16.msra.mxu0 %v802
        %895 = vmatpush.bf16.msra.mxu0 %v801
        %896 = vmatpush.bf16.msra.mxu0 %v800
        %897 = vmatpush.bf16.msra.mxu0 %v799
        %898 = vmatpush.bf16.msra.mxu0 %v798
        %899 = vmatpush.bf16.msra.mxu0 %v797
        %900 = vmatpush.bf16.msra.mxu0 %v796
        %901 = vmatpush.bf16.msra.mxu0 %v795
        %902 = vmatmul.bf16.gmra.mxu0 %v420
        %v903 = vpop.f32.mrf.mxu0
        %v904 = vadd.f32 %v845, %v903
        %v905 = vpop.f32.mrf.mxu0
        %v906 = vadd.f32 %v847, %v905
        %907 = vmatmul.bf16.gmra.mxu0 %v432
        %v908 = vpop.f32.mrf.mxu0
        %v909 = vadd.f32 %v850, %v908
        %v910 = vpop.f32.mrf.mxu0
        %v911 = vadd.f32 %v852, %v910
        %912 = vmatmul.bf16.gmra.mxu0 %v444
        %v913 = vpop.f32.mrf.mxu0
        %v914 = vadd.f32 %v855, %v913
        %v915 = vpop.f32.mrf.mxu0
        %v916 = vadd.f32 %v857, %v915
        %917 = vmatmul.bf16.gmra.mxu0 %v456
        %v918 = vpop.f32.mrf.mxu0
        %v919 = vadd.f32 %v860, %v918
        %v920 = vpop.f32.mrf.mxu0
        %v921 = vadd.f32 %v862, %v920
        %922 = vmatmul.bf16.gmra.mxu0 %v468
        %v923 = vpop.f32.mrf.mxu0
        %v924 = vadd.f32 %v865, %v923
        %v925 = vpop.f32.mrf.mxu0
        %v926 = vadd.f32 %v867, %v925
        %927 = vmatmul.bf16.gmra.mxu0 %v480
        %v928 = vpop.f32.mrf.mxu0
        %v929 = vadd.f32 %v870, %v928
        %v930 = vpop.f32.mrf.mxu0
        %v931 = vadd.f32 %v872, %v930
        %932 = vmatmul.bf16.gmra.mxu0 %v492
        %v933 = vpop.f32.mrf.mxu0
        %v934 = vadd.f32 %v875, %v933
        %v935 = vpop.f32.mrf.mxu0
        %v936 = vadd.f32 %v877, %v935
        %937 = vmatmul.bf16.gmra.mxu0 %v504
        %v938 = vpop.f32.mrf.mxu0
        %v939 = vadd.f32 %v880, %v938
        %v940 = vpop.f32.mrf.mxu0
        %v941 = vadd.f32 %v882, %v940
        %942 = vmatmul.bf16.gmra.mxu0 %v516
        %v943 = vpop.f32.mrf.mxu0
        %v944 = vadd.f32 %v885, %v943
        %v945 = vpop.f32.mrf.mxu0
        %v946 = vadd.f32 %v887, %v945
        %947 = vmatmul.bf16.gmra.mxu0 %v636
        %v948 = vpop.f32.mrf.mxu0
        %v949 = vadd.f32 %v890, %v948
        %v950 = vpop.f32.mrf.mxu0
        %v951 = vadd.f32 %v892, %v950
        %952 = vdwg.mxu0
        %953 = vmatpush.bf16.msra.mxu0 %v810
        %954 = vmatpush.bf16.msra.mxu0 %v809
        %955 = vmatpush.bf16.msra.mxu0 %v808
        %956 = vmatpush.bf16.msra.mxu0 %v807
        %957 = vmatpush.bf16.msra.mxu0 %v806
        %958 = vmatpush.bf16.msra.mxu0 %v805
        %959 = vmatpush.bf16.msra.mxu0 %v804
        %960 = vmatpush.bf16.msra.mxu0 %v803
        %961 = vmatmul.bf16.gmra.mxu0 %v533
        %v962 = vpop.f32.mrf.mxu0
        %v963 = vadd.f32 %v904, %v962
        %v964 = vpop.f32.mrf.mxu0
        %v965 = vadd.f32 %v906, %v964
        %966 = vmatmul.bf16.gmra.mxu0 %v536
        %v967 = vpop.f32.mrf.mxu0
        %v968 = vadd.f32 %v909, %v967
        %v969 = vpop.f32.mrf.mxu0
        %v970 = vadd.f32 %v911, %v969
        %971 = vmatmul.bf16.gmra.mxu0 %v539
        %v972 = vpop.f32.mrf.mxu0
        %v973 = vadd.f32 %v914, %v972
        %v974 = vpop.f32.mrf.mxu0
        %v975 = vadd.f32 %v916, %v974
        %976 = vmatmul.bf16.gmra.mxu0 %v542
        %v977 = vpop.f32.mrf.mxu0
        %v978 = vadd.f32 %v919, %v977
        %v979 = vpop.f32.mrf.mxu0
        %v980 = vadd.f32 %v921, %v979
        %981 = vmatmul.bf16.gmra.mxu0 %v545
        %v982 = vpop.f32.mrf.mxu0
        %v983 = vadd.f32 %v924, %v982
        %v984 = vpop.f32.mrf.mxu0
        %v985 = vadd.f32 %v926, %v984
        %986 = vmatmul.bf16.gmra.mxu0 %v548
        %v987 = vpop.f32.mrf.mxu0
        %v988 = vadd.f32 %v929, %v987
        %v989 = vpop.f32.mrf.mxu0
        %v990 = vadd.f32 %v931, %v989
        %991 = vmatmul.bf16.gmra.mxu0 %v551
        %v992 = vpop.f32.mrf.mxu0
        %v993 = vadd.f32 %v934, %v992
        %v994 = vpop.f32.mrf.mxu0
        %v995 = vadd.f32 %v936, %v994
        %996 = vmatmul.bf16.gmra.mxu0 %v554
        %v997 = vpop.f32.mrf.mxu0
        %v998 = vadd.f32 %v939, %v997
        %v999 = vpop.f32.mrf.mxu0
        %v1000 = vadd.f32 %v941, %v999
        %1001 = vmatmul.bf16.gmra.mxu0 %v557
        %v1002 = vpop.f32.mrf.mxu0
        %v1003 = vadd.f32 %v944, %v1002
        %v1004 = vpop.f32.mrf.mxu0
        %v1005 = vadd.f32 %v946, %v1004
        %1006 = vmatmul.bf16.gmra.mxu0 %v640
        %v1007 = vpop.f32.mrf.mxu0
        %v1008 = vadd.f32 %v949, %v1007
        %v1009 = vpop.f32.mrf.mxu0
        %v1010 = vadd.f32 %v951, %v1009
        %1011 = vdwg.mxu0
        %v1060 = vunpack.c.l.b16 %v568
        %v1061 = vunpack.c.l.b16 %v569
        %v1062 = vunpack.c.l.b16 %v570
        %v1063 = vunpack.c.l.b16 %v571
        %v1064 = vunpack.c.l.b16 %v572
        %v1065 = vunpack.c.l.b16 %v573
        %v1066 = vunpack.c.l.b16 %v574
        %v1067 = vunpack.c.l.b16 %v575
        %v1068 = vunpack.c.l.b16 %v576
        %v1069 = vunpack.c.l.b16 %v577
        %v1070 = vunpack.c.l.b16 %v578
        %v1071 = vunpack.c.l.b16 %v579
        %v1072 = vunpack.c.l.b16 %v580
        %v1073 = vunpack.c.l.b16 %v581
        %v1074 = vunpack.c.l.b16 %v582
        %v1075 = vunpack.c.l.b16 %v583
        %v1076 = vunpack.c.l.b16 %v584
        %v1077 = vunpack.c.l.b16 %v585
        %v1078 = vunpack.c.l.b16 %v586
        %v1079 = vunpack.c.l.b16 %v587
        %v1080 = vunpack.c.l.b16 %v588
        %v1081 = vunpack.c.l.b16 %v589
        %v1082 = vunpack.c.l.b16 %v590
        %v1083 = vunpack.c.l.b16 %v591
        %v1084 = vunpack.c.l.b16 %v592
        %v1085 = vunpack.c.l.b16 %v593
        %v1086 = vunpack.c.l.b16 %v594
        %v1087 = vunpack.c.l.b16 %v595
        %v1088 = vunpack.c.l.b16 %v596
        %v1089 = vunpack.c.l.b16 %v597
        %v1090 = vunpack.c.l.b16 %v598
        %v1091 = vunpack.c.l.b16 %v599
        %v1092 = vunpack.c.l.b16 %v600
        %v1093 = vunpack.c.l.b16 %v601
        %v1094 = vunpack.c.l.b16 %v602
        %v1095 = vunpack.c.l.b16 %v603
        %v1096 = vunpack.c.l.b16 %v604
        %v1097 = vunpack.c.l.b16 %v605
        %v1098 = vunpack.c.l.b16 %v606
        %v1099 = vunpack.c.l.b16 %v607
        %v1100 = vunpack.c.l.b16 %v608
        %v1101 = vunpack.c.l.b16 %v609
        %v1102 = vunpack.c.l.b16 %v610
        %v1103 = vunpack.c.l.b16 %v611
        %v1104 = vunpack.c.l.b16 %v612
        %v1105 = vunpack.c.l.b16 %v613
        %v1106 = vunpack.c.l.b16 %v614
        %v1107 = vunpack.c.l.b16 %v615
        %v1108 = vpack.c.b16 %v1061, %v1060
        %v1109 = vpack.c.b16 %v1063, %v1062
        %v1110 = vpack.c.b16 %v1065, %v1064
        %v1111 = vpack.c.b16 %v1067, %v1066
        %v1112 = vpack.c.b16 %v1069, %v1068
        %v1113 = vpack.c.b16 %v1071, %v1070
        %v1114 = vpack.c.b16 %v1073, %v1072
        %v1115 = vpack.c.b16 %v1075, %v1074
        %v1116 = vpack.c.b16 %v1077, %v1076
        %v1117 = vpack.c.b16 %v1079, %v1078
        %v1118 = vpack.c.b16 %v1081, %v1080
        %v1119 = vpack.c.b16 %v1083, %v1082
        %v1120 = vpack.c.b16 %v1085, %v1084
        %v1121 = vpack.c.b16 %v1087, %v1086
        %v1122 = vpack.c.b16 %v1089, %v1088
        %v1123 = vpack.c.b16 %v1091, %v1090
        %v1124 = vpack.c.b16 %v1093, %v1092
        %v1125 = vpack.c.b16 %v1095, %v1094
        %v1126 = vpack.c.b16 %v1097, %v1096
        %v1127 = vpack.c.b16 %v1099, %v1098
        %v1128 = vpack.c.b16 %v1101, %v1100
        %v1129 = vpack.c.b16 %v1103, %v1102
        %v1130 = vpack.c.b16 %v1105, %v1104
        %v1131 = vpack.c.b16 %v1107, %v1106
        %1156 = vmatpush.bf16.msra.mxu0 %v1115
        %1157 = vmatpush.bf16.msra.mxu0 %v1114
        %1158 = vmatpush.bf16.msra.mxu0 %v1113
        %1159 = vmatpush.bf16.msra.mxu0 %v1112
        %1160 = vmatpush.bf16.msra.mxu0 %v1111
        %1161 = vmatpush.bf16.msra.mxu0 %v1110
        %1162 = vmatpush.bf16.msra.mxu0 %v1109
        %1163 = vmatpush.bf16.msra.mxu0 %v1108
        %1164 = vmatmul.bf16.gmra.mxu0 %v346
        %v1165 = vpop.f32.mrf.mxu0
        %v1166 = vadd.f32 %v963, %v1165
        %v1167 = vpop.f32.mrf.mxu0
        %v1168 = vadd.f32 %v965, %v1167
        %1169 = vmatmul.bf16.gmra.mxu0 %v347
        %v1170 = vpop.f32.mrf.mxu0
        %v1171 = vadd.f32 %v968, %v1170
        %v1172 = vpop.f32.mrf.mxu0
        %v1173 = vadd.f32 %v970, %v1172
        %1174 = vmatmul.bf16.gmra.mxu0 %v348
        %v1175 = vpop.f32.mrf.mxu0
        %v1176 = vadd.f32 %v973, %v1175
        %v1177 = vpop.f32.mrf.mxu0
        %v1178 = vadd.f32 %v975, %v1177
        %1179 = vmatmul.bf16.gmra.mxu0 %v349
        %v1180 = vpop.f32.mrf.mxu0
        %v1181 = vadd.f32 %v978, %v1180
        %v1182 = vpop.f32.mrf.mxu0
        %v1183 = vadd.f32 %v980, %v1182
        %1184 = vmatmul.bf16.gmra.mxu0 %v350
        %v1185 = vpop.f32.mrf.mxu0
        %v1186 = vadd.f32 %v983, %v1185
        %v1187 = vpop.f32.mrf.mxu0
        %v1188 = vadd.f32 %v985, %v1187
        %1189 = vmatmul.bf16.gmra.mxu0 %v351
        %v1190 = vpop.f32.mrf.mxu0
        %v1191 = vadd.f32 %v988, %v1190
        %v1192 = vpop.f32.mrf.mxu0
        %v1193 = vadd.f32 %v990, %v1192
        %1194 = vmatmul.bf16.gmra.mxu0 %v352
        %v1195 = vpop.f32.mrf.mxu0
        %v1196 = vadd.f32 %v993, %v1195
        %v1197 = vpop.f32.mrf.mxu0
        %v1198 = vadd.f32 %v995, %v1197
        %1199 = vmatmul.bf16.gmra.mxu0 %v353
        %v1200 = vpop.f32.mrf.mxu0
        %v1201 = vadd.f32 %v998, %v1200
        %v1202 = vpop.f32.mrf.mxu0
        %v1203 = vadd.f32 %v1000, %v1202
        %1204 = vmatmul.bf16.gmra.mxu0 %v354
        %v1205 = vpop.f32.mrf.mxu0
        %v1206 = vadd.f32 %v1003, %v1205
        %v1207 = vpop.f32.mrf.mxu0
        %v1208 = vadd.f32 %v1005, %v1207
        %1209 = vmatmul.bf16.gmra.mxu0 %v355
        %v1210 = vpop.f32.mrf.mxu0
        %v1211 = vadd.f32 %v1008, %v1210
        %v1212 = vpop.f32.mrf.mxu0
        %v1213 = vadd.f32 %v1010, %v1212
        %1214 = vdwg.mxu0
        %1215 = vmatpush.bf16.msra.mxu0 %v1123
        %1216 = vmatpush.bf16.msra.mxu0 %v1122
        %1217 = vmatpush.bf16.msra.mxu0 %v1121
        %1218 = vmatpush.bf16.msra.mxu0 %v1120
        %1219 = vmatpush.bf16.msra.mxu0 %v1119
        %1220 = vmatpush.bf16.msra.mxu0 %v1118
        %1221 = vmatpush.bf16.msra.mxu0 %v1117
        %1222 = vmatpush.bf16.msra.mxu0 %v1116
        %1223 = vmatmul.bf16.gmra.mxu0 %v408
        %v1224 = vpop.f32.mrf.mxu0
        %v1225 = vadd.f32 %v1166, %v1224
        %v1226 = vpop.f32.mrf.mxu0
        %v1227 = vadd.f32 %v1168, %v1226
        %1228 = vmatmul.bf16.gmra.mxu0 %v420
        %v1229 = vpop.f32.mrf.mxu0
        %v1230 = vadd.f32 %v1171, %v1229
        %v1231 = vpop.f32.mrf.mxu0
        %v1232 = vadd.f32 %v1173, %v1231
        %1233 = vmatmul.bf16.gmra.mxu0 %v432
        %v1234 = vpop.f32.mrf.mxu0
        %v1235 = vadd.f32 %v1176, %v1234
        %v1236 = vpop.f32.mrf.mxu0
        %v1237 = vadd.f32 %v1178, %v1236
        %1238 = vmatmul.bf16.gmra.mxu0 %v444
        %v1239 = vpop.f32.mrf.mxu0
        %v1240 = vadd.f32 %v1181, %v1239
        %v1241 = vpop.f32.mrf.mxu0
        %v1242 = vadd.f32 %v1183, %v1241
        %1243 = vmatmul.bf16.gmra.mxu0 %v456
        %v1244 = vpop.f32.mrf.mxu0
        %v1245 = vadd.f32 %v1186, %v1244
        %v1246 = vpop.f32.mrf.mxu0
        %v1247 = vadd.f32 %v1188, %v1246
        %1248 = vmatmul.bf16.gmra.mxu0 %v468
        %v1249 = vpop.f32.mrf.mxu0
        %v1250 = vadd.f32 %v1191, %v1249
        %v1251 = vpop.f32.mrf.mxu0
        %v1252 = vadd.f32 %v1193, %v1251
        %1253 = vmatmul.bf16.gmra.mxu0 %v480
        %v1254 = vpop.f32.mrf.mxu0
        %v1255 = vadd.f32 %v1196, %v1254
        %v1256 = vpop.f32.mrf.mxu0
        %v1257 = vadd.f32 %v1198, %v1256
        %1258 = vmatmul.bf16.gmra.mxu0 %v492
        %v1259 = vpop.f32.mrf.mxu0
        %v1260 = vadd.f32 %v1201, %v1259
        %v1261 = vpop.f32.mrf.mxu0
        %v1262 = vadd.f32 %v1203, %v1261
        %1263 = vmatmul.bf16.gmra.mxu0 %v504
        %v1264 = vpop.f32.mrf.mxu0
        %v1265 = vadd.f32 %v1206, %v1264
        %v1266 = vpop.f32.mrf.mxu0
        %v1267 = vadd.f32 %v1208, %v1266
        %1268 = vmatmul.bf16.gmra.mxu0 %v516
        %v1269 = vpop.f32.mrf.mxu0
        %v1270 = vadd.f32 %v1211, %v1269
        %v1271 = vpop.f32.mrf.mxu0
        %v1272 = vadd.f32 %v1213, %v1271
        %1273 = vdwg.mxu0
        %1274 = vmatpush.bf16.msra.mxu0 %v1131
        %1275 = vmatpush.bf16.msra.mxu0 %v1130
        %1276 = vmatpush.bf16.msra.mxu0 %v1129
        %1277 = vmatpush.bf16.msra.mxu0 %v1128
        %1278 = vmatpush.bf16.msra.mxu0 %v1127
        %1279 = vmatpush.bf16.msra.mxu0 %v1126
        %1280 = vmatpush.bf16.msra.mxu0 %v1125
        %1281 = vmatpush.bf16.msra.mxu0 %v1124
        %1282 = vmatmul.bf16.gmra.mxu0 %v530
        %v1283 = vpop.f32.mrf.mxu0
        %v1284 = vadd.f32 %v1225, %v1283
        %v1285 = vpop.f32.mrf.mxu0
        %v1286 = vadd.f32 %v1227, %v1285
        %1287 = vmatmul.bf16.gmra.mxu0 %v533
        %v1288 = vpop.f32.mrf.mxu0
        %v1289 = vadd.f32 %v1230, %v1288
        %v1290 = vpop.f32.mrf.mxu0
        %v1291 = vadd.f32 %v1232, %v1290
        %1292 = vmatmul.bf16.gmra.mxu0 %v536
        %v1293 = vpop.f32.mrf.mxu0
        %v1294 = vadd.f32 %v1235, %v1293
        %v1295 = vpop.f32.mrf.mxu0
        %v1296 = vadd.f32 %v1237, %v1295
        %1297 = vmatmul.bf16.gmra.mxu0 %v539
        %v1298 = vpop.f32.mrf.mxu0
        %v1299 = vadd.f32 %v1240, %v1298
        %v1300 = vpop.f32.mrf.mxu0
        %v1301 = vadd.f32 %v1242, %v1300
        %1302 = vmatmul.bf16.gmra.mxu0 %v542
        %v1303 = vpop.f32.mrf.mxu0
        %v1304 = vadd.f32 %v1245, %v1303
        %v1305 = vpop.f32.mrf.mxu0
        %v1306 = vadd.f32 %v1247, %v1305
        %1307 = vmatmul.bf16.gmra.mxu0 %v545
        %v1308 = vpop.f32.mrf.mxu0
        %v1309 = vadd.f32 %v1250, %v1308
        %v1310 = vpop.f32.mrf.mxu0
        %v1311 = vadd.f32 %v1252, %v1310
        %1312 = vmatmul.bf16.gmra.mxu0 %v548
        %v1313 = vpop.f32.mrf.mxu0
        %v1314 = vadd.f32 %v1255, %v1313
        %v1315 = vpop.f32.mrf.mxu0
        %v1316 = vadd.f32 %v1257, %v1315
        %1317 = vmatmul.bf16.gmra.mxu0 %v551
        %v1318 = vpop.f32.mrf.mxu0
        %v1319 = vadd.f32 %v1260, %v1318
        %v1320 = vpop.f32.mrf.mxu0
        %v1321 = vadd.f32 %v1262, %v1320
        %1322 = vmatmul.bf16.gmra.mxu0 %v554
        %v1323 = vpop.f32.mrf.mxu0
        %v1324 = vadd.f32 %v1265, %v1323
        %v1325 = vpop.f32.mrf.mxu0
        %v1326 = vadd.f32 %v1267, %v1325
        %1327 = vmatmul.bf16.gmra.mxu0 %v557
        %v1328 = vpop.f32.mrf.mxu0
        %v1329 = vadd.f32 %v1270, %v1328
        %v1330 = vpop.f32.mrf.mxu0
        %v1331 = vadd.f32 %v1272, %v1330
        %1332 = vdwg.mxu0
        %v1335 = vunpack.c.l.b16 %v303
        %v1336 = vunpack.c.l.b16 %v304
        %v1337 = vpack.c.b16 %v1336, %v1335
        %v1340 = vunpack.c.l.b16 %v305
        %v1341 = vpack.c.b16 %v1340, %v1340
        %v1343 = vshrl.u32 %v1337, 16
        %v1345 = vshll.u32 %v1337, 16
        %v1347 = vrot.slane %v1345, 1
        %v1348 = vor.u32 %v1343, %v1347
        %v1350 = vshll.u32 %v1341, 16
        %v1352 = vrot.slane %v1350, 1
        %v1353 = vsel %vm396, %v1348, %v1352
        %v1355 = vrot.slane %v1337, 1
        %v1356 = vrot.slane %v1341, 1
        %v1357 = vsel %vm527, %v1355, %v1356
        %s1359 = scalar_lea.vmem %s1, 384
        %v1360 = vld [vmem:[%s1359] sm:$0xf]
        %v1361 = vld [vmem:[%s1359 + $0x4] sm:$0xf]
        %v1362 = vld [vmem:[%s1359 + $0x8] sm:$0xf]
        %v1363 = vld [vmem:[%s1359 + $0xc] sm:$0xf]
        %v1364 = vld [vmem:[%s1359 + $0x10] sm:$0xf]
        %v1365 = vld [vmem:[%s1359 + $0x14] sm:$0xf]
        %v1366 = vld [vmem:[%s1359 + $0x18] sm:$0xf]
        %v1367 = vld [vmem:[%s1359 + $0x1c] sm:$0xf]
        %v1368 = vld [vmem:[%s1359 + $0x20] sm:$0xf]
        %v1369 = vld [vmem:[%s1359 + $0x24] sm:$0xf]
        %v1370 = vld [vmem:[%s1359 + $0x28] sm:$0xf]
        %v1371 = vld [vmem:[%s1359 + $0x2c] sm:$0xf]
        %v1372 = vld [vmem:[%s1359 + $0x30] sm:$0xf]
        %v1373 = vld [vmem:[%s1359 + $0x34] sm:$0xf]
        %v1374 = vld [vmem:[%s1359 + $0x38] sm:$0xf]
        %v1375 = vld [vmem:[%s1359 + $0x3c] sm:$0xf]
        %v1376 = vld [vmem:[%s1359 + $0x40] sm:$0xf]
        %v1377 = vld [vmem:[%s1359 + $0x44] sm:$0xf]
        %v1378 = vld [vmem:[%s1359 + $0x48] sm:$0xf]
        %v1379 = vld [vmem:[%s1359 + $0x4c] sm:$0xf]
        %v1380 = vld [vmem:[%s1359 + $0x50] sm:$0xf]
        %v1381 = vld [vmem:[%s1359 + $0x54] sm:$0xf]
        %v1382 = vld [vmem:[%s1359 + $0x58] sm:$0xf]
        %v1383 = vld [vmem:[%s1359 + $0x5c] sm:$0xf]
        %v1384 = vld [vmem:[%s1359 + $0x60] sm:$0xf]
        %v1385 = vld [vmem:[%s1359 + $0x64] sm:$0xf]
        %v1386 = vld [vmem:[%s1359 + $0x68] sm:$0xf]
        %v1387 = vld [vmem:[%s1359 + $0x6c] sm:$0xf]
        %v1388 = vld [vmem:[%s1359 + $0x70] sm:$0xf]
        %v1389 = vld [vmem:[%s1359 + $0x74] sm:$0xf]
        %v1390 = vld [vmem:[%s1359 + $0x78] sm:$0xf]
        %v1391 = vld [vmem:[%s1359 + $0x7c] sm:$0xf]
        %v1392 = vld [vmem:[%s1359 + $0x80] sm:$0xf]
        %v1393 = vld [vmem:[%s1359 + $0x84] sm:$0xf]
        %v1394 = vld [vmem:[%s1359 + $0x88] sm:$0xf]
        %v1395 = vld [vmem:[%s1359 + $0x8c] sm:$0xf]
        %v1396 = vld [vmem:[%s1359 + $0x90] sm:$0xf]
        %v1397 = vld [vmem:[%s1359 + $0x94] sm:$0xf]
        %v1398 = vld [vmem:[%s1359 + $0x98] sm:$0xf]
        %v1399 = vld [vmem:[%s1359 + $0x9c] sm:$0xf]
        %v1400 = vld [vmem:[%s1359 + $0xa0] sm:$0xf]
        %v1401 = vld [vmem:[%s1359 + $0xa4] sm:$0xf]
        %v1402 = vld [vmem:[%s1359 + $0xa8] sm:$0xf]
        %v1403 = vld [vmem:[%s1359 + $0xac] sm:$0xf]
        %v1404 = vld [vmem:[%s1359 + $0xb0] sm:$0xf]
        %v1405 = vld [vmem:[%s1359 + $0xb4] sm:$0xf]
        %v1406 = vld [vmem:[%s1359 + $0xb8] sm:$0xf]
        %v1407 = vld [vmem:[%s1359 + $0xbc] sm:$0xf]
        %v1456 = vunpack.c.l.b16 %v1360
        %v1457 = vunpack.c.l.b16 %v1361
        %v1458 = vunpack.c.l.b16 %v1362
        %v1459 = vunpack.c.l.b16 %v1363
        %v1460 = vunpack.c.l.b16 %v1364
        %v1461 = vunpack.c.l.b16 %v1365
        %v1462 = vunpack.c.l.b16 %v1366
        %v1463 = vunpack.c.l.b16 %v1367
        %v1464 = vunpack.c.l.b16 %v1368
        %v1465 = vunpack.c.l.b16 %v1369
        %v1466 = vunpack.c.l.b16 %v1370
        %v1467 = vunpack.c.l.b16 %v1371
        %v1468 = vunpack.c.l.b16 %v1372
        %v1469 = vunpack.c.l.b16 %v1373
        %v1470 = vunpack.c.l.b16 %v1374
        %v1471 = vunpack.c.l.b16 %v1375
        %v1472 = vunpack.c.l.b16 %v1376
        %v1473 = vunpack.c.l.b16 %v1377
        %v1474 = vunpack.c.l.b16 %v1378
        %v1475 = vunpack.c.l.b16 %v1379
        %v1476 = vunpack.c.l.b16 %v1380
        %v1477 = vunpack.c.l.b16 %v1381
        %v1478 = vunpack.c.l.b16 %v1382
        %v1479 = vunpack.c.l.b16 %v1383
        %v1480 = vunpack.c.l.b16 %v1384
        %v1481 = vunpack.c.l.b16 %v1385
        %v1482 = vunpack.c.l.b16 %v1386
        %v1483 = vunpack.c.l.b16 %v1387
        %v1484 = vunpack.c.l.b16 %v1388
        %v1485 = vunpack.c.l.b16 %v1389
        %v1486 = vunpack.c.l.b16 %v1390
        %v1487 = vunpack.c.l.b16 %v1391
        %v1488 = vunpack.c.l.b16 %v1392
        %v1489 = vunpack.c.l.b16 %v1393
        %v1490 = vunpack.c.l.b16 %v1394
        %v1491 = vunpack.c.l.b16 %v1395
        %v1492 = vunpack.c.l.b16 %v1396
        %v1493 = vunpack.c.l.b16 %v1397
        %v1494 = vunpack.c.l.b16 %v1398
        %v1495 = vunpack.c.l.b16 %v1399
        %v1496 = vunpack.c.l.b16 %v1400
        %v1497 = vunpack.c.l.b16 %v1401
        %v1498 = vunpack.c.l.b16 %v1402
        %v1499 = vunpack.c.l.b16 %v1403
        %v1500 = vunpack.c.l.b16 %v1404
        %v1501 = vunpack.c.l.b16 %v1405
        %v1502 = vunpack.c.l.b16 %v1406
        %v1503 = vunpack.c.l.b16 %v1407
        %v1504 = vpack.c.b16 %v1457, %v1456
        %v1505 = vpack.c.b16 %v1459, %v1458
        %v1506 = vpack.c.b16 %v1461, %v1460
        %v1507 = vpack.c.b16 %v1463, %v1462
        %v1508 = vpack.c.b16 %v1465, %v1464
        %v1509 = vpack.c.b16 %v1467, %v1466
        %v1510 = vpack.c.b16 %v1469, %v1468
        %v1511 = vpack.c.b16 %v1471, %v1470
        %v1512 = vpack.c.b16 %v1473, %v1472
        %v1513 = vpack.c.b16 %v1475, %v1474
        %v1514 = vpack.c.b16 %v1477, %v1476
        %v1515 = vpack.c.b16 %v1479, %v1478
        %v1516 = vpack.c.b16 %v1481, %v1480
        %v1517 = vpack.c.b16 %v1483, %v1482
        %v1518 = vpack.c.b16 %v1485, %v1484
        %v1519 = vpack.c.b16 %v1487, %v1486
        %v1520 = vpack.c.b16 %v1489, %v1488
        %v1521 = vpack.c.b16 %v1491, %v1490
        %v1522 = vpack.c.b16 %v1493, %v1492
        %v1523 = vpack.c.b16 %v1495, %v1494
        %v1524 = vpack.c.b16 %v1497, %v1496
        %v1525 = vpack.c.b16 %v1499, %v1498
        %v1526 = vpack.c.b16 %v1501, %v1500
        %v1527 = vpack.c.b16 %v1503, %v1502
        %1552 = vmatpush.bf16.msra.mxu0 %v1511
        %1553 = vmatpush.bf16.msra.mxu0 %v1510
        %1554 = vmatpush.bf16.msra.mxu0 %v1509
        %1555 = vmatpush.bf16.msra.mxu0 %v1508
        %1556 = vmatpush.bf16.msra.mxu0 %v1507
        %1557 = vmatpush.bf16.msra.mxu0 %v1506
        %1558 = vmatpush.bf16.msra.mxu0 %v1505
        %1559 = vmatpush.bf16.msra.mxu0 %v1504
        %1560 = vmatmul.bf16.gmra.mxu0 %v348
        %v1561 = vpop.f32.mrf.mxu0
        %v1562 = vadd.f32 0.0, %v1561
        %v1563 = vpop.f32.mrf.mxu0
        %v1564 = vadd.f32 0.0, %v1563
        %1565 = vmatmul.bf16.gmra.mxu0 %v349
        %v1566 = vpop.f32.mrf.mxu0
        %v1567 = vadd.f32 0.0, %v1566
        %v1568 = vpop.f32.mrf.mxu0
        %v1569 = vadd.f32 0.0, %v1568
        %1570 = vmatmul.bf16.gmra.mxu0 %v350
        %v1571 = vpop.f32.mrf.mxu0
        %v1572 = vadd.f32 0.0, %v1571
        %v1573 = vpop.f32.mrf.mxu0
        %v1574 = vadd.f32 0.0, %v1573
        %1575 = vmatmul.bf16.gmra.mxu0 %v351
        %v1576 = vpop.f32.mrf.mxu0
        %v1577 = vadd.f32 0.0, %v1576
        %v1578 = vpop.f32.mrf.mxu0
        %v1579 = vadd.f32 0.0, %v1578
        %1580 = vmatmul.bf16.gmra.mxu0 %v352
        %v1581 = vpop.f32.mrf.mxu0
        %v1582 = vadd.f32 0.0, %v1581
        %v1583 = vpop.f32.mrf.mxu0
        %v1584 = vadd.f32 0.0, %v1583
        %1585 = vmatmul.bf16.gmra.mxu0 %v353
        %v1586 = vpop.f32.mrf.mxu0
        %v1587 = vadd.f32 0.0, %v1586
        %v1588 = vpop.f32.mrf.mxu0
        %v1589 = vadd.f32 0.0, %v1588
        %1590 = vmatmul.bf16.gmra.mxu0 %v354
        %v1591 = vpop.f32.mrf.mxu0
        %v1592 = vadd.f32 0.0, %v1591
        %v1593 = vpop.f32.mrf.mxu0
        %v1594 = vadd.f32 0.0, %v1593
        %1595 = vmatmul.bf16.gmra.mxu0 %v355
        %v1596 = vpop.f32.mrf.mxu0
        %v1597 = vadd.f32 0.0, %v1596
        %v1598 = vpop.f32.mrf.mxu0
        %v1599 = vadd.f32 0.0, %v1598
        %1600 = vmatmul.bf16.gmra.mxu0 %v620
        %v1601 = vpop.f32.mrf.mxu0
        %v1602 = vadd.f32 0.0, %v1601
        %v1603 = vpop.f32.mrf.mxu0
        %v1604 = vadd.f32 0.0, %v1603
        %1605 = vmatmul.bf16.gmra.mxu0 %v1337
        %v1606 = vpop.f32.mrf.mxu0
        %v1607 = vadd.f32 0.0, %v1606
        %v1608 = vpop.f32.mrf.mxu0
        %v1609 = vadd.f32 0.0, %v1608
        %1610 = vdwg.mxu0
        %1611 = vmatpush.bf16.msra.mxu0 %v1519
        %1612 = vmatpush.bf16.msra.mxu0 %v1518
        %1613 = vmatpush.bf16.msra.mxu0 %v1517
        %1614 = vmatpush.bf16.msra.mxu0 %v1516
        %1615 = vmatpush.bf16.msra.mxu0 %v1515
        %1616 = vmatpush.bf16.msra.mxu0 %v1514
        %1617 = vmatpush.bf16.msra.mxu0 %v1513
        %1618 = vmatpush.bf16.msra.mxu0 %v1512
        %1619 = vmatmul.bf16.gmra.mxu0 %v432
        %v1620 = vpop.f32.mrf.mxu0
        %v1621 = vadd.f32 %v1562, %v1620
        %v1622 = vpop.f32.mrf.mxu0
        %v1623 = vadd.f32 %v1564, %v1622
        %1624 = vmatmul.bf16.gmra.mxu0 %v444
        %v1625 = vpop.f32.mrf.mxu0
        %v1626 = vadd.f32 %v1567, %v1625
        %v1627 = vpop.f32.mrf.mxu0
        %v1628 = vadd.f32 %v1569, %v1627
        %1629 = vmatmul.bf16.gmra.mxu0 %v456
        %v1630 = vpop.f32.mrf.mxu0
        %v1631 = vadd.f32 %v1572, %v1630
        %v1632 = vpop.f32.mrf.mxu0
        %v1633 = vadd.f32 %v1574, %v1632
        %1634 = vmatmul.bf16.gmra.mxu0 %v468
        %v1635 = vpop.f32.mrf.mxu0
        %v1636 = vadd.f32 %v1577, %v1635
        %v1637 = vpop.f32.mrf.mxu0
        %v1638 = vadd.f32 %v1579, %v1637
        %1639 = vmatmul.bf16.gmra.mxu0 %v480
        %v1640 = vpop.f32.mrf.mxu0
        %v1641 = vadd.f32 %v1582, %v1640
        %v1642 = vpop.f32.mrf.mxu0
        %v1643 = vadd.f32 %v1584, %v1642
        %1644 = vmatmul.bf16.gmra.mxu0 %v492
        %v1645 = vpop.f32.mrf.mxu0
        %v1646 = vadd.f32 %v1587, %v1645
        %v1647 = vpop.f32.mrf.mxu0
        %v1648 = vadd.f32 %v1589, %v1647
        %1649 = vmatmul.bf16.gmra.mxu0 %v504
        %v1650 = vpop.f32.mrf.mxu0
        %v1651 = vadd.f32 %v1592, %v1650
        %v1652 = vpop.f32.mrf.mxu0
        %v1653 = vadd.f32 %v1594, %v1652
        %1654 = vmatmul.bf16.gmra.mxu0 %v516
        %v1655 = vpop.f32.mrf.mxu0
        %v1656 = vadd.f32 %v1597, %v1655
        %v1657 = vpop.f32.mrf.mxu0
        %v1658 = vadd.f32 %v1599, %v1657
        %1659 = vmatmul.bf16.gmra.mxu0 %v636
        %v1660 = vpop.f32.mrf.mxu0
        %v1661 = vadd.f32 %v1602, %v1660
        %v1662 = vpop.f32.mrf.mxu0
        %v1663 = vadd.f32 %v1604, %v1662
        %1664 = vmatmul.bf16.gmra.mxu0 %v1353
        %v1665 = vpop.f32.mrf.mxu0
        %v1666 = vadd.f32 %v1607, %v1665
        %v1667 = vpop.f32.mrf.mxu0
        %v1668 = vadd.f32 %v1609, %v1667
        %1669 = vdwg.mxu0
        %1670 = vmatpush.bf16.msra.mxu0 %v1527
        %1671 = vmatpush.bf16.msra.mxu0 %v1526
        %1672 = vmatpush.bf16.msra.mxu0 %v1525
        %1673 = vmatpush.bf16.msra.mxu0 %v1524
        %1674 = vmatpush.bf16.msra.mxu0 %v1523
        %1675 = vmatpush.bf16.msra.mxu0 %v1522
        %1676 = vmatpush.bf16.msra.mxu0 %v1521
        %1677 = vmatpush.bf16.msra.mxu0 %v1520
        %1678 = vmatmul.bf16.gmra.mxu0 %v536
        %v1679 = vpop.f32.mrf.mxu0
        %v1680 = vadd.f32 %v1621, %v1679
        %v1681 = vpop.f32.mrf.mxu0
        %v1682 = vadd.f32 %v1623, %v1681
        %1683 = vmatmul.bf16.gmra.mxu0 %v539
        %v1684 = vpop.f32.mrf.mxu0
        %v1685 = vadd.f32 %v1626, %v1684
        %v1686 = vpop.f32.mrf.mxu0
        %v1687 = vadd.f32 %v1628, %v1686
        %1688 = vmatmul.bf16.gmra.mxu0 %v542
        %v1689 = vpop.f32.mrf.mxu0
        %v1690 = vadd.f32 %v1631, %v1689
        %v1691 = vpop.f32.mrf.mxu0
        %v1692 = vadd.f32 %v1633, %v1691
        %1693 = vmatmul.bf16.gmra.mxu0 %v545
        %v1694 = vpop.f32.mrf.mxu0
        %v1695 = vadd.f32 %v1636, %v1694
        %v1696 = vpop.f32.mrf.mxu0
        %v1697 = vadd.f32 %v1638, %v1696
        %1698 = vmatmul.bf16.gmra.mxu0 %v548
        %v1699 = vpop.f32.mrf.mxu0
        %v1700 = vadd.f32 %v1641, %v1699
        %v1701 = vpop.f32.mrf.mxu0
        %v1702 = vadd.f32 %v1643, %v1701
        %1703 = vmatmul.bf16.gmra.mxu0 %v551
        %v1704 = vpop.f32.mrf.mxu0
        %v1705 = vadd.f32 %v1646, %v1704
        %v1706 = vpop.f32.mrf.mxu0
        %v1707 = vadd.f32 %v1648, %v1706
        %1708 = vmatmul.bf16.gmra.mxu0 %v554
        %v1709 = vpop.f32.mrf.mxu0
        %v1710 = vadd.f32 %v1651, %v1709
        %v1711 = vpop.f32.mrf.mxu0
        %v1712 = vadd.f32 %v1653, %v1711
        %1713 = vmatmul.bf16.gmra.mxu0 %v557
        %v1714 = vpop.f32.mrf.mxu0
        %v1715 = vadd.f32 %v1656, %v1714
        %v1716 = vpop.f32.mrf.mxu0
        %v1717 = vadd.f32 %v1658, %v1716
        %1718 = vmatmul.bf16.gmra.mxu0 %v640
        %v1719 = vpop.f32.mrf.mxu0
        %v1720 = vadd.f32 %v1661, %v1719
        %v1721 = vpop.f32.mrf.mxu0
        %v1722 = vadd.f32 %v1663, %v1721
        %1723 = vmatmul.bf16.gmra.mxu0 %v1357
        %v1724 = vpop.f32.mrf.mxu0
        %v1725 = vadd.f32 %v1666, %v1724
        %v1726 = vpop.f32.mrf.mxu0
        %v1727 = vadd.f32 %v1668, %v1726
        %1728 = vdwg.mxu0
        %v1729 = vadd.f32 %v1284, %v1680
        %v1730 = vadd.f32 %v1286, %v1682
        %v1731 = vadd.f32 %v1289, %v1685
        %v1732 = vadd.f32 %v1291, %v1687
        %v1733 = vadd.f32 %v1294, %v1690
        %v1734 = vadd.f32 %v1296, %v1692
        %v1735 = vadd.f32 %v1299, %v1695
        %v1736 = vadd.f32 %v1301, %v1697
        %v1737 = vadd.f32 %v1304, %v1700
        %v1738 = vadd.f32 %v1306, %v1702
        %v1739 = vadd.f32 %v1309, %v1705
        %v1740 = vadd.f32 %v1311, %v1707
        %v1741 = vadd.f32 %v1314, %v1710
        %v1742 = vadd.f32 %v1316, %v1712
        %v1743 = vadd.f32 %v1319, %v1715
        %v1744 = vadd.f32 %v1321, %v1717
        %v1745 = vadd.f32 %v1324, %v1720
        %v1746 = vadd.f32 %v1326, %v1722
        %v1747 = vadd.f32 %v1329, %v1725
        %v1748 = vadd.f32 %v1331, %v1727
        %v1749 = vld [vmem:[%s2] sm:$0x1]
        %v1751 = vperm.slane %v1749, 0
        %v1753 = vadd.f32 %v1729, %v1751
        %v1754 = vadd.f32 %v1730, %v1751
        %v1755 = vadd.f32 %v1731, %v1751
        %v1756 = vadd.f32 %v1732, %v1751
        %v1757 = vadd.f32 %v1733, %v1751
        %v1758 = vadd.f32 %v1734, %v1751
        %v1759 = vadd.f32 %v1735, %v1751
        %v1760 = vadd.f32 %v1736, %v1751
        %v1761 = vadd.f32 %v1737, %v1751
        %v1762 = vadd.f32 %v1738, %v1751
        %v1763 = vadd.f32 %v1739, %v1751
        %v1764 = vadd.f32 %v1740, %v1751
        %v1765 = vadd.f32 %v1741, %v1751
        %v1766 = vadd.f32 %v1742, %v1751
        %v1767 = vadd.f32 %v1743, %v1751
        %v1768 = vadd.f32 %v1744, %v1751
        %v1769 = vadd.f32 %v1745, %v1751
        %v1770 = vadd.f32 %v1746, %v1751
        %v1771 = vadd.f32 %v1747, %v1751
        %v1772 = vadd.f32 %v1748, %v1751
        %v1773 = vmax.f32 %v1753, 0.0
        %v1774 = vmax.f32 %v1754, 0.0
        %v1775 = vmax.f32 %v1755, 0.0
        %v1776 = vmax.f32 %v1756, 0.0
        %v1777 = vmax.f32 %v1757, 0.0
        %v1778 = vmax.f32 %v1758, 0.0
        %v1779 = vmax.f32 %v1759, 0.0
        %v1780 = vmax.f32 %v1760, 0.0
        %v1781 = vmax.f32 %v1761, 0.0
        %v1782 = vmax.f32 %v1762, 0.0
        %v1783 = vmax.f32 %v1763, 0.0
        %v1784 = vmax.f32 %v1764, 0.0
        %v1785 = vmax.f32 %v1765, 0.0
        %v1786 = vmax.f32 %v1766, 0.0
        %v1787 = vmax.f32 %v1767, 0.0
        %v1788 = vmax.f32 %v1768, 0.0
        %v1789 = vmax.f32 %v1769, 0.0
        %v1790 = vmax.f32 %v1770, 0.0
        %v1791 = vmax.f32 %v1771, 0.0
        %v1792 = vmax.f32 %v1772, 0.0
        %v1793 = vpack.c.bf16 %v1773, %v1773
        %v1794 = vpack.c.bf16 %v1774, %v1774
        %v1795 = vpack.c.bf16 %v1775, %v1775
        %v1796 = vpack.c.bf16 %v1776, %v1776
        %v1797 = vpack.c.bf16 %v1777, %v1777
        %v1798 = vpack.c.bf16 %v1778, %v1778
        %v1799 = vpack.c.bf16 %v1779, %v1779
        %v1800 = vpack.c.bf16 %v1780, %v1780
        %v1801 = vpack.c.bf16 %v1781, %v1781
        %v1802 = vpack.c.bf16 %v1782, %v1782
        %v1803 = vpack.c.bf16 %v1783, %v1783
        %v1804 = vpack.c.bf16 %v1784, %v1784
        %v1805 = vpack.c.bf16 %v1785, %v1785
        %v1806 = vpack.c.bf16 %v1786, %v1786
        %v1807 = vpack.c.bf16 %v1787, %v1787
        %v1808 = vpack.c.bf16 %v1788, %v1788
        %v1809 = vpack.c.bf16 %v1789, %v1789
        %v1810 = vpack.c.bf16 %v1790, %v1790
        %v1811 = vpack.c.bf16 %v1791, %v1791
        %v1812 = vpack.c.bf16 %v1792, %v1792
        %v1833 = vunpack.c.l.b16 %v1793
        %v1834 = vunpack.c.l.b16 %v1794
        %v1835 = vunpack.c.l.b16 %v1795
        %v1836 = vunpack.c.l.b16 %v1796
        %v1837 = vunpack.c.l.b16 %v1797
        %v1838 = vunpack.c.l.b16 %v1798
        %v1839 = vunpack.c.l.b16 %v1799
        %v1840 = vunpack.c.l.b16 %v1800
        %v1841 = vunpack.c.l.b16 %v1801
        %v1842 = vunpack.c.l.b16 %v1802
        %v1843 = vunpack.c.l.b16 %v1803
        %v1844 = vunpack.c.l.b16 %v1804
        %v1845 = vunpack.c.l.b16 %v1805
        %v1846 = vunpack.c.l.b16 %v1806
        %v1847 = vunpack.c.l.b16 %v1807
        %v1848 = vunpack.c.l.b16 %v1808
        %v1849 = vunpack.c.l.b16 %v1809
        %v1850 = vunpack.c.l.b16 %v1810
        %v1851 = vunpack.c.l.b16 %v1811
        %v1852 = vunpack.c.l.b16 %v1812
        %v1853 = vpack.c.b16 %v1834, %v1833
        %v1854 = vpack.c.b16 %v1836, %v1835
        %v1855 = vpack.c.b16 %v1838, %v1837
        %v1856 = vpack.c.b16 %v1840, %v1839
        %v1857 = vpack.c.b16 %v1842, %v1841
        %v1858 = vpack.c.b16 %v1844, %v1843
        %v1859 = vpack.c.b16 %v1846, %v1845
        %v1860 = vpack.c.b16 %v1848, %v1847
        %v1861 = vpack.c.b16 %v1850, %v1849
        %v1862 = vpack.c.b16 %v1852, %v1851
        %v1864 = vshrl.u32 %v1853, 16
        %v1866 = vrot.slane %v1864, 7
        %v1867 = vshll.u32 %v1853, 16
        %v1869 = vor.u32 %v1866, %v1867
        %v1871 = vshrl.u32 %v1854, 16
        %v1873 = vrot.slane %v1871, 7
        %v1874 = vshll.u32 %v1854, 16
        %v1876 = vor.u32 %v1873, %v1874
        %v1878 = vshrl.u32 %v1855, 16
        %v1880 = vrot.slane %v1878, 7
        %v1881 = vshll.u32 %v1855, 16
        %v1883 = vor.u32 %v1880, %v1881
        %v1885 = vshrl.u32 %v1856, 16
        %v1887 = vrot.slane %v1885, 7
        %v1888 = vshll.u32 %v1856, 16
        %v1890 = vor.u32 %v1887, %v1888
        %v1892 = vshrl.u32 %v1857, 16
        %v1894 = vrot.slane %v1892, 7
        %v1895 = vshll.u32 %v1857, 16
        %v1897 = vor.u32 %v1894, %v1895
        %v1899 = vshrl.u32 %v1858, 16
        %v1901 = vrot.slane %v1899, 7
        %v1902 = vshll.u32 %v1858, 16
        %v1904 = vor.u32 %v1901, %v1902
        %v1906 = vshrl.u32 %v1859, 16
        %v1908 = vrot.slane %v1906, 7
        %v1909 = vshll.u32 %v1859, 16
        %v1911 = vor.u32 %v1908, %v1909
        %v1913 = vshrl.u32 %v1860, 16
        %v1915 = vrot.slane %v1913, 7
        %v1916 = vshll.u32 %v1860, 16
        %v1918 = vor.u32 %v1915, %v1916
        %v1920 = vshrl.u32 %v1861, 16
        %v1922 = vrot.slane %v1920, 7
        %v1923 = vshll.u32 %v1861, 16
        %v1925 = vor.u32 %v1922, %v1923
        %v1927 = vshrl.u32 %v1862, 16
        %v1929 = vrot.slane %v1927, 7
        %v1930 = vshll.u32 %v1862, 16
        %v1932 = vor.u32 %v1929, %v1930
        %vm1953 = vcmask 1040384
        %vm1954 = vsmask.f32 256
        %vm1955 = vmand %vm1953, %vm1954
        %v1956 = vsel %vm1955, 0, %v1869
        %v1957 = vsel %vm1955, 0, %v1876
        %v1958 = vsel %vm1955, 0, %v1883
        %v1959 = vsel %vm1955, 0, %v1890
        %v1960 = vsel %vm1955, 0, %v1897
        %v1961 = vsel %vm1955, 0, %v1904
        %v1962 = vsel %vm1955, 0, %v1911
        %v1963 = vsel %vm1955, 0, %v1918
        %v1964 = vsel %vm1955, 0, %v1925
        %v1965 = vsel %vm1955, 0, %v1932
        %v1966 = vsel %vm1955, %v1866, 0
        %v1967 = vsel %vm1955, %v1873, 0
        %v1968 = vsel %vm1955, %v1880, 0
        %v1969 = vsel %vm1955, %v1887, 0
        %v1970 = vsel %vm1955, %v1894, 0
        %v1971 = vsel %vm1955, %v1901, 0
        %v1972 = vsel %vm1955, %v1908, 0
        %v1973 = vsel %vm1955, %v1915, 0
        %v1974 = vsel %vm1955, %v1922, 0
        %v1975 = vsel %vm1955, %v1929, 0
        %v1996 = vunpack.c.l.b16 %v1956
        %v1997 = vunpack.c.h.b16 %v1956
        %v1998 = vunpack.c.l.b16 %v1966
        %v1999 = vunpack.c.l.b16 %v1957
        %v2000 = vunpack.c.h.b16 %v1957
        %v2001 = vunpack.c.l.b16 %v1967
        %v2002 = vunpack.c.l.b16 %v1958
        %v2003 = vunpack.c.h.b16 %v1958
        %v2004 = vunpack.c.l.b16 %v1968
        %v2005 = vunpack.c.l.b16 %v1959
        %v2006 = vunpack.c.h.b16 %v1959
        %v2007 = vunpack.c.l.b16 %v1969
        %v2008 = vunpack.c.l.b16 %v1960
        %v2009 = vunpack.c.h.b16 %v1960
        %v2010 = vunpack.c.l.b16 %v1970
        %v2011 = vunpack.c.l.b16 %v1961
        %v2012 = vunpack.c.h.b16 %v1961
        %v2013 = vunpack.c.l.b16 %v1971
        %v2014 = vunpack.c.l.b16 %v1962
        %v2015 = vunpack.c.h.b16 %v1962
        %v2016 = vunpack.c.l.b16 %v1972
        %v2017 = vunpack.c.l.b16 %v1963
        %v2018 = vunpack.c.h.b16 %v1963
        %v2019 = vunpack.c.l.b16 %v1973
        %v2020 = vunpack.c.l.b16 %v1964
        %v2021 = vunpack.c.h.b16 %v1964
        %v2022 = vunpack.c.l.b16 %v1974
        %v2023 = vunpack.c.l.b16 %v1965
        %v2024 = vunpack.c.h.b16 %v1965
        %v2025 = vunpack.c.l.b16 %v1975
        %v2026 = vpack.c.b16 %v1996, %v1996
        %v2027 = vpack.c.b16 %v1997, %v1997
        %v2028 = vpack.c.b16 %v1998, %v1998
        %v2029 = vpack.c.b16 %v1999, %v1999
        %v2030 = vpack.c.b16 %v2000, %v2000
        %v2031 = vpack.c.b16 %v2001, %v2001
        %v2032 = vpack.c.b16 %v2002, %v2002
        %v2033 = vpack.c.b16 %v2003, %v2003
        %v2034 = vpack.c.b16 %v2004, %v2004
        %v2035 = vpack.c.b16 %v2005, %v2005
        %v2036 = vpack.c.b16 %v2006, %v2006
        %v2037 = vpack.c.b16 %v2007, %v2007
        %v2038 = vpack.c.b16 %v2008, %v2008
        %v2039 = vpack.c.b16 %v2009, %v2009
        %v2040 = vpack.c.b16 %v2010, %v2010
        %v2041 = vpack.c.b16 %v2011, %v2011
        %v2042 = vpack.c.b16 %v2012, %v2012
        %v2043 = vpack.c.b16 %v2013, %v2013
        %v2044 = vpack.c.b16 %v2014, %v2014
        %v2045 = vpack.c.b16 %v2015, %v2015
        %v2046 = vpack.c.b16 %v2016, %v2016
        %v2047 = vpack.c.b16 %v2017, %v2017
        %v2048 = vpack.c.b16 %v2018, %v2018
        %v2049 = vpack.c.b16 %v2019, %v2019
        %v2050 = vpack.c.b16 %v2020, %v2020
        %v2051 = vpack.c.b16 %v2021, %v2021
        %v2052 = vpack.c.b16 %v2022, %v2022
        %v2053 = vpack.c.b16 %v2023, %v2023
        %v2054 = vpack.c.b16 %v2024, %v2024
        %v2055 = vpack.c.b16 %v2025, %v2025
        %2086 = vst [vmem:[#allocation2] sm:$0xf] %v2026
        %2087 = vst [vmem:[#allocation2 + $0x4] sm:$0xf] %v2027
        %2088 = vst [vmem:[#allocation2 + $0x8] sm:$0x1] %v2028
        %2089 = vst [vmem:[#allocation2 + $0xc] sm:$0xf] %v2029
        %2090 = vst [vmem:[#allocation2 + $0x10] sm:$0xf] %v2030
        %2091 = vst [vmem:[#allocation2 + $0x14] sm:$0x1] %v2031
        %2092 = vst [vmem:[#allocation2 + $0x18] sm:$0xf] %v2032
        %2093 = vst [vmem:[#allocation2 + $0x1c] sm:$0xf] %v2033
        %2094 = vst [vmem:[#allocation2 + $0x20] sm:$0x1] %v2034
        %2095 = vst [vmem:[#allocation2 + $0x24] sm:$0xf] %v2035
        %2096 = vst [vmem:[#allocation2 + $0x28] sm:$0xf] %v2036
        %2097 = vst [vmem:[#allocation2 + $0x2c] sm:$0x1] %v2037
        %2098 = vst [vmem:[#allocation2 + $0x30] sm:$0xf] %v2038
        %2099 = vst [vmem:[#allocation2 + $0x34] sm:$0xf] %v2039
        %2100 = vst [vmem:[#allocation2 + $0x38] sm:$0x1] %v2040
        %2101 = vst [vmem:[#allocation2 + $0x3c] sm:$0xf] %v2041
        %2102 = vst [vmem:[#allocation2 + $0x40] sm:$0xf] %v2042
        %2103 = vst [vmem:[#allocation2 + $0x44] sm:$0x1] %v2043
        %2104 = vst [vmem:[#allocation2 + $0x48] sm:$0xf] %v2044
        %2105 = vst [vmem:[#allocation2 + $0x4c] sm:$0xf] %v2045
        %2106 = vst [vmem:[#allocation2 + $0x50] sm:$0x1] %v2046
        %2107 = vst [vmem:[#allocation2 + $0x54] sm:$0xf] %v2047
        %2108 = vst [vmem:[#allocation2 + $0x58] sm:$0xf] %v2048
        %2109 = vst [vmem:[#allocation2 + $0x5c] sm:$0x1] %v2049
        %2110 = vst [vmem:[#allocation2 + $0x60] sm:$0xf] %v2050
        %2111 = vst [vmem:[#allocation2 + $0x64] sm:$0xf] %v2051
        %2112 = vst [vmem:[#allocation2 + $0x68] sm:$0x1] %v2052
        %2113 = vst [vmem:[#allocation2 + $0x6c] sm:$0xf] %v2053
        %2114 = vst [vmem:[#allocation2 + $0x70] sm:$0xf] %v2054
        %2115 = vst [vmem:[#allocation2 + $0x74] sm:$0x1] %v2055
        %p2116 = scmp.eq.s32.totalorder %s25, 0
        // Predicated region
        $region45: #{tpu_custom_call.1} parent=39 // pred_check
          %p2117 = pneg %p2116
        $region46: #{tpu_custom_call.1} parent=39 // pred_check_branch
          %2119 = sbr.rel (%p2117) target = $region48
        $region47: #{tpu_custom_call.1} parent=39 // pred_region
          %2120 = vst [vmem:[#allocation2] sm:$0xf] 0
          %2121 = vst [vmem:[#allocation2 + $0x4] sm:$0xf] 0
          %2122 = vst [vmem:[#allocation2 + $0x8] sm:$0x1] 0
        $region48: #{tpu_custom_call.1} parent=39 // pred_fallthru
          _
        %p2123 = scmp.eq.s32.totalorder %s25, 1
        // Predicated region
        $region49: #{tpu_custom_call.1} parent=39 // pred_check
          %p2124 = pneg %p2123
        $region50: #{tpu_custom_call.1} parent=39 // pred_check_branch
          %2126 = sbr.rel (%p2124) target = $region52
        $region51: #{tpu_custom_call.1} parent=39 // pred_region
          %s2127 = scalar_lea.vmem [#allocation2], 108
          %2128 = vst [vmem:[%s2127] sm:$0xf] 0
          %2129 = vst [vmem:[%s2127 + $0x4] sm:$0xf] 0
          %2130 = vst [vmem:[%s2127 + $0x8] sm:$0x1] 0
        $region52: #{tpu_custom_call.1} parent=39 // pred_fallthru
          _
        %v2131 = vld [vmem:[#allocation2] sm:$0xf]
        %v2132 = vld [vmem:[#allocation2 + $0x4] sm:$0xf]
        %v2133 = vld [vmem:[#allocation2 + $0x8] sm:$0x1]
        %v2134 = vld [vmem:[#allocation2 + $0xc] sm:$0xf]
        %v2135 = vld [vmem:[#allocation2 + $0x10] sm:$0xf]
        %v2136 = vld [vmem:[#allocation2 + $0x14] sm:$0x1]
        %v2137 = vld [vmem:[#allocation2 + $0x18] sm:$0xf]
        %v2138 = vld [vmem:[#allocation2 + $0x1c] sm:$0xf]
        %v2139 = vld [vmem:[#allocation2 + $0x20] sm:$0x1]
        %v2140 = vld [vmem:[#allocation2 + $0x24] sm:$0xf]
        %v2141 = vld [vmem:[#allocation2 + $0x28] sm:$0xf]
        %v2142 = vld [vmem:[#allocation2 + $0x2c] sm:$0x1]
        %v2143 = vld [vmem:[#allocation2 + $0x30] sm:$0xf]
        %v2144 = vld [vmem:[#allocation2 + $0x34] sm:$0xf]
        %v2145 = vld [vmem:[#allocation2 + $0x38] sm:$0x1]
        %v2146 = vld [vmem:[#allocation2 + $0x3c] sm:$0xf]
        %v2147 = vld [vmem:[#allocation2 + $0x40] sm:$0xf]
        %v2148 = vld [vmem:[#allocation2 + $0x44] sm:$0x1]
        %v2149 = vld [vmem:[#allocation2 + $0x48] sm:$0xf]
        %v2150 = vld [vmem:[#allocation2 + $0x4c] sm:$0xf]
        %v2151 = vld [vmem:[#allocation2 + $0x50] sm:$0x1]
        %v2152 = vld [vmem:[#allocation2 + $0x54] sm:$0xf]
        %v2153 = vld [vmem:[#allocation2 + $0x58] sm:$0xf]
        %v2154 = vld [vmem:[#allocation2 + $0x5c] sm:$0x1]
        %v2155 = vld [vmem:[#allocation2 + $0x60] sm:$0xf]
        %v2156 = vld [vmem:[#allocation2 + $0x64] sm:$0xf]
        %v2157 = vld [vmem:[#allocation2 + $0x68] sm:$0x1]
        %v2158 = vld [vmem:[#allocation2 + $0x6c] sm:$0xf]
        %v2159 = vld [vmem:[#allocation2 + $0x70] sm:$0xf]
        %v2160 = vld [vmem:[#allocation2 + $0x74] sm:$0x1]
        %v2177 = vunpack.c.l.b16 %v2131
        %v2178 = vunpack.c.l.b16 %v2132
        %v2179 = vunpack.c.l.b16 %v2134
        %v2180 = vunpack.c.l.b16 %v2135
        %v2181 = vunpack.c.l.b16 %v2137
        %v2182 = vunpack.c.l.b16 %v2138
        %v2183 = vunpack.c.l.b16 %v2140
        %v2184 = vunpack.c.l.b16 %v2141
        %v2185 = vunpack.c.l.b16 %v2143
        %v2186 = vunpack.c.l.b16 %v2144
        %v2187 = vunpack.c.l.b16 %v2146
        %v2188 = vunpack.c.l.b16 %v2147
        %v2189 = vunpack.c.l.b16 %v2149
        %v2190 = vunpack.c.l.b16 %v2150
        %v2191 = vunpack.c.l.b16 %v2152
        %v2192 = vunpack.c.l.b16 %v2153
        %v2193 = vpack.c.b16 %v2178, %v2177
        %v2194 = vpack.c.b16 %v2180, %v2179
        %v2195 = vpack.c.b16 %v2182, %v2181
        %v2196 = vpack.c.b16 %v2184, %v2183
        %v2197 = vpack.c.b16 %v2186, %v2185
        %v2198 = vpack.c.b16 %v2188, %v2187
        %v2199 = vpack.c.b16 %v2190, %v2189
        %v2200 = vpack.c.b16 %v2192, %v2191
        %v2217 = vunpack.c.l.b16 %v2133
        %v2218 = vunpack.c.l.b16 %v2136
        %v2219 = vunpack.c.l.b16 %v2139
        %v2220 = vunpack.c.l.b16 %v2142
        %v2221 = vunpack.c.l.b16 %v2145
        %v2222 = vunpack.c.l.b16 %v2148
        %v2223 = vunpack.c.l.b16 %v2151
        %v2224 = vunpack.c.l.b16 %v2154
        %v2225 = vpack.c.b16 %v2217, %v2217
        %v2226 = vpack.c.b16 %v2218, %v2218
        %v2227 = vpack.c.b16 %v2219, %v2219
        %v2228 = vpack.c.b16 %v2220, %v2220
        %v2229 = vpack.c.b16 %v2221, %v2221
        %v2230 = vpack.c.b16 %v2222, %v2222
        %v2231 = vpack.c.b16 %v2223, %v2223
        %v2232 = vpack.c.b16 %v2224, %v2224
        %v2234 = vshrl.u32 %v2193, 16
        %v2236 = vshll.u32 %v2193, 16
        %v2238 = vrot.slane %v2236, 1
        %v2239 = vor.u32 %v2234, %v2238
        %v2241 = vshll.u32 %v2225, 16
        %v2243 = vrot.slane %v2241, 1
        %v2244 = vsel %vm396, %v2239, %v2243
        %v2246 = vshrl.u32 %v2194, 16
        %v2248 = vshll.u32 %v2194, 16
        %v2250 = vrot.slane %v2248, 1
        %v2251 = vor.u32 %v2246, %v2250
        %v2253 = vshll.u32 %v2226, 16
        %v2255 = vrot.slane %v2253, 1
        %v2256 = vsel %vm396, %v2251, %v2255
        %v2258 = vshrl.u32 %v2195, 16
        %v2260 = vshll.u32 %v2195, 16
        %v2262 = vrot.slane %v2260, 1
        %v2263 = vor.u32 %v2258, %v2262
        %v2265 = vshll.u32 %v2227, 16
        %v2267 = vrot.slane %v2265, 1
        %v2268 = vsel %vm396, %v2263, %v2267
        %v2270 = vshrl.u32 %v2196, 16
        %v2272 = vshll.u32 %v2196, 16
        %v2274 = vrot.slane %v2272, 1
        %v2275 = vor.u32 %v2270, %v2274
        %v2277 = vshll.u32 %v2228, 16
        %v2279 = vrot.slane %v2277, 1
        %v2280 = vsel %vm396, %v2275, %v2279
        %v2282 = vshrl.u32 %v2197, 16
        %v2284 = vshll.u32 %v2197, 16
        %v2286 = vrot.slane %v2284, 1
        %v2287 = vor.u32 %v2282, %v2286
        %v2289 = vshll.u32 %v2229, 16
        %v2291 = vrot.slane %v2289, 1
        %v2292 = vsel %vm396, %v2287, %v2291
        %v2294 = vshrl.u32 %v2198, 16
        %v2296 = vshll.u32 %v2198, 16
        %v2298 = vrot.slane %v2296, 1
        %v2299 = vor.u32 %v2294, %v2298
        %v2301 = vshll.u32 %v2230, 16
        %v2303 = vrot.slane %v2301, 1
        %v2304 = vsel %vm396, %v2299, %v2303
        %v2306 = vshrl.u32 %v2199, 16
        %v2308 = vshll.u32 %v2199, 16
        %v2310 = vrot.slane %v2308, 1
        %v2311 = vor.u32 %v2306, %v2310
        %v2313 = vshll.u32 %v2231, 16
        %v2315 = vrot.slane %v2313, 1
        %v2316 = vsel %vm396, %v2311, %v2315
        %v2318 = vshrl.u32 %v2200, 16
        %v2320 = vshll.u32 %v2200, 16
        %v2322 = vrot.slane %v2320, 1
        %v2323 = vor.u32 %v2318, %v2322
        %v2325 = vshll.u32 %v2232, 16
        %v2327 = vrot.slane %v2325, 1
        %v2328 = vsel %vm396, %v2323, %v2327
        %v2337 = vrot.slane %v2193, 1
        %v2338 = vrot.slane %v2225, 1
        %v2339 = vsel %vm527, %v2337, %v2338
        %v2340 = vrot.slane %v2194, 1
        %v2341 = vrot.slane %v2226, 1
        %v2342 = vsel %vm527, %v2340, %v2341
        %v2343 = vrot.slane %v2195, 1
        %v2344 = vrot.slane %v2227, 1
        %v2345 = vsel %vm527, %v2343, %v2344
        %v2346 = vrot.slane %v2196, 1
        %v2347 = vrot.slane %v2228, 1
        %v2348 = vsel %vm527, %v2346, %v2347
        %v2349 = vrot.slane %v2197, 1
        %v2350 = vrot.slane %v2229, 1
        %v2351 = vsel %vm527, %v2349, %v2350
        %v2352 = vrot.slane %v2198, 1
        %v2353 = vrot.slane %v2230, 1
        %v2354 = vsel %vm527, %v2352, %v2353
        %v2355 = vrot.slane %v2199, 1
        %v2356 = vrot.slane %v2231, 1
        %v2357 = vsel %vm527, %v2355, %v2356
        %v2358 = vrot.slane %v2200, 1
        %v2359 = vrot.slane %v2232, 1
        %v2360 = vsel %vm527, %v2358, %v2359
        %v2369 = vld [vmem:[#allocation3] sm:$0xf]
        %v2370 = vld [vmem:[#allocation3 + $0x4] sm:$0xf]
        %v2371 = vld [vmem:[#allocation3 + $0x8] sm:$0xf]
        %v2372 = vld [vmem:[#allocation3 + $0xc] sm:$0xf]
        %v2373 = vld [vmem:[#allocation3 + $0x10] sm:$0xf]
        %v2374 = vld [vmem:[#allocation3 + $0x14] sm:$0xf]
        %v2375 = vld [vmem:[#allocation3 + $0x18] sm:$0xf]
        %v2376 = vld [vmem:[#allocation3 + $0x1c] sm:$0xf]
        %v2377 = vld [vmem:[#allocation3 + $0x20] sm:$0xf]
        %v2378 = vld [vmem:[#allocation3 + $0x24] sm:$0xf]
        %v2379 = vld [vmem:[#allocation3 + $0x28] sm:$0xf]
        %v2380 = vld [vmem:[#allocation3 + $0x2c] sm:$0xf]
        %v2381 = vld [vmem:[#allocation3 + $0x30] sm:$0xf]
        %v2382 = vld [vmem:[#allocation3 + $0x34] sm:$0xf]
        %v2383 = vld [vmem:[#allocation3 + $0x38] sm:$0xf]
        %v2384 = vld [vmem:[#allocation3 + $0x3c] sm:$0xf]
        %v2385 = vld [vmem:[#allocation3 + $0x40] sm:$0xf]
        %v2386 = vld [vmem:[#allocation3 + $0x44] sm:$0xf]
        %v2387 = vld [vmem:[#allocation3 + $0x48] sm:$0xf]
        %v2388 = vld [vmem:[#allocation3 + $0x4c] sm:$0xf]
        %v2389 = vld [vmem:[#allocation3 + $0x50] sm:$0xf]
        %v2390 = vld [vmem:[#allocation3 + $0x54] sm:$0xf]
        %v2391 = vld [vmem:[#allocation3 + $0x58] sm:$0xf]
        %v2392 = vld [vmem:[#allocation3 + $0x5c] sm:$0xf]
        %v2393 = vld [vmem:[#allocation3 + $0x60] sm:$0xf]
        %v2394 = vld [vmem:[#allocation3 + $0x64] sm:$0xf]
        %v2395 = vld [vmem:[#allocation3 + $0x68] sm:$0xf]
        %v2396 = vld [vmem:[#allocation3 + $0x6c] sm:$0xf]
        %v2397 = vld [vmem:[#allocation3 + $0x70] sm:$0xf]
        %v2398 = vld [vmem:[#allocation3 + $0x74] sm:$0xf]
        %v2399 = vld [vmem:[#allocation3 + $0x78] sm:$0xf]
        %v2400 = vld [vmem:[#allocation3 + $0x7c] sm:$0xf]
        %v2401 = vld [vmem:[#allocation3 + $0x80] sm:$0xf]
        %v2402 = vld [vmem:[#allocation3 + $0x84] sm:$0xf]
        %v2403 = vld [vmem:[#allocation3 + $0x88] sm:$0xf]
        %v2404 = vld [vmem:[#allocation3 + $0x8c] sm:$0xf]
        %v2405 = vld [vmem:[#allocation3 + $0x90] sm:$0xf]
        %v2406 = vld [vmem:[#allocation3 + $0x94] sm:$0xf]
        %v2407 = vld [vmem:[#allocation3 + $0x98] sm:$0xf]
        %v2408 = vld [vmem:[#allocation3 + $0x9c] sm:$0xf]
        %v2409 = vld [vmem:[#allocation3 + $0xa0] sm:$0xf]
        %v2410 = vld [vmem:[#allocation3 + $0xa4] sm:$0xf]
        %v2411 = vld [vmem:[#allocation3 + $0xa8] sm:$0xf]
        %v2412 = vld [vmem:[#allocation3 + $0xac] sm:$0xf]
        %v2413 = vld [vmem:[#allocation3 + $0xb0] sm:$0xf]
        %v2414 = vld [vmem:[#allocation3 + $0xb4] sm:$0xf]
        %v2415 = vld [vmem:[#allocation3 + $0xb8] sm:$0xf]
        %v2416 = vld [vmem:[#allocation3 + $0xbc] sm:$0xf]
        %v2419 = vunpack.c.l.b16 %v2155
        %v2420 = vunpack.c.l.b16 %v2156
        %v2421 = vpack.c.b16 %v2420, %v2419
        %v2424 = vunpack.c.l.b16 %v2157
        %v2425 = vpack.c.b16 %v2424, %v2424
        %v2427 = vshrl.u32 %v2421, 16
        %v2429 = vshll.u32 %v2421, 16
        %v2431 = vrot.slane %v2429, 1
        %v2432 = vor.u32 %v2427, %v2431
        %v2434 = vshll.u32 %v2425, 16
        %v2436 = vrot.slane %v2434, 1
        %v2437 = vsel %vm396, %v2432, %v2436
        %v2439 = vrot.slane %v2421, 1
        %v2440 = vrot.slane %v2425, 1
        %v2441 = vsel %vm527, %v2439, %v2440
        %s2443 = scalar_lea.vmem [#allocation3], 192
        %v2444 = vld [vmem:[%s2443] sm:$0xf]
        %v2445 = vld [vmem:[%s2443 + $0x4] sm:$0xf]
        %v2446 = vld [vmem:[%s2443 + $0x8] sm:$0xf]
        %v2447 = vld [vmem:[%s2443 + $0xc] sm:$0xf]
        %v2448 = vld [vmem:[%s2443 + $0x10] sm:$0xf]
        %v2449 = vld [vmem:[%s2443 + $0x14] sm:$0xf]
        %v2450 = vld [vmem:[%s2443 + $0x18] sm:$0xf]
        %v2451 = vld [vmem:[%s2443 + $0x1c] sm:$0xf]
        %v2452 = vld [vmem:[%s2443 + $0x20] sm:$0xf]
        %v2453 = vld [vmem:[%s2443 + $0x24] sm:$0xf]
        %v2454 = vld [vmem:[%s2443 + $0x28] sm:$0xf]
        %v2455 = vld [vmem:[%s2443 + $0x2c] sm:$0xf]
        %v2456 = vld [vmem:[%s2443 + $0x30] sm:$0xf]
        %v2457 = vld [vmem:[%s2443 + $0x34] sm:$0xf]
        %v2458 = vld [vmem:[%s2443 + $0x38] sm:$0xf]
        %v2459 = vld [vmem:[%s2443 + $0x3c] sm:$0xf]
        %v2460 = vld [vmem:[%s2443 + $0x40] sm:$0xf]
        %v2461 = vld [vmem:[%s2443 + $0x44] sm:$0xf]
        %v2462 = vld [vmem:[%s2443 + $0x48] sm:$0xf]
        %v2463 = vld [vmem:[%s2443 + $0x4c] sm:$0xf]
        %v2464 = vld [vmem:[%s2443 + $0x50] sm:$0xf]
        %v2465 = vld [vmem:[%s2443 + $0x54] sm:$0xf]
        %v2466 = vld [vmem:[%s2443 + $0x58] sm:$0xf]
        %v2467 = vld [vmem:[%s2443 + $0x5c] sm:$0xf]
        %v2468 = vld [vmem:[%s2443 + $0x60] sm:$0xf]
        %v2469 = vld [vmem:[%s2443 + $0x64] sm:$0xf]
        %v2470 = vld [vmem:[%s2443 + $0x68] sm:$0xf]
        %v2471 = vld [vmem:[%s2443 + $0x6c] sm:$0xf]
        %v2472 = vld [vmem:[%s2443 + $0x70] sm:$0xf]
        %v2473 = vld [vmem:[%s2443 + $0x74] sm:$0xf]
        %v2474 = vld [vmem:[%s2443 + $0x78] sm:$0xf]
        %v2475 = vld [vmem:[%s2443 + $0x7c] sm:$0xf]
        %v2476 = vld [vmem:[%s2443 + $0x80] sm:$0xf]
        %v2477 = vld [vmem:[%s2443 + $0x84] sm:$0xf]
        %v2478 = vld [vmem:[%s2443 + $0x88] sm:$0xf]
        %v2479 = vld [vmem:[%s2443 + $0x8c] sm:$0xf]
        %v2480 = vld [vmem:[%s2443 + $0x90] sm:$0xf]
        %v2481 = vld [vmem:[%s2443 + $0x94] sm:$0xf]
        %v2482 = vld [vmem:[%s2443 + $0x98] sm:$0xf]
        %v2483 = vld [vmem:[%s2443 + $0x9c] sm:$0xf]
        %v2484 = vld [vmem:[%s2443 + $0xa0] sm:$0xf]
        %v2485 = vld [vmem:[%s2443 + $0xa4] sm:$0xf]
        %v2486 = vld [vmem:[%s2443 + $0xa8] sm:$0xf]
        %v2487 = vld [vmem:[%s2443 + $0xac] sm:$0xf]
        %v2488 = vld [vmem:[%s2443 + $0xb0] sm:$0xf]
        %v2489 = vld [vmem:[%s2443 + $0xb4] sm:$0xf]
        %v2490 = vld [vmem:[%s2443 + $0xb8] sm:$0xf]
        %v2491 = vld [vmem:[%s2443 + $0xbc] sm:$0xf]
        %v2540 = vunpack.c.l.b16 %v2444
        %v2541 = vunpack.c.l.b16 %v2445
        %v2542 = vunpack.c.l.b16 %v2446
        %v2543 = vunpack.c.l.b16 %v2447
        %v2544 = vunpack.c.l.b16 %v2448
        %v2545 = vunpack.c.l.b16 %v2449
        %v2546 = vunpack.c.l.b16 %v2450
        %v2547 = vunpack.c.l.b16 %v2451
        %v2548 = vunpack.c.l.b16 %v2452
        %v2549 = vunpack.c.l.b16 %v2453
        %v2550 = vunpack.c.l.b16 %v2454
        %v2551 = vunpack.c.l.b16 %v2455
        %v2552 = vunpack.c.l.b16 %v2456
        %v2553 = vunpack.c.l.b16 %v2457
        %v2554 = vunpack.c.l.b16 %v2458
        %v2555 = vunpack.c.l.b16 %v2459
        %v2556 = vunpack.c.l.b16 %v2460
        %v2557 = vunpack.c.l.b16 %v2461
        %v2558 = vunpack.c.l.b16 %v2462
        %v2559 = vunpack.c.l.b16 %v2463
        %v2560 = vunpack.c.l.b16 %v2464
        %v2561 = vunpack.c.l.b16 %v2465
        %v2562 = vunpack.c.l.b16 %v2466
        %v2563 = vunpack.c.l.b16 %v2467
        %v2564 = vunpack.c.l.b16 %v2468
        %v2565 = vunpack.c.l.b16 %v2469
        %v2566 = vunpack.c.l.b16 %v2470
        %v2567 = vunpack.c.l.b16 %v2471
        %v2568 = vunpack.c.l.b16 %v2472
        %v2569 = vunpack.c.l.b16 %v2473
        %v2570 = vunpack.c.l.b16 %v2474
        %v2571 = vunpack.c.l.b16 %v2475
        %v2572 = vunpack.c.l.b16 %v2476
        %v2573 = vunpack.c.l.b16 %v2477
        %v2574 = vunpack.c.l.b16 %v2478
        %v2575 = vunpack.c.l.b16 %v2479
        %v2576 = vunpack.c.l.b16 %v2480
        %v2577 = vunpack.c.l.b16 %v2481
        %v2578 = vunpack.c.l.b16 %v2482
        %v2579 = vunpack.c.l.b16 %v2483
        %v2580 = vunpack.c.l.b16 %v2484
        %v2581 = vunpack.c.l.b16 %v2485
        %v2582 = vunpack.c.l.b16 %v2486
        %v2583 = vunpack.c.l.b16 %v2487
        %v2584 = vunpack.c.l.b16 %v2488
        %v2585 = vunpack.c.l.b16 %v2489
        %v2586 = vunpack.c.l.b16 %v2490
        %v2587 = vunpack.c.l.b16 %v2491
        %v2588 = vpack.c.b16 %v2541, %v2540
        %v2589 = vpack.c.b16 %v2543, %v2542
        %v2590 = vpack.c.b16 %v2545, %v2544
        %v2591 = vpack.c.b16 %v2547, %v2546
        %v2592 = vpack.c.b16 %v2549, %v2548
        %v2593 = vpack.c.b16 %v2551, %v2550
        %v2594 = vpack.c.b16 %v2553, %v2552
        %v2595 = vpack.c.b16 %v2555, %v2554
        %v2596 = vpack.c.b16 %v2557, %v2556
        %v2597 = vpack.c.b16 %v2559, %v2558
        %v2598 = vpack.c.b16 %v2561, %v2560
        %v2599 = vpack.c.b16 %v2563, %v2562
        %v2600 = vpack.c.b16 %v2565, %v2564
        %v2601 = vpack.c.b16 %v2567, %v2566
        %v2602 = vpack.c.b16 %v2569, %v2568
        %v2603 = vpack.c.b16 %v2571, %v2570
        %v2604 = vpack.c.b16 %v2573, %v2572
        %v2605 = vpack.c.b16 %v2575, %v2574
        %v2606 = vpack.c.b16 %v2577, %v2576
        %v2607 = vpack.c.b16 %v2579, %v2578
        %v2608 = vpack.c.b16 %v2581, %v2580
        %v2609 = vpack.c.b16 %v2583, %v2582
        %v2610 = vpack.c.b16 %v2585, %v2584
        %v2611 = vpack.c.b16 %v2587, %v2586
        %2636 = vmatpush.bf16.msra.mxu0 %v2595
        %2637 = vmatpush.bf16.msra.mxu0 %v2594
        %2638 = vmatpush.bf16.msra.mxu0 %v2593
        %2639 = vmatpush.bf16.msra.mxu0 %v2592
        %2640 = vmatpush.bf16.msra.mxu0 %v2591
        %2641 = vmatpush.bf16.msra.mxu0 %v2590
        %2642 = vmatpush.bf16.msra.mxu0 %v2589
        %2643 = vmatpush.bf16.msra.mxu0 %v2588
        %2644 = vmatmul.bf16.gmra.mxu0 %v2194
        %v2645 = vpop.f32.mrf.mxu0
        %v2646 = vadd.f32 0.0, %v2645
        %v2647 = vpop.f32.mrf.mxu0
        %v2648 = vadd.f32 0.0, %v2647
        %2649 = vmatmul.bf16.gmra.mxu0 %v2195
        %v2650 = vpop.f32.mrf.mxu0
        %v2651 = vadd.f32 0.0, %v2650
        %v2652 = vpop.f32.mrf.mxu0
        %v2653 = vadd.f32 0.0, %v2652
        %2654 = vmatmul.bf16.gmra.mxu0 %v2196
        %v2655 = vpop.f32.mrf.mxu0
        %v2656 = vadd.f32 0.0, %v2655
        %v2657 = vpop.f32.mrf.mxu0
        %v2658 = vadd.f32 0.0, %v2657
        %2659 = vmatmul.bf16.gmra.mxu0 %v2197
        %v2660 = vpop.f32.mrf.mxu0
        %v2661 = vadd.f32 0.0, %v2660
        %v2662 = vpop.f32.mrf.mxu0
        %v2663 = vadd.f32 0.0, %v2662
        %2664 = vmatmul.bf16.gmra.mxu0 %v2198
        %v2665 = vpop.f32.mrf.mxu0
        %v2666 = vadd.f32 0.0, %v2665
        %v2667 = vpop.f32.mrf.mxu0
        %v2668 = vadd.f32 0.0, %v2667
        %2669 = vmatmul.bf16.gmra.mxu0 %v2199
        %v2670 = vpop.f32.mrf.mxu0
        %v2671 = vadd.f32 0.0, %v2670
        %v2672 = vpop.f32.mrf.mxu0
        %v2673 = vadd.f32 0.0, %v2672
        %2674 = vmatmul.bf16.gmra.mxu0 %v2200
        %v2675 = vpop.f32.mrf.mxu0
        %v2676 = vadd.f32 0.0, %v2675
        %v2677 = vpop.f32.mrf.mxu0
        %v2678 = vadd.f32 0.0, %v2677
        %2679 = vmatmul.bf16.gmra.mxu0 %v2421
        %v2680 = vpop.f32.mrf.mxu0
        %v2681 = vadd.f32 0.0, %v2680
        %v2682 = vpop.f32.mrf.mxu0
        %v2683 = vadd.f32 0.0, %v2682
        %2684 = vdwg.mxu0
        %2685 = vmatpush.bf16.msra.mxu0 %v2603
        %2686 = vmatpush.bf16.msra.mxu0 %v2602
        %2687 = vmatpush.bf16.msra.mxu0 %v2601
        %2688 = vmatpush.bf16.msra.mxu0 %v2600
        %2689 = vmatpush.bf16.msra.mxu0 %v2599
        %2690 = vmatpush.bf16.msra.mxu0 %v2598
        %2691 = vmatpush.bf16.msra.mxu0 %v2597
        %2692 = vmatpush.bf16.msra.mxu0 %v2596
        %2693 = vmatmul.bf16.gmra.mxu0 %v2256
        %v2694 = vpop.f32.mrf.mxu0
        %v2695 = vadd.f32 %v2646, %v2694
        %v2696 = vpop.f32.mrf.mxu0
        %v2697 = vadd.f32 %v2648, %v2696
        %2698 = vmatmul.bf16.gmra.mxu0 %v2268
        %v2699 = vpop.f32.mrf.mxu0
        %v2700 = vadd.f32 %v2651, %v2699
        %v2701 = vpop.f32.mrf.mxu0
        %v2702 = vadd.f32 %v2653, %v2701
        %2703 = vmatmul.bf16.gmra.mxu0 %v2280
        %v2704 = vpop.f32.mrf.mxu0
        %v2705 = vadd.f32 %v2656, %v2704
        %v2706 = vpop.f32.mrf.mxu0
        %v2707 = vadd.f32 %v2658, %v2706
        %2708 = vmatmul.bf16.gmra.mxu0 %v2292
        %v2709 = vpop.f32.mrf.mxu0
        %v2710 = vadd.f32 %v2661, %v2709
        %v2711 = vpop.f32.mrf.mxu0
        %v2712 = vadd.f32 %v2663, %v2711
        %2713 = vmatmul.bf16.gmra.mxu0 %v2304
        %v2714 = vpop.f32.mrf.mxu0
        %v2715 = vadd.f32 %v2666, %v2714
        %v2716 = vpop.f32.mrf.mxu0
        %v2717 = vadd.f32 %v2668, %v2716
        %2718 = vmatmul.bf16.gmra.mxu0 %v2316
        %v2719 = vpop.f32.mrf.mxu0
        %v2720 = vadd.f32 %v2671, %v2719
        %v2721 = vpop.f32.mrf.mxu0
        %v2722 = vadd.f32 %v2673, %v2721
        %2723 = vmatmul.bf16.gmra.mxu0 %v2328
        %v2724 = vpop.f32.mrf.mxu0
        %v2725 = vadd.f32 %v2676, %v2724
        %v2726 = vpop.f32.mrf.mxu0
        %v2727 = vadd.f32 %v2678, %v2726
        %2728 = vmatmul.bf16.gmra.mxu0 %v2437
        %v2729 = vpop.f32.mrf.mxu0
        %v2730 = vadd.f32 %v2681, %v2729
        %v2731 = vpop.f32.mrf.mxu0
        %v2732 = vadd.f32 %v2683, %v2731
        %2733 = vdwg.mxu0
        %2734 = vmatpush.bf16.msra.mxu0 %v2611
        %2735 = vmatpush.bf16.msra.mxu0 %v2610
        %2736 = vmatpush.bf16.msra.mxu0 %v2609
        %2737 = vmatpush.bf16.msra.mxu0 %v2608
        %2738 = vmatpush.bf16.msra.mxu0 %v2607
        %2739 = vmatpush.bf16.msra.mxu0 %v2606
        %2740 = vmatpush.bf16.msra.mxu0 %v2605
        %2741 = vmatpush.bf16.msra.mxu0 %v2604
        %2742 = vmatmul.bf16.gmra.mxu0 %v2342
        %v2743 = vpop.f32.mrf.mxu0
        %v2744 = vadd.f32 %v2695, %v2743
        %v2745 = vpop.f32.mrf.mxu0
        %v2746 = vadd.f32 %v2697, %v2745
        %2747 = vmatmul.bf16.gmra.mxu0 %v2345
        %v2748 = vpop.f32.mrf.mxu0
        %v2749 = vadd.f32 %v2700, %v2748
        %v2750 = vpop.f32.mrf.mxu0
        %v2751 = vadd.f32 %v2702, %v2750
        %2752 = vmatmul.bf16.gmra.mxu0 %v2348
        %v2753 = vpop.f32.mrf.mxu0
        %v2754 = vadd.f32 %v2705, %v2753
        %v2755 = vpop.f32.mrf.mxu0
        %v2756 = vadd.f32 %v2707, %v2755
        %2757 = vmatmul.bf16.gmra.mxu0 %v2351
        %v2758 = vpop.f32.mrf.mxu0
        %v2759 = vadd.f32 %v2710, %v2758
        %v2760 = vpop.f32.mrf.mxu0
        %v2761 = vadd.f32 %v2712, %v2760
        %2762 = vmatmul.bf16.gmra.mxu0 %v2354
        %v2763 = vpop.f32.mrf.mxu0
        %v2764 = vadd.f32 %v2715, %v2763
        %v2765 = vpop.f32.mrf.mxu0
        %v2766 = vadd.f32 %v2717, %v2765
        %2767 = vmatmul.bf16.gmra.mxu0 %v2357
        %v2768 = vpop.f32.mrf.mxu0
        %v2769 = vadd.f32 %v2720, %v2768
        %v2770 = vpop.f32.mrf.mxu0
        %v2771 = vadd.f32 %v2722, %v2770
        %2772 = vmatmul.bf16.gmra.mxu0 %v2360
        %v2773 = vpop.f32.mrf.mxu0
        %v2774 = vadd.f32 %v2725, %v2773
        %v2775 = vpop.f32.mrf.mxu0
        %v2776 = vadd.f32 %v2727, %v2775
        %2777 = vmatmul.bf16.gmra.mxu0 %v2441
        %v2778 = vpop.f32.mrf.mxu0
        %v2779 = vadd.f32 %v2730, %v2778
        %v2780 = vpop.f32.mrf.mxu0
        %v2781 = vadd.f32 %v2732, %v2780
        %2782 = vdwg.mxu0
        %v2831 = vunpack.c.l.b16 %v2369
        %v2832 = vunpack.c.l.b16 %v2370
        %v2833 = vunpack.c.l.b16 %v2371
        %v2834 = vunpack.c.l.b16 %v2372
        %v2835 = vunpack.c.l.b16 %v2373
        %v2836 = vunpack.c.l.b16 %v2374
        %v2837 = vunpack.c.l.b16 %v2375
        %v2838 = vunpack.c.l.b16 %v2376
        %v2839 = vunpack.c.l.b16 %v2377
        %v2840 = vunpack.c.l.b16 %v2378
        %v2841 = vunpack.c.l.b16 %v2379
        %v2842 = vunpack.c.l.b16 %v2380
        %v2843 = vunpack.c.l.b16 %v2381
        %v2844 = vunpack.c.l.b16 %v2382
        %v2845 = vunpack.c.l.b16 %v2383
        %v2846 = vunpack.c.l.b16 %v2384
        %v2847 = vunpack.c.l.b16 %v2385
        %v2848 = vunpack.c.l.b16 %v2386
        %v2849 = vunpack.c.l.b16 %v2387
        %v2850 = vunpack.c.l.b16 %v2388
        %v2851 = vunpack.c.l.b16 %v2389
        %v2852 = vunpack.c.l.b16 %v2390
        %v2853 = vunpack.c.l.b16 %v2391
        %v2854 = vunpack.c.l.b16 %v2392
        %v2855 = vunpack.c.l.b16 %v2393
        %v2856 = vunpack.c.l.b16 %v2394
        %v2857 = vunpack.c.l.b16 %v2395
        %v2858 = vunpack.c.l.b16 %v2396
        %v2859 = vunpack.c.l.b16 %v2397
        %v2860 = vunpack.c.l.b16 %v2398
        %v2861 = vunpack.c.l.b16 %v2399
        %v2862 = vunpack.c.l.b16 %v2400
        %v2863 = vunpack.c.l.b16 %v2401
        %v2864 = vunpack.c.l.b16 %v2402
        %v2865 = vunpack.c.l.b16 %v2403
        %v2866 = vunpack.c.l.b16 %v2404
        %v2867 = vunpack.c.l.b16 %v2405
        %v2868 = vunpack.c.l.b16 %v2406
        %v2869 = vunpack.c.l.b16 %v2407
        %v2870 = vunpack.c.l.b16 %v2408
        %v2871 = vunpack.c.l.b16 %v2409
        %v2872 = vunpack.c.l.b16 %v2410
        %v2873 = vunpack.c.l.b16 %v2411
        %v2874 = vunpack.c.l.b16 %v2412
        %v2875 = vunpack.c.l.b16 %v2413
        %v2876 = vunpack.c.l.b16 %v2414
        %v2877 = vunpack.c.l.b16 %v2415
        %v2878 = vunpack.c.l.b16 %v2416
        %v2879 = vpack.c.b16 %v2832, %v2831
        %v2880 = vpack.c.b16 %v2834, %v2833
        %v2881 = vpack.c.b16 %v2836, %v2835
        %v2882 = vpack.c.b16 %v2838, %v2837
        %v2883 = vpack.c.b16 %v2840, %v2839
        %v2884 = vpack.c.b16 %v2842, %v2841
        %v2885 = vpack.c.b16 %v2844, %v2843
        %v2886 = vpack.c.b16 %v2846, %v2845
        %v2887 = vpack.c.b16 %v2848, %v2847
        %v2888 = vpack.c.b16 %v2850, %v2849
        %v2889 = vpack.c.b16 %v2852, %v2851
        %v2890 = vpack.c.b16 %v2854, %v2853
        %v2891 = vpack.c.b16 %v2856, %v2855
        %v2892 = vpack.c.b16 %v2858, %v2857
        %v2893 = vpack.c.b16 %v2860, %v2859
        %v2894 = vpack.c.b16 %v2862, %v2861
        %v2895 = vpack.c.b16 %v2864, %v2863
        %v2896 = vpack.c.b16 %v2866, %v2865
        %v2897 = vpack.c.b16 %v2868, %v2867
        %v2898 = vpack.c.b16 %v2870, %v2869
        %v2899 = vpack.c.b16 %v2872, %v2871
        %v2900 = vpack.c.b16 %v2874, %v2873
        %v2901 = vpack.c.b16 %v2876, %v2875
        %v2902 = vpack.c.b16 %v2878, %v2877
        %2927 = vmatpush.bf16.msra.mxu0 %v2886
        %2928 = vmatpush.bf16.msra.mxu0 %v2885
        %2929 = vmatpush.bf16.msra.mxu0 %v2884
        %2930 = vmatpush.bf16.msra.mxu0 %v2883
        %2931 = vmatpush.bf16.msra.mxu0 %v2882
        %2932 = vmatpush.bf16.msra.mxu0 %v2881
        %2933 = vmatpush.bf16.msra.mxu0 %v2880
        %2934 = vmatpush.bf16.msra.mxu0 %v2879
        %2935 = vmatmul.bf16.gmra.mxu0 %v2193
        %v2936 = vpop.f32.mrf.mxu0
        %v2937 = vadd.f32 %v2744, %v2936
        %v2938 = vpop.f32.mrf.mxu0
        %v2939 = vadd.f32 %v2746, %v2938
        %2940 = vmatmul.bf16.gmra.mxu0 %v2194
        %v2941 = vpop.f32.mrf.mxu0
        %v2942 = vadd.f32 %v2749, %v2941
        %v2943 = vpop.f32.mrf.mxu0
        %v2944 = vadd.f32 %v2751, %v2943
        %2945 = vmatmul.bf16.gmra.mxu0 %v2195
        %v2946 = vpop.f32.mrf.mxu0
        %v2947 = vadd.f32 %v2754, %v2946
        %v2948 = vpop.f32.mrf.mxu0
        %v2949 = vadd.f32 %v2756, %v2948
        %2950 = vmatmul.bf16.gmra.mxu0 %v2196
        %v2951 = vpop.f32.mrf.mxu0
        %v2952 = vadd.f32 %v2759, %v2951
        %v2953 = vpop.f32.mrf.mxu0
        %v2954 = vadd.f32 %v2761, %v2953
        %2955 = vmatmul.bf16.gmra.mxu0 %v2197
        %v2956 = vpop.f32.mrf.mxu0
        %v2957 = vadd.f32 %v2764, %v2956
        %v2958 = vpop.f32.mrf.mxu0
        %v2959 = vadd.f32 %v2766, %v2958
        %2960 = vmatmul.bf16.gmra.mxu0 %v2198
        %v2961 = vpop.f32.mrf.mxu0
        %v2962 = vadd.f32 %v2769, %v2961
        %v2963 = vpop.f32.mrf.mxu0
        %v2964 = vadd.f32 %v2771, %v2963
        %2965 = vmatmul.bf16.gmra.mxu0 %v2199
        %v2966 = vpop.f32.mrf.mxu0
        %v2967 = vadd.f32 %v2774, %v2966
        %v2968 = vpop.f32.mrf.mxu0
        %v2969 = vadd.f32 %v2776, %v2968
        %2970 = vmatmul.bf16.gmra.mxu0 %v2200
        %v2971 = vpop.f32.mrf.mxu0
        %v2972 = vadd.f32 %v2779, %v2971
        %v2973 = vpop.f32.mrf.mxu0
        %v2974 = vadd.f32 %v2781, %v2973
        %2975 = vdwg.mxu0
        %2976 = vmatpush.bf16.msra.mxu0 %v2894
        %2977 = vmatpush.bf16.msra.mxu0 %v2893
        %2978 = vmatpush.bf16.msra.mxu0 %v2892
        %2979 = vmatpush.bf16.msra.mxu0 %v2891
        %2980 = vmatpush.bf16.msra.mxu0 %v2890
        %2981 = vmatpush.bf16.msra.mxu0 %v2889
        %2982 = vmatpush.bf16.msra.mxu0 %v2888
        %2983 = vmatpush.bf16.msra.mxu0 %v2887
        %2984 = vmatmul.bf16.gmra.mxu0 %v2244
        %v2985 = vpop.f32.mrf.mxu0
        %v2986 = vadd.f32 %v2937, %v2985
        %v2987 = vpop.f32.mrf.mxu0
        %v2988 = vadd.f32 %v2939, %v2987
        %2989 = vmatmul.bf16.gmra.mxu0 %v2256
        %v2990 = vpop.f32.mrf.mxu0
        %v2991 = vadd.f32 %v2942, %v2990
        %v2992 = vpop.f32.mrf.mxu0
        %v2993 = vadd.f32 %v2944, %v2992
        %2994 = vmatmul.bf16.gmra.mxu0 %v2268
        %v2995 = vpop.f32.mrf.mxu0
        %v2996 = vadd.f32 %v2947, %v2995
        %v2997 = vpop.f32.mrf.mxu0
        %v2998 = vadd.f32 %v2949, %v2997
        %2999 = vmatmul.bf16.gmra.mxu0 %v2280
        %v3000 = vpop.f32.mrf.mxu0
        %v3001 = vadd.f32 %v2952, %v3000
        %v3002 = vpop.f32.mrf.mxu0
        %v3003 = vadd.f32 %v2954, %v3002
        %3004 = vmatmul.bf16.gmra.mxu0 %v2292
        %v3005 = vpop.f32.mrf.mxu0
        %v3006 = vadd.f32 %v2957, %v3005
        %v3007 = vpop.f32.mrf.mxu0
        %v3008 = vadd.f32 %v2959, %v3007
        %3009 = vmatmul.bf16.gmra.mxu0 %v2304
        %v3010 = vpop.f32.mrf.mxu0
        %v3011 = vadd.f32 %v2962, %v3010
        %v3012 = vpop.f32.mrf.mxu0
        %v3013 = vadd.f32 %v2964, %v3012
        %3014 = vmatmul.bf16.gmra.mxu0 %v2316
        %v3015 = vpop.f32.mrf.mxu0
        %v3016 = vadd.f32 %v2967, %v3015
        %v3017 = vpop.f32.mrf.mxu0
        %v3018 = vadd.f32 %v2969, %v3017
        %3019 = vmatmul.bf16.gmra.mxu0 %v2328
        %v3020 = vpop.f32.mrf.mxu0
        %v3021 = vadd.f32 %v2972, %v3020
        %v3022 = vpop.f32.mrf.mxu0
        %v3023 = vadd.f32 %v2974, %v3022
        %3024 = vdwg.mxu0
        %3025 = vmatpush.bf16.msra.mxu0 %v2902
        %3026 = vmatpush.bf16.msra.mxu0 %v2901
        %3027 = vmatpush.bf16.msra.mxu0 %v2900
        %3028 = vmatpush.bf16.msra.mxu0 %v2899
        %3029 = vmatpush.bf16.msra.mxu0 %v2898
        %3030 = vmatpush.bf16.msra.mxu0 %v2897
        %3031 = vmatpush.bf16.msra.mxu0 %v2896
        %3032 = vmatpush.bf16.msra.mxu0 %v2895
        %3033 = vmatmul.bf16.gmra.mxu0 %v2339
        %v3034 = vpop.f32.mrf.mxu0
        %v3035 = vadd.f32 %v2986, %v3034
        %v3036 = vpop.f32.mrf.mxu0
        %v3037 = vadd.f32 %v2988, %v3036
        %3038 = vmatmul.bf16.gmra.mxu0 %v2342
        %v3039 = vpop.f32.mrf.mxu0
        %v3040 = vadd.f32 %v2991, %v3039
        %v3041 = vpop.f32.mrf.mxu0
        %v3042 = vadd.f32 %v2993, %v3041
        %3043 = vmatmul.bf16.gmra.mxu0 %v2345
        %v3044 = vpop.f32.mrf.mxu0
        %v3045 = vadd.f32 %v2996, %v3044
        %v3046 = vpop.f32.mrf.mxu0
        %v3047 = vadd.f32 %v2998, %v3046
        %3048 = vmatmul.bf16.gmra.mxu0 %v2348
        %v3049 = vpop.f32.mrf.mxu0
        %v3050 = vadd.f32 %v3001, %v3049
        %v3051 = vpop.f32.mrf.mxu0
        %v3052 = vadd.f32 %v3003, %v3051
        %3053 = vmatmul.bf16.gmra.mxu0 %v2351
        %v3054 = vpop.f32.mrf.mxu0
        %v3055 = vadd.f32 %v3006, %v3054
        %v3056 = vpop.f32.mrf.mxu0
        %v3057 = vadd.f32 %v3008, %v3056
        %3058 = vmatmul.bf16.gmra.mxu0 %v2354
        %v3059 = vpop.f32.mrf.mxu0
        %v3060 = vadd.f32 %v3011, %v3059
        %v3061 = vpop.f32.mrf.mxu0
        %v3062 = vadd.f32 %v3013, %v3061
        %3063 = vmatmul.bf16.gmra.mxu0 %v2357
        %v3064 = vpop.f32.mrf.mxu0
        %v3065 = vadd.f32 %v3016, %v3064
        %v3066 = vpop.f32.mrf.mxu0
        %v3067 = vadd.f32 %v3018, %v3066
        %3068 = vmatmul.bf16.gmra.mxu0 %v2360
        %v3069 = vpop.f32.mrf.mxu0
        %v3070 = vadd.f32 %v3021, %v3069
        %v3071 = vpop.f32.mrf.mxu0
        %v3072 = vadd.f32 %v3023, %v3071
        %3073 = vdwg.mxu0
        %v3076 = vunpack.c.l.b16 %v2158
        %v3077 = vunpack.c.l.b16 %v2159
        %v3078 = vpack.c.b16 %v3077, %v3076
        %v3081 = vunpack.c.l.b16 %v2160
        %v3082 = vpack.c.b16 %v3081, %v3081
        %v3084 = vshrl.u32 %v3078, 16
        %v3086 = vshll.u32 %v3078, 16
        %v3088 = vrot.slane %v3086, 1
        %v3089 = vor.u32 %v3084, %v3088
        %v3091 = vshll.u32 %v3082, 16
        %v3093 = vrot.slane %v3091, 1
        %v3094 = vsel %vm396, %v3089, %v3093
        %v3096 = vrot.slane %v3078, 1
        %v3097 = vrot.slane %v3082, 1
        %v3098 = vsel %vm527, %v3096, %v3097
        %s3100 = scalar_lea.vmem [#allocation3], 384
        %v3101 = vld [vmem:[%s3100] sm:$0xf]
        %v3102 = vld [vmem:[%s3100 + $0x4] sm:$0xf]
        %v3103 = vld [vmem:[%s3100 + $0x8] sm:$0xf]
        %v3104 = vld [vmem:[%s3100 + $0xc] sm:$0xf]
        %v3105 = vld [vmem:[%s3100 + $0x10] sm:$0xf]
        %v3106 = vld [vmem:[%s3100 + $0x14] sm:$0xf]
        %v3107 = vld [vmem:[%s3100 + $0x18] sm:$0xf]
        %v3108 = vld [vmem:[%s3100 + $0x1c] sm:$0xf]
        %v3109 = vld [vmem:[%s3100 + $0x20] sm:$0xf]
        %v3110 = vld [vmem:[%s3100 + $0x24] sm:$0xf]
        %v3111 = vld [vmem:[%s3100 + $0x28] sm:$0xf]
        %v3112 = vld [vmem:[%s3100 + $0x2c] sm:$0xf]
        %v3113 = vld [vmem:[%s3100 + $0x30] sm:$0xf]
        %v3114 = vld [vmem:[%s3100 + $0x34] sm:$0xf]
        %v3115 = vld [vmem:[%s3100 + $0x38] sm:$0xf]
        %v3116 = vld [vmem:[%s3100 + $0x3c] sm:$0xf]
        %v3117 = vld [vmem:[%s3100 + $0x40] sm:$0xf]
        %v3118 = vld [vmem:[%s3100 + $0x44] sm:$0xf]
        %v3119 = vld [vmem:[%s3100 + $0x48] sm:$0xf]
        %v3120 = vld [vmem:[%s3100 + $0x4c] sm:$0xf]
        %v3121 = vld [vmem:[%s3100 + $0x50] sm:$0xf]
        %v3122 = vld [vmem:[%s3100 + $0x54] sm:$0xf]
        %v3123 = vld [vmem:[%s3100 + $0x58] sm:$0xf]
        %v3124 = vld [vmem:[%s3100 + $0x5c] sm:$0xf]
        %v3125 = vld [vmem:[%s3100 + $0x60] sm:$0xf]
        %v3126 = vld [vmem:[%s3100 + $0x64] sm:$0xf]
        %v3127 = vld [vmem:[%s3100 + $0x68] sm:$0xf]
        %v3128 = vld [vmem:[%s3100 + $0x6c] sm:$0xf]
        %v3129 = vld [vmem:[%s3100 + $0x70] sm:$0xf]
        %v3130 = vld [vmem:[%s3100 + $0x74] sm:$0xf]
        %v3131 = vld [vmem:[%s3100 + $0x78] sm:$0xf]
        %v3132 = vld [vmem:[%s3100 + $0x7c] sm:$0xf]
        %v3133 = vld [vmem:[%s3100 + $0x80] sm:$0xf]
        %v3134 = vld [vmem:[%s3100 + $0x84] sm:$0xf]
        %v3135 = vld [vmem:[%s3100 + $0x88] sm:$0xf]
        %v3136 = vld [vmem:[%s3100 + $0x8c] sm:$0xf]
        %v3137 = vld [vmem:[%s3100 + $0x90] sm:$0xf]
        %v3138 = vld [vmem:[%s3100 + $0x94] sm:$0xf]
        %v3139 = vld [vmem:[%s3100 + $0x98] sm:$0xf]
        %v3140 = vld [vmem:[%s3100 + $0x9c] sm:$0xf]
        %v3141 = vld [vmem:[%s3100 + $0xa0] sm:$0xf]
        %v3142 = vld [vmem:[%s3100 + $0xa4] sm:$0xf]
        %v3143 = vld [vmem:[%s3100 + $0xa8] sm:$0xf]
        %v3144 = vld [vmem:[%s3100 + $0xac] sm:$0xf]
        %v3145 = vld [vmem:[%s3100 + $0xb0] sm:$0xf]
        %v3146 = vld [vmem:[%s3100 + $0xb4] sm:$0xf]
        %v3147 = vld [vmem:[%s3100 + $0xb8] sm:$0xf]
        %v3148 = vld [vmem:[%s3100 + $0xbc] sm:$0xf]
        %v3197 = vunpack.c.l.b16 %v3101
        %v3198 = vunpack.c.l.b16 %v3102
        %v3199 = vunpack.c.l.b16 %v3103
        %v3200 = vunpack.c.l.b16 %v3104
        %v3201 = vunpack.c.l.b16 %v3105
        %v3202 = vunpack.c.l.b16 %v3106
        %v3203 = vunpack.c.l.b16 %v3107
        %v3204 = vunpack.c.l.b16 %v3108
        %v3205 = vunpack.c.l.b16 %v3109
        %v3206 = vunpack.c.l.b16 %v3110
        %v3207 = vunpack.c.l.b16 %v3111
        %v3208 = vunpack.c.l.b16 %v3112
        %v3209 = vunpack.c.l.b16 %v3113
        %v3210 = vunpack.c.l.b16 %v3114
        %v3211 = vunpack.c.l.b16 %v3115
        %v3212 = vunpack.c.l.b16 %v3116
        %v3213 = vunpack.c.l.b16 %v3117
        %v3214 = vunpack.c.l.b16 %v3118
        %v3215 = vunpack.c.l.b16 %v3119
        %v3216 = vunpack.c.l.b16 %v3120
        %v3217 = vunpack.c.l.b16 %v3121
        %v3218 = vunpack.c.l.b16 %v3122
        %v3219 = vunpack.c.l.b16 %v3123
        %v3220 = vunpack.c.l.b16 %v3124
        %v3221 = vunpack.c.l.b16 %v3125
        %v3222 = vunpack.c.l.b16 %v3126
        %v3223 = vunpack.c.l.b16 %v3127
        %v3224 = vunpack.c.l.b16 %v3128
        %v3225 = vunpack.c.l.b16 %v3129
        %v3226 = vunpack.c.l.b16 %v3130
        %v3227 = vunpack.c.l.b16 %v3131
        %v3228 = vunpack.c.l.b16 %v3132
        %v3229 = vunpack.c.l.b16 %v3133
        %v3230 = vunpack.c.l.b16 %v3134
        %v3231 = vunpack.c.l.b16 %v3135
        %v3232 = vunpack.c.l.b16 %v3136
        %v3233 = vunpack.c.l.b16 %v3137
        %v3234 = vunpack.c.l.b16 %v3138
        %v3235 = vunpack.c.l.b16 %v3139
        %v3236 = vunpack.c.l.b16 %v3140
        %v3237 = vunpack.c.l.b16 %v3141
        %v3238 = vunpack.c.l.b16 %v3142
        %v3239 = vunpack.c.l.b16 %v3143
        %v3240 = vunpack.c.l.b16 %v3144
        %v3241 = vunpack.c.l.b16 %v3145
        %v3242 = vunpack.c.l.b16 %v3146
        %v3243 = vunpack.c.l.b16 %v3147
        %v3244 = vunpack.c.l.b16 %v3148
        %v3245 = vpack.c.b16 %v3198, %v3197
        %v3246 = vpack.c.b16 %v3200, %v3199
        %v3247 = vpack.c.b16 %v3202, %v3201
        %v3248 = vpack.c.b16 %v3204, %v3203
        %v3249 = vpack.c.b16 %v3206, %v3205
        %v3250 = vpack.c.b16 %v3208, %v3207
        %v3251 = vpack.c.b16 %v3210, %v3209
        %v3252 = vpack.c.b16 %v3212, %v3211
        %v3253 = vpack.c.b16 %v3214, %v3213
        %v3254 = vpack.c.b16 %v3216, %v3215
        %v3255 = vpack.c.b16 %v3218, %v3217
        %v3256 = vpack.c.b16 %v3220, %v3219
        %v3257 = vpack.c.b16 %v3222, %v3221
        %v3258 = vpack.c.b16 %v3224, %v3223
        %v3259 = vpack.c.b16 %v3226, %v3225
        %v3260 = vpack.c.b16 %v3228, %v3227
        %v3261 = vpack.c.b16 %v3230, %v3229
        %v3262 = vpack.c.b16 %v3232, %v3231
        %v3263 = vpack.c.b16 %v3234, %v3233
        %v3264 = vpack.c.b16 %v3236, %v3235
        %v3265 = vpack.c.b16 %v3238, %v3237
        %v3266 = vpack.c.b16 %v3240, %v3239
        %v3267 = vpack.c.b16 %v3242, %v3241
        %v3268 = vpack.c.b16 %v3244, %v3243
        %3293 = vmatpush.bf16.msra.mxu0 %v3252
        %3294 = vmatpush.bf16.msra.mxu0 %v3251
        %3295 = vmatpush.bf16.msra.mxu0 %v3250
        %3296 = vmatpush.bf16.msra.mxu0 %v3249
        %3297 = vmatpush.bf16.msra.mxu0 %v3248
        %3298 = vmatpush.bf16.msra.mxu0 %v3247
        %3299 = vmatpush.bf16.msra.mxu0 %v3246
        %3300 = vmatpush.bf16.msra.mxu0 %v3245
        %3301 = vmatmul.bf16.gmra.mxu0 %v2195
        %v3302 = vpop.f32.mrf.mxu0
        %v3303 = vadd.f32 0.0, %v3302
        %v3304 = vpop.f32.mrf.mxu0
        %v3305 = vadd.f32 0.0, %v3304
        %3306 = vmatmul.bf16.gmra.mxu0 %v2196
        %v3307 = vpop.f32.mrf.mxu0
        %v3308 = vadd.f32 0.0, %v3307
        %v3309 = vpop.f32.mrf.mxu0
        %v3310 = vadd.f32 0.0, %v3309
        %3311 = vmatmul.bf16.gmra.mxu0 %v2197
        %v3312 = vpop.f32.mrf.mxu0
        %v3313 = vadd.f32 0.0, %v3312
        %v3314 = vpop.f32.mrf.mxu0
        %v3315 = vadd.f32 0.0, %v3314
        %3316 = vmatmul.bf16.gmra.mxu0 %v2198
        %v3317 = vpop.f32.mrf.mxu0
        %v3318 = vadd.f32 0.0, %v3317
        %v3319 = vpop.f32.mrf.mxu0
        %v3320 = vadd.f32 0.0, %v3319
        %3321 = vmatmul.bf16.gmra.mxu0 %v2199
        %v3322 = vpop.f32.mrf.mxu0
        %v3323 = vadd.f32 0.0, %v3322
        %v3324 = vpop.f32.mrf.mxu0
        %v3325 = vadd.f32 0.0, %v3324
        %3326 = vmatmul.bf16.gmra.mxu0 %v2200
        %v3327 = vpop.f32.mrf.mxu0
        %v3328 = vadd.f32 0.0, %v3327
        %v3329 = vpop.f32.mrf.mxu0
        %v3330 = vadd.f32 0.0, %v3329
        %3331 = vmatmul.bf16.gmra.mxu0 %v2421
        %v3332 = vpop.f32.mrf.mxu0
        %v3333 = vadd.f32 0.0, %v3332
        %v3334 = vpop.f32.mrf.mxu0
        %v3335 = vadd.f32 0.0, %v3334
        %3336 = vmatmul.bf16.gmra.mxu0 %v3078
        %v3337 = vpop.f32.mrf.mxu0
        %v3338 = vadd.f32 0.0, %v3337
        %v3339 = vpop.f32.mrf.mxu0
        %v3340 = vadd.f32 0.0, %v3339
        %3341 = vdwg.mxu0
        %3342 = vmatpush.bf16.msra.mxu0 %v3260
        %3343 = vmatpush.bf16.msra.mxu0 %v3259
        %3344 = vmatpush.bf16.msra.mxu0 %v3258
        %3345 = vmatpush.bf16.msra.mxu0 %v3257
        %3346 = vmatpush.bf16.msra.mxu0 %v3256
        %3347 = vmatpush.bf16.msra.mxu0 %v3255
        %3348 = vmatpush.bf16.msra.mxu0 %v3254
        %3349 = vmatpush.bf16.msra.mxu0 %v3253
        %3350 = vmatmul.bf16.gmra.mxu0 %v2268
        %v3351 = vpop.f32.mrf.mxu0
        %v3352 = vadd.f32 %v3303, %v3351
        %v3353 = vpop.f32.mrf.mxu0
        %v3354 = vadd.f32 %v3305, %v3353
        %3355 = vmatmul.bf16.gmra.mxu0 %v2280
        %v3356 = vpop.f32.mrf.mxu0
        %v3357 = vadd.f32 %v3308, %v3356
        %v3358 = vpop.f32.mrf.mxu0
        %v3359 = vadd.f32 %v3310, %v3358
        %3360 = vmatmul.bf16.gmra.mxu0 %v2292
        %v3361 = vpop.f32.mrf.mxu0
        %v3362 = vadd.f32 %v3313, %v3361
        %v3363 = vpop.f32.mrf.mxu0
        %v3364 = vadd.f32 %v3315, %v3363
        %3365 = vmatmul.bf16.gmra.mxu0 %v2304
        %v3366 = vpop.f32.mrf.mxu0
        %v3367 = vadd.f32 %v3318, %v3366
        %v3368 = vpop.f32.mrf.mxu0
        %v3369 = vadd.f32 %v3320, %v3368
        %3370 = vmatmul.bf16.gmra.mxu0 %v2316
        %v3371 = vpop.f32.mrf.mxu0
        %v3372 = vadd.f32 %v3323, %v3371
        %v3373 = vpop.f32.mrf.mxu0
        %v3374 = vadd.f32 %v3325, %v3373
        %3375 = vmatmul.bf16.gmra.mxu0 %v2328
        %v3376 = vpop.f32.mrf.mxu0
        %v3377 = vadd.f32 %v3328, %v3376
        %v3378 = vpop.f32.mrf.mxu0
        %v3379 = vadd.f32 %v3330, %v3378
        %3380 = vmatmul.bf16.gmra.mxu0 %v2437
        %v3381 = vpop.f32.mrf.mxu0
        %v3382 = vadd.f32 %v3333, %v3381
        %v3383 = vpop.f32.mrf.mxu0
        %v3384 = vadd.f32 %v3335, %v3383
        %3385 = vmatmul.bf16.gmra.mxu0 %v3094
        %v3386 = vpop.f32.mrf.mxu0
        %v3387 = vadd.f32 %v3338, %v3386
        %v3388 = vpop.f32.mrf.mxu0
        %v3389 = vadd.f32 %v3340, %v3388
        %3390 = vdwg.mxu0
        %3391 = vmatpush.bf16.msra.mxu0 %v3268
        %3392 = vmatpush.bf16.msra.mxu0 %v3267
        %3393 = vmatpush.bf16.msra.mxu0 %v3266
        %3394 = vmatpush.bf16.msra.mxu0 %v3265
        %3395 = vmatpush.bf16.msra.mxu0 %v3264
        %3396 = vmatpush.bf16.msra.mxu0 %v3263
        %3397 = vmatpush.bf16.msra.mxu0 %v3262
        %3398 = vmatpush.bf16.msra.mxu0 %v3261
        %3399 = vmatmul.bf16.gmra.mxu0 %v2345
        %v3400 = vpop.f32.mrf.mxu0
        %v3401 = vadd.f32 %v3352, %v3400
        %v3402 = vpop.f32.mrf.mxu0
        %v3403 = vadd.f32 %v3354, %v3402
        %3404 = vmatmul.bf16.gmra.mxu0 %v2348
        %v3405 = vpop.f32.mrf.mxu0
        %v3406 = vadd.f32 %v3357, %v3405
        %v3407 = vpop.f32.mrf.mxu0
        %v3408 = vadd.f32 %v3359, %v3407
        %3409 = vmatmul.bf16.gmra.mxu0 %v2351
        %v3410 = vpop.f32.mrf.mxu0
        %v3411 = vadd.f32 %v3362, %v3410
        %v3412 = vpop.f32.mrf.mxu0
        %v3413 = vadd.f32 %v3364, %v3412
        %3414 = vmatmul.bf16.gmra.mxu0 %v2354
        %v3415 = vpop.f32.mrf.mxu0
        %v3416 = vadd.f32 %v3367, %v3415
        %v3417 = vpop.f32.mrf.mxu0
        %v3418 = vadd.f32 %v3369, %v3417
        %3419 = vmatmul.bf16.gmra.mxu0 %v2357
        %v3420 = vpop.f32.mrf.mxu0
        %v3421 = vadd.f32 %v3372, %v3420
        %v3422 = vpop.f32.mrf.mxu0
        %v3423 = vadd.f32 %v3374, %v3422
        %3424 = vmatmul.bf16.gmra.mxu0 %v2360
        %v3425 = vpop.f32.mrf.mxu0
        %v3426 = vadd.f32 %v3377, %v3425
        %v3427 = vpop.f32.mrf.mxu0
        %v3428 = vadd.f32 %v3379, %v3427
        %3429 = vmatmul.bf16.gmra.mxu0 %v2441
        %v3430 = vpop.f32.mrf.mxu0
        %v3431 = vadd.f32 %v3382, %v3430
        %v3432 = vpop.f32.mrf.mxu0
        %v3433 = vadd.f32 %v3384, %v3432
        %3434 = vmatmul.bf16.gmra.mxu0 %v3098
        %v3435 = vpop.f32.mrf.mxu0
        %v3436 = vadd.f32 %v3387, %v3435
        %v3437 = vpop.f32.mrf.mxu0
        %v3438 = vadd.f32 %v3389, %v3437
        %3439 = vdwg.mxu0
        %v3440 = vadd.f32 %v3035, %v3401
        %v3441 = vadd.f32 %v3037, %v3403
        %v3442 = vadd.f32 %v3040, %v3406
        %v3443 = vadd.f32 %v3042, %v3408
        %v3444 = vadd.f32 %v3045, %v3411
        %v3445 = vadd.f32 %v3047, %v3413
        %v3446 = vadd.f32 %v3050, %v3416
        %v3447 = vadd.f32 %v3052, %v3418
        %v3448 = vadd.f32 %v3055, %v3421
        %v3449 = vadd.f32 %v3057, %v3423
        %v3450 = vadd.f32 %v3060, %v3426
        %v3451 = vadd.f32 %v3062, %v3428
        %v3452 = vadd.f32 %v3065, %v3431
        %v3453 = vadd.f32 %v3067, %v3433
        %v3454 = vadd.f32 %v3070, %v3436
        %v3455 = vadd.f32 %v3072, %v3438
        %v3456 = vld [vmem:[%s4] sm:$0x1]
        %v3458 = vperm.slane %v3456, 0
        %v3460 = vadd.f32 %v3440, %v3458
        %v3461 = vadd.f32 %v3441, %v3458
        %v3462 = vadd.f32 %v3442, %v3458
        %v3463 = vadd.f32 %v3443, %v3458
        %v3464 = vadd.f32 %v3444, %v3458
        %v3465 = vadd.f32 %v3445, %v3458
        %v3466 = vadd.f32 %v3446, %v3458
        %v3467 = vadd.f32 %v3447, %v3458
        %v3468 = vadd.f32 %v3448, %v3458
        %v3469 = vadd.f32 %v3449, %v3458
        %v3470 = vadd.f32 %v3450, %v3458
        %v3471 = vadd.f32 %v3451, %v3458
        %v3472 = vadd.f32 %v3452, %v3458
        %v3473 = vadd.f32 %v3453, %v3458
        %v3474 = vadd.f32 %v3454, %v3458
        %v3475 = vadd.f32 %v3455, %v3458
        %v3476 = vmax.f32 %v3460, 0.0
        %v3477 = vmax.f32 %v3461, 0.0
        %v3478 = vmax.f32 %v3462, 0.0
        %v3479 = vmax.f32 %v3463, 0.0
        %v3480 = vmax.f32 %v3464, 0.0
        %v3481 = vmax.f32 %v3465, 0.0
        %v3482 = vmax.f32 %v3466, 0.0
        %v3483 = vmax.f32 %v3467, 0.0
        %v3484 = vmax.f32 %v3468, 0.0
        %v3485 = vmax.f32 %v3469, 0.0
        %v3486 = vmax.f32 %v3470, 0.0
        %v3487 = vmax.f32 %v3471, 0.0
        %v3488 = vmax.f32 %v3472, 0.0
        %v3489 = vmax.f32 %v3473, 0.0
        %v3490 = vmax.f32 %v3474, 0.0
        %v3491 = vmax.f32 %v3475, 0.0
        %v3492 = vpack.c.bf16 %v3476, %v3476
        %v3493 = vpack.c.bf16 %v3477, %v3477
        %v3494 = vpack.c.bf16 %v3478, %v3478
        %v3495 = vpack.c.bf16 %v3479, %v3479
        %v3496 = vpack.c.bf16 %v3480, %v3480
        %v3497 = vpack.c.bf16 %v3481, %v3481
        %v3498 = vpack.c.bf16 %v3482, %v3482
        %v3499 = vpack.c.bf16 %v3483, %v3483
        %v3500 = vpack.c.bf16 %v3484, %v3484
        %v3501 = vpack.c.bf16 %v3485, %v3485
        %v3502 = vpack.c.bf16 %v3486, %v3486
        %v3503 = vpack.c.bf16 %v3487, %v3487
        %v3504 = vpack.c.bf16 %v3488, %v3488
        %v3505 = vpack.c.bf16 %v3489, %v3489
        %v3506 = vpack.c.bf16 %v3490, %v3490
        %v3507 = vpack.c.bf16 %v3491, %v3491
        %3508 = vst [vmem:[%s258] sm:$0xf] %v3492
        %3509 = vst [vmem:[%s258 + $0x4] sm:$0xf] %v3493
        %3510 = vst [vmem:[%s258 + $0x8] sm:$0xf] %v3494
        %3511 = vst [vmem:[%s258 + $0xc] sm:$0xf] %v3495
        %3512 = vst [vmem:[%s258 + $0x10] sm:$0xf] %v3496
        %3513 = vst [vmem:[%s258 + $0x14] sm:$0xf] %v3497
        %3514 = vst [vmem:[%s258 + $0x18] sm:$0xf] %v3498
        %3515 = vst [vmem:[%s258 + $0x1c] sm:$0xf] %v3499
        %3516 = vst [vmem:[%s258 + $0x20] sm:$0xf] %v3500
        %3517 = vst [vmem:[%s258 + $0x24] sm:$0xf] %v3501
        %3518 = vst [vmem:[%s258 + $0x28] sm:$0xf] %v3502
        %3519 = vst [vmem:[%s258 + $0x2c] sm:$0xf] %v3503
        %3520 = vst [vmem:[%s258 + $0x30] sm:$0xf] %v3504
        %3521 = vst [vmem:[%s258 + $0x34] sm:$0xf] %v3505
        %3522 = vst [vmem:[%s258 + $0x38] sm:$0xf] %v3506
        %3523 = vst [vmem:[%s258 + $0x3c] sm:$0xf] %v3507
        %s3524 = sand.u32 %s154, 1
        %s3525 = scalar_lea.sflag [#allocation5], %s3524
        %s3526 = sand.u32 %s154, 1
        %s3527 = smul.addr %s3526, 64
        %s3528 = scalar_lea.vmem [#allocation6], %s3527
        // Predicated region
        $region53: #{tpu_custom_call.1} parent=39 // pred_check
          %p3529 = pneg %p164
        $region54: #{tpu_custom_call.1} parent=39 // pred_check_branch
          %3531 = sbr.rel (%p3529) target = $region56
        $region55: #{tpu_custom_call.1} parent=39 // pred_region
          %s3532 = smul.u32 8, %s25
          %3534 = vsyncadd %s3525, 0
          %s3535 = smul.addr %s3532, 2
          %s3536 = smul.addr %s24, 32
          %s3537 = sadd.s32 %s3535, %s3536
          %s3538 = smul.addr %s3537, 4
          %s3539 = scalar_lea.hbm %s5, %s3538
          %s3540 = sshll.u32 %s3528, 4
          %s3541 = int_to_ptr.vmem [resolvable:$true] %s3540
          %s3542 = sshll.u32 %s3539, 4
          %s3543 = int_to_ptr.hbm [resolvable:$true] %s3542
          %3548 = dma.vmem_to_hbm [thread:$0]  %s3541, 1024, %s3543, %s3525, 64, 64, 4
        $region56: #{tpu_custom_call.1} parent=39 // pred_fallthru
          _
      $region40: #{tpu_custom_call.1} parent=5 // pred_fallthru
        _
      %p3549 = scmp.le.s32.totalorder 2, %s15
      // Predicated region
      $region57: #{tpu_custom_call.1} parent=5 // pred_check
        %p3550 = pneg %p3549
      $region58: #{tpu_custom_call.1} parent=5 // pred_check_branch
        %3552 = sbr.rel (%p3550) target = $region60
      $region59: #{tpu_custom_call.1} parent=5 // pred_region
        %s3553 = ssub.s32 %s15, 2
        // Predicated region
        $region61: #{tpu_custom_call.1} parent=59 // pred_check
          %p3554 = pneg %p170
        $region62: #{tpu_custom_call.1} parent=59 // pred_check_branch
          %3556 = sbr.rel (%p3554) target = $region64
        $region63: #{tpu_custom_call.1} parent=59 // pred_region
          %s3557 = sand.u32 %s155, 1
          %s3558 = scalar_lea.sflag [#allocation5], %s3557
          %s3559 = sand.u32 %s155, 1
          %s3560 = smul.addr %s3559, 64
          %s3561 = scalar_lea.vmem [#allocation6], %s3560
          %3563 = dma.done %s3558, 1024
        $region64: #{tpu_custom_call.1} parent=59 // pred_fallthru
          _
      $region60: #{tpu_custom_call.1} parent=5 // pred_fallthru
        _
    $region6: #{tpu_custom_call.1} parent=1 // loop_footer
      %s19 = sadd.s32 1, %s15
    $region7: #{tpu_custom_call.1} parent=1 // loop_footer_branch
      %14 = sbr.rel target = $region3
    $region8: #{tpu_custom_call.1} parent=1 // loop_exit
      _
    %3564 = vsyncpa [#allocation4], 1
    %s3565 = scalar_lea.sflag [#allocation4], 1
    %3566 = vsyncpa %s3565, 1
    %3567 = vsyncpa [#allocation5], 1
    %s3568 = scalar_lea.sflag [#allocation5], 1
    %3569 = vsyncpa %s3568, 1

</llo_original>
